<compile_context>
chip_gen: v5e
topology: v5e:2x2
jax: 0.10.0
libtpu: 0.0.40
codegen_flags: <defaults>
</compile_context>

<pallas_src>
import math

import jax
import jax.numpy as jnp
from jax import lax
from jax.experimental import pallas as pl
from jax.experimental.pallas import tpu as pltpu

HIDDEN = 512  # fixed by the PyTorch module


def _round_up(n, m):
    return ((n + m - 1) // m) * m


def _rnd_kernel(x_ref,
                w1_ref, b1_ref,            # fused first layer [predictor | target]
                w2p_ref, b2p_ref,          # predictor L2
                w3p_ref, b3p_ref,          # predictor L3
                w2t_ref, b2t_ref,          # target L2
                pred_ref, targ_ref):
    wdt = w1_ref.dtype                      # bf16 (default) or f32 (parity mode)
    x = x_ref[...].astype(wdt)

    # ---- fused first layer of both networks: (bm, D) @ (D, 1024), f32 acc ----
    h1 = jnp.dot(x, w1_ref[...], preferred_element_type=jnp.float32) + b1_ref[...]
    h1 = jnp.maximum(h1, 0.0)
    hp = h1[:, :HIDDEN]                     # lane-aligned static split at 512
    ht = h1[:, HIDDEN:]

    # ---- predictor tail: Linear -> ReLU -> Linear ----
    h2 = jnp.dot(hp.astype(wdt), w2p_ref[...],
                 preferred_element_type=jnp.float32) + b2p_ref[...]
    h2 = jnp.maximum(h2, 0.0)
    p = jnp.dot(h2.astype(wdt), w3p_ref[...],
                preferred_element_type=jnp.float32) + b3p_ref[...]
    pred_ref[...] = p.astype(pred_ref.dtype)

    # ---- target tail: Linear ----
    t = jnp.dot(ht.astype(wdt), w2t_ref[...],
                preferred_element_type=jnp.float32) + b2t_ref[...]
    targ_ref[...] = t.astype(targ_ref.dtype)


def prepare_params(params, compute_dtype=jnp.bfloat16):
    """One-time weight fusion + cast. Call once (outside the hot path) and
    reuse the result for every rnd_forward call.

    compute_dtype: dtype of matmul operands. bf16 (default) runs the MXU at
    native rate and halves weight DMA/VMEM; use f32 only for parity tests.
    """
    # Target network is frozen in RND (requires_grad=False in torch).
    w1t = lax.stop_gradient(params["w1t"])
    b1t = lax.stop_gradient(params["b1t"])
    w2t = lax.stop_gradient(params["w2t"])
    b2t = lax.stop_gradient(params["b2t"])

    return {
        # fused first layer of both networks (same LHS x)
        "w1": jnp.concatenate([params["w1p"], w1t], axis=1).astype(compute_dtype),
        "b1": jnp.concatenate([params["b1p"], b1t], axis=1).astype(jnp.float32),
        "w2p": params["w2p"].astype(compute_dtype),
        "b2p": params["b2p"].astype(jnp.float32),
        "w3p": params["w3p"].astype(compute_dtype),
        "b3p": params["b3p"].astype(jnp.float32),
        "w2t": w2t.astype(compute_dtype),
        "b2t": b2t.astype(jnp.float32),
    }


def rnd_forward(x, prepared, *, bm=512):
    """x: (B, D) float32. prepared: output of prepare_params().
    Returns (predict_feature, target_feature), each (B, 512) float32.

    bm: batch tile (primary tuning knob); clamped to the batch and kept a
    multiple of 8. Defaults to 512 (MXU-filling, amortizes per-step overhead).
    """
    B, D = x.shape
    w1, b1 = prepared["w1"], prepared["b1"]
    w2p, b2p = prepared["w2p"], prepared["b2p"]
    w3p, b3p = prepared["w3p"], prepared["b3p"]
    w2t, b2t = prepared["w2t"], prepared["b2t"]
    cdt = w1.dtype

    # ---- batch tile: never smaller than needed, never degenerate ----
    bm_eff = _round_up(max(8, min(bm, _round_up(B, 8))), 8)
    grid = pl.cdiv(B, bm_eff)
    # Keep >= 2 parallel grid steps (v7x megacore) only when each half still
    # has >= 256 rows; on 1-TC chips the extra step costs ~0.35us, negligible.
    if grid < 2 and bm_eff >= 512:
        bm_eff = _round_up(-(-bm_eff // 2), 8)
        grid = pl.cdiv(B, bm_eff)

    # ---- VMEM budget (conservative: weights double-buffered) / cost hint ----
    witem = jnp.dtype(cdt).itemsize
    wbytes = (w1.size + w2p.size + w3p.size + w2t.size) * witem
    bbytes = (b1.size + b2p.size + b3p.size + b2t.size) * 4
    io_bytes = 2 * (bm_eff * D * 4 + 2 * bm_eff * HIDDEN * 4)   # dbl-buffered x + 2 outs
    scratch_bytes = 4 * bm_eff * HIDDEN * 4                     # h1 + temporaries (f32)
    vmem_limit = int(min(max(2 * (wbytes + bbytes) + io_bytes + scratch_bytes + (8 << 20),
                             16 << 20),
                         48 << 20))                              # v7x has 64 MiB/TC

    Bp = grid * bm_eff
    cost = pl.CostEstimate(
        flops=int(2 * Bp * (D * 2 * HIDDEN + 3 * HIDDEN * HIDDEN)),
        transcendentals=0,
        bytes_accessed=int(wbytes + bbytes + B * D * 4 + 2 * B * HIDDEN * 4),
    )

    wspec2 = lambda shape: pl.BlockSpec(shape, lambda i: (0, 0))
    in_specs = [
        pl.BlockSpec((bm_eff, D), lambda i: (i, 0)),       # x tile
        wspec2((D, 2 * HIDDEN)), wspec2((1, 2 * HIDDEN)),  # fused L1
        wspec2((HIDDEN, HIDDEN)), wspec2((1, HIDDEN)),     # predictor L2
        wspec2((HIDDEN, HIDDEN)), wspec2((1, HIDDEN)),     # predictor L3
        wspec2((HIDDEN, HIDDEN)), wspec2((1, HIDDEN)),     # target L2
    ]
    out_specs = [pl.BlockSpec((bm_eff, HIDDEN), lambda i: (i, 0)),
                 pl.BlockSpec((bm_eff, HIDDEN), lambda i: (i, 0))]
    out_shape = [jax.ShapeDtypeStruct((B, HIDDEN), jnp.float32),
                 jax.ShapeDtypeStruct((B, HIDDEN), jnp.float32)]

    pred, targ = pl.pallas_call(
        _rnd_kernel,
        out_shape=out_shape,
        grid_spec=pltpu.PrefetchScalarGridSpec(
            num_scalar_prefetch=0,
            grid=(grid,),
            in_specs=in_specs,
            out_specs=out_specs,
        ),
        compiler_params=pltpu.CompilerParams(
            dimension_semantics=("parallel",),
            vmem_limit_bytes=vmem_limit,
        ),
        cost_estimate=cost,
    )(x, w1, b1, w2p, b2p, w3p, b3p, w2t, b2t)
    return pred, targ


def init_params(key, input_dim):
    """Orthogonal init (gain sqrt(2)), zero biases, as in the PyTorch module.
    Weights stored pre-transposed as (in, out); biases as (1, out)."""
    ortho = jax.nn.initializers.orthogonal(scale=math.sqrt(2.0))
    ks = jax.random.split(key, 5)
    return {
        # predictor
        "w1p": ortho(ks[0], (input_dim, HIDDEN), jnp.float32),
        "b1p": jnp.zeros((1, HIDDEN), jnp.float32),
        "w2p": ortho(ks[1], (HIDDEN, HIDDEN), jnp.float32),
        "b2p": jnp.zeros((1, HIDDEN), jnp.float32),
        "w3p": ortho(ks[2], (HIDDEN, HIDDEN), jnp.float32),
        "b3p": jnp.zeros((1, HIDDEN), jnp.float32),
        # target (frozen; stop_gradient applied in prepare_params)
        "w1t": ortho(ks[3], (input_dim, HIDDEN), jnp.float32),
        "b1t": jnp.zeros((1, HIDDEN), jnp.float32),
        "w2t": ortho(ks[4], (HIDDEN, HIDDEN), jnp.float32),
        "b2t": jnp.zeros((1, HIDDEN), jnp.float32),
    }


def rnd_forward_ref(x, p):
    """Pure-JAX f32 reference for correctness checking."""
    h = jnp.maximum(x @ p["w1p"] + p["b1p"], 0.0)
    h = jnp.maximum(h @ p["w2p"] + p["b2p"], 0.0)
    pred = h @ p["w3p"] + p["b3p"]
    t = jnp.maximum(x @ p["w1t"] + p["b1t"], 0.0)
    targ = t @ p["w2t"] + p["b2t"]
    return pred, targ


if __name__ == "__main__":
    # Small, module-consistent shapes: batch=16, input_size=(128,)
    B, D = 16, 128
    key = jax.random.PRNGKey(0)
    k_x, k_w = jax.random.split(key)

    x = jax.random.normal(k_x, (B, D), dtype=jnp.float32)
    params = init_params(k_w, D)
    pred_ref, targ_ref = rnd_forward_ref(x, params)

    # --- default hot path: bf16 matmul operands, f32 accumulation ---
    prepped = prepare_params(params)                 # compute_dtype = bf16
    predict_feature, target_feature = rnd_forward(x, prepped)
    jax.block_until_ready((predict_feature, target_feature))

    assert predict_feature.shape == (B, HIDDEN)
    assert target_feature.shape == (B, HIDDEN)
    assert jnp.allclose(predict_feature, pred_ref, atol=1e-1, rtol=5e-2)
    assert jnp.allclose(target_feature, targ_ref, atol=1e-1, rtol=5e-2)

    # --- f32 parity mode: tight check against the reference ---
    prepped32 = prepare_params(params, compute_dtype=jnp.float32)
    pred32, targ32 = rnd_forward(x, prepped32)
    jax.block_until_ready((pred32, targ32))
    assert jnp.allclose(pred32, pred_ref, atol=1e-4, rtol=1e-4)
    assert jnp.allclose(targ32, targ_ref, atol=1e-4, rtol=1e-4)

    print("KERNEL_OK")
</pallas_src>

<mosaic_0001>
module attributes {stable_mosaic.version = 11 : i64} {
  func.func @_rnd_kernel(%arg0: i32, %arg1: memref<16x128xf32, #tpu.memory_space<vmem>>, %arg2: memref<128x1024xbf16, #tpu.memory_space<vmem>>, %arg3: memref<1x1024xf32, #tpu.memory_space<vmem>>, %arg4: memref<512x512xbf16, #tpu.memory_space<vmem>>, %arg5: memref<1x512xf32, #tpu.memory_space<vmem>>, %arg6: memref<512x512xbf16, #tpu.memory_space<vmem>>, %arg7: memref<1x512xf32, #tpu.memory_space<vmem>>, %arg8: memref<512x512xbf16, #tpu.memory_space<vmem>>, %arg9: memref<1x512xf32, #tpu.memory_space<vmem>>, %arg10: memref<16x512xf32, #tpu.memory_space<vmem>>, %arg11: memref<16x512xf32, #tpu.memory_space<vmem>>) attributes {dimension_semantics = [#tpu.dimension_semantics<parallel>], iteration_bounds = array<i64: 1>, scalar_prefetch = 0 : i64, scratch_operands = 0 : i64, tpu.core_type = #tpu.core_type<tc>, window_params = [{transform_indices = @transform_0, window_bounds = array<i64: 16, 128>}, {pipeline_mode = #tpu.pipeline_mode<synchronous>, transform_indices = @transform_1, window_bounds = array<i64: 128, 1024>}, {pipeline_mode = #tpu.pipeline_mode<synchronous>, transform_indices = @transform_2, window_bounds = array<i64: 1, 1024>}, {pipeline_mode = #tpu.pipeline_mode<synchronous>, transform_indices = @transform_3, window_bounds = array<i64: 512, 512>}, {pipeline_mode = #tpu.pipeline_mode<synchronous>, transform_indices = @transform_4, window_bounds = array<i64: 1, 512>}, {pipeline_mode = #tpu.pipeline_mode<synchronous>, transform_indices = @transform_5, window_bounds = array<i64: 512, 512>}, {pipeline_mode = #tpu.pipeline_mode<synchronous>, transform_indices = @transform_6, window_bounds = array<i64: 1, 512>}, {pipeline_mode = #tpu.pipeline_mode<synchronous>, transform_indices = @transform_7, window_bounds = array<i64: 512, 512>}, {pipeline_mode = #tpu.pipeline_mode<synchronous>, transform_indices = @transform_8, window_bounds = array<i64: 1, 512>}, {transform_indices = @transform_9, window_bounds = array<i64: 16, 512>}, {transform_indices = @transform_10, window_bounds = array<i64: 16, 512>}]} {
    %c0 = arith.constant 0 : index
    %c0_0 = arith.constant 0 : index
    %0 = vector.load %arg1[%c0, %c0_0] : memref<16x128xf32, #tpu.memory_space<vmem>>, vector<16x128xf32>
    %1 = arith.truncf %0 : vector<16x128xf32> to vector<16x128xbf16>
    %c0_1 = arith.constant 0 : index
    %c0_2 = arith.constant 0 : index
    %2 = vector.load %arg2[%c0_1, %c0_2] : memref<128x1024xbf16, #tpu.memory_space<vmem>>, vector<128x1024xbf16>
    %cst = arith.constant dense<0.000000e+00> : vector<16x1024xf32>
    %3 = tpu.matmul %1, %2, %cst {dimension_numbers = #tpu.dot_dimension_numbers<[1], [0], [0], [1], [0, 0, 1, 1], [], []>} : vector<16x128xbf16>, vector<128x1024xbf16>, vector<16x1024xf32> -> vector<16x1024xf32>
    %c0_3 = arith.constant 0 : index
    %c0_4 = arith.constant 0 : index
    %4 = vector.load %arg3[%c0_3, %c0_4] : memref<1x1024xf32, #tpu.memory_space<vmem>>, vector<1x1024xf32>
    %5 = vector.broadcast %4 : vector<1x1024xf32> to vector<16x1024xf32>
    %6 = arith.addf %3, %5 : vector<16x1024xf32>
    %cst_5 = arith.constant 0.000000e+00 : f32
    %7 = vector.broadcast %cst_5 : f32 to vector<16x1024xf32>
    %8 = arith.maximumf %6, %7 : vector<16x1024xf32>
    %9 = vector.extract_strided_slice %8 {offsets = [0, 0], sizes = [16, 512], strides = [1, 1]} : vector<16x1024xf32> to vector<16x512xf32>
    %10 = vector.extract_strided_slice %8 {offsets = [0, 512], sizes = [16, 512], strides = [1, 1]} : vector<16x1024xf32> to vector<16x512xf32>
    %11 = arith.truncf %9 : vector<16x512xf32> to vector<16x512xbf16>
    %c0_6 = arith.constant 0 : index
    %c0_7 = arith.constant 0 : index
    %12 = vector.load %arg4[%c0_6, %c0_7] : memref<512x512xbf16, #tpu.memory_space<vmem>>, vector<512x512xbf16>
    %cst_8 = arith.constant dense<0.000000e+00> : vector<16x512xf32>
    %13 = tpu.matmul %11, %12, %cst_8 {dimension_numbers = #tpu.dot_dimension_numbers<[1], [0], [0], [1], [0, 0, 1, 1], [], []>} : vector<16x512xbf16>, vector<512x512xbf16>, vector<16x512xf32> -> vector<16x512xf32>
    %c0_9 = arith.constant 0 : index
    %c0_10 = arith.constant 0 : index
    %14 = vector.load %arg5[%c0_9, %c0_10] : memref<1x512xf32, #tpu.memory_space<vmem>>, vector<1x512xf32>
    %15 = vector.broadcast %14 : vector<1x512xf32> to vector<16x512xf32>
    %16 = arith.addf %13, %15 : vector<16x512xf32>
    %cst_11 = arith.constant 0.000000e+00 : f32
    %17 = vector.broadcast %cst_11 : f32 to vector<16x512xf32>
    %18 = arith.maximumf %16, %17 : vector<16x512xf32>
    %19 = arith.truncf %18 : vector<16x512xf32> to vector<16x512xbf16>
    %c0_12 = arith.constant 0 : index
    %c0_13 = arith.constant 0 : index
    %20 = vector.load %arg6[%c0_12, %c0_13] : memref<512x512xbf16, #tpu.memory_space<vmem>>, vector<512x512xbf16>
    %cst_14 = arith.constant dense<0.000000e+00> : vector<16x512xf32>
    %21 = tpu.matmul %19, %20, %cst_14 {dimension_numbers = #tpu.dot_dimension_numbers<[1], [0], [0], [1], [0, 0, 1, 1], [], []>} : vector<16x512xbf16>, vector<512x512xbf16>, vector<16x512xf32> -> vector<16x512xf32>
    %c0_15 = arith.constant 0 : index
    %c0_16 = arith.constant 0 : index
    %22 = vector.load %arg7[%c0_15, %c0_16] : memref<1x512xf32, #tpu.memory_space<vmem>>, vector<1x512xf32>
    %23 = vector.broadcast %22 : vector<1x512xf32> to vector<16x512xf32>
    %24 = arith.addf %21, %23 : vector<16x512xf32>
    %c0_17 = arith.constant 0 : index
    %c0_18 = arith.constant 0 : index
    %25 = vector.load %arg10[%c0_17, %c0_18] : memref<16x512xf32, #tpu.memory_space<vmem>>, vector<16x512xf32>
    tpu.vector_store %arg10[%c0_17, %c0_18], %24 {strides = array<i32>} : memref<16x512xf32, #tpu.memory_space<vmem>>, vector<16x512xf32>,
    %26 = arith.truncf %10 : vector<16x512xf32> to vector<16x512xbf16>
    %c0_19 = arith.constant 0 : index
    %c0_20 = arith.constant 0 : index
    %27 = vector.load %arg8[%c0_19, %c0_20] : memref<512x512xbf16, #tpu.memory_space<vmem>>, vector<512x512xbf16>
    %cst_21 = arith.constant dense<0.000000e+00> : vector<16x512xf32>
    %28 = tpu.matmul %26, %27, %cst_21 {dimension_numbers = #tpu.dot_dimension_numbers<[1], [0], [0], [1], [0, 0, 1, 1], [], []>} : vector<16x512xbf16>, vector<512x512xbf16>, vector<16x512xf32> -> vector<16x512xf32>
    %c0_22 = arith.constant 0 : index
    %c0_23 = arith.constant 0 : index
    %29 = vector.load %arg9[%c0_22, %c0_23] : memref<1x512xf32, #tpu.memory_space<vmem>>, vector<1x512xf32>
    %30 = vector.broadcast %29 : vector<1x512xf32> to vector<16x512xf32>
    %31 = arith.addf %28, %30 : vector<16x512xf32>
    %c0_24 = arith.constant 0 : index
    %c0_25 = arith.constant 0 : index
    %32 = vector.load %arg11[%c0_24, %c0_25] : memref<16x512xf32, #tpu.memory_space<vmem>>, vector<16x512xf32>
    tpu.vector_store %arg11[%c0_24, %c0_25], %31 {strides = array<i32>} : memref<16x512xf32, #tpu.memory_space<vmem>>, vector<16x512xf32>,
    return
  }
  func.func @transform_0(%arg0: i32) -> (i32, i32) {
    %c0_i32 = arith.constant 0 : i32
    %c0_i32_0 = arith.constant 0 : i32
    return %arg0, %c0_i32 : i32, i32
  }
  func.func @transform_1(%arg0: i32) -> (i32, i32) {
    %c0_i32 = arith.constant 0 : i32
    %c0_i32_0 = arith.constant 0 : i32
    %c0_i32_1 = arith.constant 0 : i32
    return %c0_i32, %c0_i32_0 : i32, i32
  }
  func.func @transform_2(%arg0: i32) -> (i32, i32) {
    %c0_i32 = arith.constant 0 : i32
    %c0_i32_0 = arith.constant 0 : i32
    %c0_i32_1 = arith.constant 0 : i32
    return %c0_i32, %c0_i32_0 : i32, i32
  }
  func.func @transform_3(%arg0: i32) -> (i32, i32) {
    %c0_i32 = arith.constant 0 : i32
    %c0_i32_0 = arith.constant 0 : i32
    %c0_i32_1 = arith.constant 0 : i32
    return %c0_i32, %c0_i32_0 : i32, i32
  }
  func.func @transform_4(%arg0: i32) -> (i32, i32) {
    %c0_i32 = arith.constant 0 : i32
    %c0_i32_0 = arith.constant 0 : i32
    %c0_i32_1 = arith.constant 0 : i32
    return %c0_i32, %c0_i32_0 : i32, i32
  }
  func.func @transform_5(%arg0: i32) -> (i32, i32) {
    %c0_i32 = arith.constant 0 : i32
    %c0_i32_0 = arith.constant 0 : i32
    %c0_i32_1 = arith.constant 0 : i32
    return %c0_i32, %c0_i32_0 : i32, i32
  }
  func.func @transform_6(%arg0: i32) -> (i32, i32) {
    %c0_i32 = arith.constant 0 : i32
    %c0_i32_0 = arith.constant 0 : i32
    %c0_i32_1 = arith.constant 0 : i32
    return %c0_i32, %c0_i32_0 : i32, i32
  }
  func.func @transform_7(%arg0: i32) -> (i32, i32) {
    %c0_i32 = arith.constant 0 : i32
    %c0_i32_0 = arith.constant 0 : i32
    %c0_i32_1 = arith.constant 0 : i32
    return %c0_i32, %c0_i32_0 : i32, i32
  }
  func.func @transform_8(%arg0: i32) -> (i32, i32) {
    %c0_i32 = arith.constant 0 : i32
    %c0_i32_0 = arith.constant 0 : i32
    %c0_i32_1 = arith.constant 0 : i32
    return %c0_i32, %c0_i32_0 : i32, i32
  }
  func.func @transform_9(%arg0: i32) -> (i32, i32) {
    %c0_i32 = arith.constant 0 : i32
    %c0_i32_0 = arith.constant 0 : i32
    return %arg0, %c0_i32 : i32, i32
  }
  func.func @transform_10(%arg0: i32) -> (i32, i32) {
    %c0_i32 = arith.constant 0 : i32
    %c0_i32_0 = arith.constant 0 : i32
    return %arg0, %c0_i32 : i32, i32
  }
}

</mosaic_0001>

<llo_original>
// kernel: tpu_custom_call.1
$region0: #{tpu_custom_call.1}
  #allocation0 [shape = 'u32[]', space=smem, size = 0x4, offset = 0x4, fixed_abs, tag = 'smem constant byte address 0x4 - core index']
  #allocation1 [shape = 'u32[72,128]{1,0:T(1,128)}', space=vmem, size = 0x9000, scoped, tag = 'internal scratch']
  %s0 = inlined_call_operand.hbm [shape: f32[16,128], index: 0, kind: input, shape index: {}]
  %s1 = inlined_call_operand.hbm [shape: bf16[128,1024], index: 1, kind: input, shape index: {}]
  %s2 = inlined_call_operand.hbm [shape: f32[1,1024], index: 2, kind: input, shape index: {}]
  %s3 = inlined_call_operand.hbm [shape: bf16[512,512], index: 3, kind: input, shape index: {}]
  %s4 = inlined_call_operand.hbm [shape: f32[1,512], index: 4, kind: input, shape index: {}]
  %s5 = inlined_call_operand.hbm [shape: bf16[512,512], index: 5, kind: input, shape index: {}]
  %s6 = inlined_call_operand.vmem [shape: f32[1,512], index: 6, kind: input, shape index: {}]
  %s7 = inlined_call_operand.hbm [shape: bf16[512,512], index: 7, kind: input, shape index: {}]
  %s8 = inlined_call_operand.hbm [shape: f32[1,512], index: 8, kind: input, shape index: {}]
  %s9 = inlined_call_operand.hbm [shape: f32[16,512], index: 9, kind: output, shape index: {0}]
  %s10 = inlined_call_operand.hbm [shape: f32[16,512], index: 10, kind: output, shape index: {1}]
  %11 = xla_tuple %s9, %s10
  %s12 = sld [smem:[#allocation0]]
  $region86: #{tpu_custom_call.1} parent=0
    _
  %s14 = ssub.s32 1, %s12
  %s15 = scalar_select 0, %s14, %s12
  $region1: #{tpu_custom_call.1} parent=0
    #allocation2 [shape = 'u8[8192]{0}', space=vmem, size = 0x2000, scoped, tag = 'input window, operand 0, single buffered']
    #allocation3 [shape = 's32[1]{0}', space=sflag, size = 0x4, scoped, tag = 'scoped memory for tpu_custom_call.1']
    #allocation4 [shape = 's32[1]{0}', space=sflag, size = 0x4, scoped, tag = 'scoped memory for tpu_custom_call.1']
    #allocation5 [shape = 'u8[262144]{0}', space=vmem, size = 0x40000, scoped, tag = 'input window, operand 1, single buffered']
    #allocation6 [shape = 's32[1]{0}', space=sflag, size = 0x4, scoped, tag = 'scoped memory for tpu_custom_call.1']
    #allocation7 [shape = 'u8[4096]{0}', space=vmem, size = 0x1000, scoped, tag = 'input window, operand 2, single buffered']
    #allocation8 [shape = 'u8[524288]{0}', space=vmem, size = 0x80000, scoped, tag = 'input window, operand 3, single buffered']
    #allocation9 [shape = 's32[1]{0}', space=sflag, size = 0x4, scoped, tag = 'scoped memory for tpu_custom_call.1']
    #allocation10 [shape = 'u8[2048]{0}', space=vmem, size = 0x800, scoped, tag = 'input window, operand 4, single buffered']
    #allocation11 [shape = 'u8[524288]{0}', space=vmem, size = 0x80000, scoped, tag = 'input window, operand 5, single buffered']
    #allocation12 [shape = 's32[1]{0}', space=sflag, size = 0x4, scoped, tag = 'scoped memory for tpu_custom_call.1']
    #allocation13 [shape = 'u8[524288]{0}', space=vmem, size = 0x80000, scoped, tag = 'input window, operand 7, single buffered']
    #allocation14 [shape = 'u8[2048]{0}', space=vmem, size = 0x800, scoped, tag = 'input window, operand 8, single buffered']
    #allocation15 [shape = 's32[1]{0}', space=sflag, size = 0x4, scoped, tag = 'scoped memory for tpu_custom_call.1']
    #allocation16 [shape = 'u8[32768]{0}', space=vmem, size = 0x8000, scoped, tag = 'output window, operand 0, single buffered']
    #allocation17 [shape = 'u8[32768]{0}', space=vmem, size = 0x8000, scoped, tag = 'output window, operand 1, single buffered']
    #allocation18 [shape = 's32[1]{0}', space=sflag, size = 0x4, scoped, tag = 'scoped memory for tpu_custom_call.1']
    %16 = vsyncpa [#allocation3], 0
    %17 = vsyncpa [#allocation6], 0
    %18 = vsyncpa [#allocation9], 0
    %19 = vsyncpa [#allocation12], 0
    %20 = vsyncpa [#allocation15], 0
    %21 = vsyncpa [#allocation4], 0
    %22 = vsyncpa [#allocation18], 0
    // Predicated region
    $region2: #{tpu_custom_call.1} parent=1 // pred_check
      _
    $region3: #{tpu_custom_call.1} parent=1 // pred_check_branch
      %24 = sbr.rel (0) target = $region5
    $region4: #{tpu_custom_call.1} parent=1 // pred_region
      %26 = vsyncadd [#allocation3], 0
      %s27 = sshll.u32 %s0, 4
      %s28 = int_to_ptr.hbm [resolvable:$true] %s27
      %s29 = sshll.u32 [#allocation2], 4
      %s30 = int_to_ptr.vmem [resolvable:$true] %s29
      %35 = dma.hbm_to_vmem [thread:$0]  %s28, 256, %s30, [#allocation3], 128, 128, 8
    $region5: #{tpu_custom_call.1} parent=1 // pred_fallthru
      _
    // Predicated region
    $region6: #{tpu_custom_call.1} parent=1 // pred_check
      _
    $region7: #{tpu_custom_call.1} parent=1 // pred_check_branch
      %37 = sbr.rel (0) target = $region9
    $region8: #{tpu_custom_call.1} parent=1 // pred_region
      %39 = vsyncadd [#allocation6], 0
      %s40 = sshll.u32 %s1, 4
      %s41 = int_to_ptr.hbm [resolvable:$true] %s40
      %s42 = sshll.u32 [#allocation5], 4
      %s43 = int_to_ptr.vmem [resolvable:$true] %s42
      %48 = dma.hbm_to_vmem [thread:$0]  %s41, 8192, %s43, [#allocation6], 512, 512, 32
    $region9: #{tpu_custom_call.1} parent=1 // pred_fallthru
      _
    // Predicated region
    $region10: #{tpu_custom_call.1} parent=1 // pred_check
      _
    $region11: #{tpu_custom_call.1} parent=1 // pred_check_branch
      %50 = sbr.rel (0) target = $region13
    $region12: #{tpu_custom_call.1} parent=1 // pred_region
      %52 = vsyncadd [#allocation6], 0
      %s54 = sshll.u32 %s2, 4
      %s55 = int_to_ptr.hbm [resolvable:$true] %s54
      %s56 = sshll.u32 [#allocation7], 4
      %s57 = int_to_ptr.vmem [resolvable:$true] %s56
      %59 = dma.hbm_to_vmem [thread:$0]  %s55, 128, %s57, [#allocation6]
    $region13: #{tpu_custom_call.1} parent=1 // pred_fallthru
      _
    // Predicated region
    $region14: #{tpu_custom_call.1} parent=1 // pred_check
      _
    $region15: #{tpu_custom_call.1} parent=1 // pred_check_branch
      %61 = sbr.rel (0) target = $region17
    $region16: #{tpu_custom_call.1} parent=1 // pred_region
      %63 = vsyncadd [#allocation9], 0
      %s64 = sshll.u32 %s3, 4
      %s65 = int_to_ptr.hbm [resolvable:$true] %s64
      %s66 = sshll.u32 [#allocation8], 4
      %s67 = int_to_ptr.vmem [resolvable:$true] %s66
      %72 = dma.hbm_to_vmem [thread:$0]  %s65, 16384, %s67, [#allocation9], 256, 256, 16
    $region17: #{tpu_custom_call.1} parent=1 // pred_fallthru
      _
    // Predicated region
    $region18: #{tpu_custom_call.1} parent=1 // pred_check
      _
    $region19: #{tpu_custom_call.1} parent=1 // pred_check_branch
      %74 = sbr.rel (0) target = $region21
    $region20: #{tpu_custom_call.1} parent=1 // pred_region
      %76 = vsyncadd [#allocation9], 0
      %s78 = sshll.u32 %s4, 4
      %s79 = int_to_ptr.hbm [resolvable:$true] %s78
      %s80 = sshll.u32 [#allocation10], 4
      %s81 = int_to_ptr.vmem [resolvable:$true] %s80
      %83 = dma.hbm_to_vmem [thread:$0]  %s79, 64, %s81, [#allocation9]
    $region21: #{tpu_custom_call.1} parent=1 // pred_fallthru
      _
    // Predicated region
    $region22: #{tpu_custom_call.1} parent=1 // pred_check
      _
    $region23: #{tpu_custom_call.1} parent=1 // pred_check_branch
      %85 = sbr.rel (0) target = $region25
    $region24: #{tpu_custom_call.1} parent=1 // pred_region
      %87 = vsyncadd [#allocation12], 0
      %s88 = sshll.u32 %s5, 4
      %s89 = int_to_ptr.hbm [resolvable:$true] %s88
      %s90 = sshll.u32 [#allocation11], 4
      %s91 = int_to_ptr.vmem [resolvable:$true] %s90
      %96 = dma.hbm_to_vmem [thread:$0]  %s89, 16384, %s91, [#allocation12], 256, 256, 16
    $region25: #{tpu_custom_call.1} parent=1 // pred_fallthru
      _
    // Predicated region
    $region26: #{tpu_custom_call.1} parent=1 // pred_check
      _
    $region27: #{tpu_custom_call.1} parent=1 // pred_check_branch
      %98 = sbr.rel (0) target = $region29
    $region28: #{tpu_custom_call.1} parent=1 // pred_region
      _
    $region29: #{tpu_custom_call.1} parent=1 // pred_fallthru
      _
    // Predicated region
    $region30: #{tpu_custom_call.1} parent=1 // pred_check
      _
    $region31: #{tpu_custom_call.1} parent=1 // pred_check_branch
      %100 = sbr.rel (0) target = $region33
    $region32: #{tpu_custom_call.1} parent=1 // pred_region
      %102 = vsyncadd [#allocation12], 0
      %s103 = sshll.u32 %s7, 4
      %s104 = int_to_ptr.hbm [resolvable:$true] %s103
      %s105 = sshll.u32 [#allocation13], 4
      %s106 = int_to_ptr.vmem [resolvable:$true] %s105
      %111 = dma.hbm_to_vmem [thread:$0]  %s104, 16384, %s106, [#allocation12], 256, 256, 16
    $region33: #{tpu_custom_call.1} parent=1 // pred_fallthru
      _
    // Predicated region
    $region34: #{tpu_custom_call.1} parent=1 // pred_check
      _
    $region35: #{tpu_custom_call.1} parent=1 // pred_check_branch
      %113 = sbr.rel (0) target = $region37
    $region36: #{tpu_custom_call.1} parent=1 // pred_region
      %115 = vsyncadd [#allocation15], 0
      %s117 = sshll.u32 %s8, 4
      %s118 = int_to_ptr.hbm [resolvable:$true] %s117
      %s119 = sshll.u32 [#allocation14], 4
      %s120 = int_to_ptr.vmem [resolvable:$true] %s119
      %122 = dma.hbm_to_vmem [thread:$0]  %s118, 64, %s120, [#allocation15]
    $region37: #{tpu_custom_call.1} parent=1 // pred_fallthru
      _
    // Predicated region
    $region38: #{tpu_custom_call.1} parent=1 // pred_check
      _
    $region39: #{tpu_custom_call.1} parent=1 // pred_check_branch
      %124 = sbr.rel (0) target = $region41
    $region40: #{tpu_custom_call.1} parent=1 // pred_region
      %126 = dma.done [#allocation3], 256
    $region41: #{tpu_custom_call.1} parent=1 // pred_fallthru
      _
    // Predicated region
    $region42: #{tpu_custom_call.1} parent=1 // pred_check
      _
    $region43: #{tpu_custom_call.1} parent=1 // pred_check_branch
      %128 = sbr.rel (0) target = $region45
    $region44: #{tpu_custom_call.1} parent=1 // pred_region
      %130 = dma.done [#allocation6], 8192
    $region45: #{tpu_custom_call.1} parent=1 // pred_fallthru
      _
    // Predicated region
    $region46: #{tpu_custom_call.1} parent=1 // pred_check
      _
    $region47: #{tpu_custom_call.1} parent=1 // pred_check_branch
      %132 = sbr.rel (0) target = $region49
    $region48: #{tpu_custom_call.1} parent=1 // pred_region
      %134 = dma.done [#allocation6], 128
    $region49: #{tpu_custom_call.1} parent=1 // pred_fallthru
      _
    // Predicated region
    $region50: #{tpu_custom_call.1} parent=1 // pred_check
      _
    $region51: #{tpu_custom_call.1} parent=1 // pred_check_branch
      %136 = sbr.rel (0) target = $region53
    $region52: #{tpu_custom_call.1} parent=1 // pred_region
      %138 = dma.done [#allocation9], 16384
    $region53: #{tpu_custom_call.1} parent=1 // pred_fallthru
      _
    // Predicated region
    $region54: #{tpu_custom_call.1} parent=1 // pred_check
      _
    $region55: #{tpu_custom_call.1} parent=1 // pred_check_branch
      %140 = sbr.rel (0) target = $region57
    $region56: #{tpu_custom_call.1} parent=1 // pred_region
      %142 = dma.done [#allocation9], 64
    $region57: #{tpu_custom_call.1} parent=1 // pred_fallthru
      _
    // Predicated region
    $region58: #{tpu_custom_call.1} parent=1 // pred_check
      _
    $region59: #{tpu_custom_call.1} parent=1 // pred_check_branch
      %144 = sbr.rel (0) target = $region61
    $region60: #{tpu_custom_call.1} parent=1 // pred_region
      %146 = dma.done [#allocation12], 16384
    $region61: #{tpu_custom_call.1} parent=1 // pred_fallthru
      _
    // Predicated region
    $region62: #{tpu_custom_call.1} parent=1 // pred_check
      _
    $region63: #{tpu_custom_call.1} parent=1 // pred_check_branch
      %148 = sbr.rel (0) target = $region65
    $region64: #{tpu_custom_call.1} parent=1 // pred_region
      %150 = dma.done [#allocation12], 16384
    $region65: #{tpu_custom_call.1} parent=1 // pred_fallthru
      _
    // Predicated region
    $region66: #{tpu_custom_call.1} parent=1 // pred_check
      _
    $region67: #{tpu_custom_call.1} parent=1 // pred_check_branch
      %152 = sbr.rel (0) target = $region69
    $region68: #{tpu_custom_call.1} parent=1 // pred_region
      %154 = dma.done [#allocation15], 64
    $region69: #{tpu_custom_call.1} parent=1 // pred_fallthru
      _
    %v155 = vld [vmem:[#allocation2] sm:$0xff]
    %v156 = vld [vmem:[#allocation2 + $0x8] sm:$0xff]
    %v157 = vpack.c.bf16 %v156, %v155
    %v158 = vld [vmem:[#allocation5] sm:$0xff]
    %v159 = vld [vmem:[#allocation5 + $0x8] sm:$0xff]
    %v160 = vld [vmem:[#allocation5 + $0x10] sm:$0xff]
    %v161 = vld [vmem:[#allocation5 + $0x18] sm:$0xff]
    %v162 = vld [vmem:[#allocation5 + $0x20] sm:$0xff]
    %v163 = vld [vmem:[#allocation5 + $0x28] sm:$0xff]
    %v164 = vld [vmem:[#allocation5 + $0x30] sm:$0xff]
    %v165 = vld [vmem:[#allocation5 + $0x38] sm:$0xff]
    %v166 = vld [vmem:[#allocation5 + $0x40] sm:$0xff]
    %v167 = vld [vmem:[#allocation5 + $0x48] sm:$0xff]
    %v168 = vld [vmem:[#allocation5 + $0x50] sm:$0xff]
    %v169 = vld [vmem:[#allocation5 + $0x58] sm:$0xff]
    %v170 = vld [vmem:[#allocation5 + $0x60] sm:$0xff]
    %v171 = vld [vmem:[#allocation5 + $0x68] sm:$0xff]
    %v172 = vld [vmem:[#allocation5 + $0x70] sm:$0xff]
    %v173 = vld [vmem:[#allocation5 + $0x78] sm:$0xff]
    %v174 = vld [vmem:[#allocation5 + $0x80] sm:$0xff]
    %v175 = vld [vmem:[#allocation5 + $0x88] sm:$0xff]
    %v176 = vld [vmem:[#allocation5 + $0x90] sm:$0xff]
    %v177 = vld [vmem:[#allocation5 + $0x98] sm:$0xff]
    %v178 = vld [vmem:[#allocation5 + $0xa0] sm:$0xff]
    %v179 = vld [vmem:[#allocation5 + $0xa8] sm:$0xff]
    %v180 = vld [vmem:[#allocation5 + $0xb0] sm:$0xff]
    %v181 = vld [vmem:[#allocation5 + $0xb8] sm:$0xff]
    %v182 = vld [vmem:[#allocation5 + $0xc0] sm:$0xff]
    %v183 = vld [vmem:[#allocation5 + $0xc8] sm:$0xff]
    %v184 = vld [vmem:[#allocation5 + $0xd0] sm:$0xff]
    %v185 = vld [vmem:[#allocation5 + $0xd8] sm:$0xff]
    %v186 = vld [vmem:[#allocation5 + $0xe0] sm:$0xff]
    %v187 = vld [vmem:[#allocation5 + $0xe8] sm:$0xff]
    %v188 = vld [vmem:[#allocation5 + $0xf0] sm:$0xff]
    %v189 = vld [vmem:[#allocation5 + $0xf8] sm:$0xff]
    %v190 = vld [vmem:[#allocation5 + $0x100] sm:$0xff]
    %v191 = vld [vmem:[#allocation5 + $0x108] sm:$0xff]
    %v192 = vld [vmem:[#allocation5 + $0x110] sm:$0xff]
    %v193 = vld [vmem:[#allocation5 + $0x118] sm:$0xff]
    %v194 = vld [vmem:[#allocation5 + $0x120] sm:$0xff]
    %v195 = vld [vmem:[#allocation5 + $0x128] sm:$0xff]
    %v196 = vld [vmem:[#allocation5 + $0x130] sm:$0xff]
    %v197 = vld [vmem:[#allocation5 + $0x138] sm:$0xff]
    %v198 = vld [vmem:[#allocation5 + $0x140] sm:$0xff]
    %v199 = vld [vmem:[#allocation5 + $0x148] sm:$0xff]
    %v200 = vld [vmem:[#allocation5 + $0x150] sm:$0xff]
    %v201 = vld [vmem:[#allocation5 + $0x158] sm:$0xff]
    %v202 = vld [vmem:[#allocation5 + $0x160] sm:$0xff]
    %v203 = vld [vmem:[#allocation5 + $0x168] sm:$0xff]
    %v204 = vld [vmem:[#allocation5 + $0x170] sm:$0xff]
    %v205 = vld [vmem:[#allocation5 + $0x178] sm:$0xff]
    %v206 = vld [vmem:[#allocation5 + $0x180] sm:$0xff]
    %v207 = vld [vmem:[#allocation5 + $0x188] sm:$0xff]
    %v208 = vld [vmem:[#allocation5 + $0x190] sm:$0xff]
    %v209 = vld [vmem:[#allocation5 + $0x198] sm:$0xff]
    %v210 = vld [vmem:[#allocation5 + $0x1a0] sm:$0xff]
    %v211 = vld [vmem:[#allocation5 + $0x1a8] sm:$0xff]
    %v212 = vld [vmem:[#allocation5 + $0x1b0] sm:$0xff]
    %v213 = vld [vmem:[#allocation5 + $0x1b8] sm:$0xff]
    %v214 = vld [vmem:[#allocation5 + $0x1c0] sm:$0xff]
    %v215 = vld [vmem:[#allocation5 + $0x1c8] sm:$0xff]
    %v216 = vld [vmem:[#allocation5 + $0x1d0] sm:$0xff]
    %v217 = vld [vmem:[#allocation5 + $0x1d8] sm:$0xff]
    %v218 = vld [vmem:[#allocation5 + $0x1e0] sm:$0xff]
    %v219 = vld [vmem:[#allocation5 + $0x1e8] sm:$0xff]
    %v220 = vld [vmem:[#allocation5 + $0x1f0] sm:$0xff]
    %v221 = vld [vmem:[#allocation5 + $0x1f8] sm:$0xff]
    %v222 = vld [vmem:[#allocation7] sm:$0xff]
    %v224 = vperm.slane %v222, 0
    %v225 = vperm.slane %v222, 1
    %v226 = vperm.slane %v222, 2
    %v227 = vperm.slane %v222, 3
    %v228 = vperm.slane %v222, 4
    %v229 = vperm.slane %v222, 5
    %v230 = vperm.slane %v222, 6
    %v231 = vperm.slane %v222, 7
    %v304 = vunpack.c.l.b16 %v158
    %v305 = vunpack.c.h.b16 %v158
    %v306 = vunpack.c.l.b16 %v159
    %v307 = vunpack.c.h.b16 %v159
    %v308 = vunpack.c.l.b16 %v160
    %v309 = vunpack.c.h.b16 %v160
    %v310 = vunpack.c.l.b16 %v161
    %v311 = vunpack.c.h.b16 %v161
    %v312 = vunpack.c.l.b16 %v162
    %v313 = vunpack.c.h.b16 %v162
    %v314 = vunpack.c.l.b16 %v163
    %v315 = vunpack.c.h.b16 %v163
    %v316 = vunpack.c.l.b16 %v164
    %v317 = vunpack.c.h.b16 %v164
    %v318 = vunpack.c.l.b16 %v165
    %v319 = vunpack.c.h.b16 %v165
    %v320 = vunpack.c.l.b16 %v166
    %v321 = vunpack.c.h.b16 %v166
    %v322 = vunpack.c.l.b16 %v167
    %v323 = vunpack.c.h.b16 %v167
    %v324 = vunpack.c.l.b16 %v168
    %v325 = vunpack.c.h.b16 %v168
    %v326 = vunpack.c.l.b16 %v169
    %v327 = vunpack.c.h.b16 %v169
    %v328 = vunpack.c.l.b16 %v170
    %v329 = vunpack.c.h.b16 %v170
    %v330 = vunpack.c.l.b16 %v171
    %v331 = vunpack.c.h.b16 %v171
    %v332 = vunpack.c.l.b16 %v172
    %v333 = vunpack.c.h.b16 %v172
    %v334 = vunpack.c.l.b16 %v173
    %v335 = vunpack.c.h.b16 %v173
    %v336 = vunpack.c.l.b16 %v174
    %v337 = vunpack.c.h.b16 %v174
    %v338 = vunpack.c.l.b16 %v175
    %v339 = vunpack.c.h.b16 %v175
    %v340 = vunpack.c.l.b16 %v176
    %v341 = vunpack.c.h.b16 %v176
    %v342 = vunpack.c.l.b16 %v177
    %v343 = vunpack.c.h.b16 %v177
    %v344 = vunpack.c.l.b16 %v178
    %v345 = vunpack.c.h.b16 %v178
    %v346 = vunpack.c.l.b16 %v179
    %v347 = vunpack.c.h.b16 %v179
    %v348 = vunpack.c.l.b16 %v180
    %v349 = vunpack.c.h.b16 %v180
    %v350 = vunpack.c.l.b16 %v181
    %v351 = vunpack.c.h.b16 %v181
    %v352 = vunpack.c.l.b16 %v182
    %v353 = vunpack.c.h.b16 %v182
    %v354 = vunpack.c.l.b16 %v183
    %v355 = vunpack.c.h.b16 %v183
    %v356 = vunpack.c.l.b16 %v184
    %v357 = vunpack.c.h.b16 %v184
    %v358 = vunpack.c.l.b16 %v185
    %v359 = vunpack.c.h.b16 %v185
    %v360 = vunpack.c.l.b16 %v186
    %v361 = vunpack.c.h.b16 %v186
    %v362 = vunpack.c.l.b16 %v187
    %v363 = vunpack.c.h.b16 %v187
    %v364 = vunpack.c.l.b16 %v188
    %v365 = vunpack.c.h.b16 %v188
    %v366 = vunpack.c.l.b16 %v189
    %v367 = vunpack.c.h.b16 %v189
    %v368 = vunpack.c.l.b16 %v190
    %v369 = vunpack.c.h.b16 %v190
    %v370 = vunpack.c.l.b16 %v191
    %v371 = vunpack.c.h.b16 %v191
    %v372 = vunpack.c.l.b16 %v192
    %v373 = vunpack.c.h.b16 %v192
    %v374 = vunpack.c.l.b16 %v193
    %v375 = vunpack.c.h.b16 %v193
    %v376 = vunpack.c.l.b16 %v194
    %v377 = vunpack.c.h.b16 %v194
    %v378 = vunpack.c.l.b16 %v195
    %v379 = vunpack.c.h.b16 %v195
    %v380 = vunpack.c.l.b16 %v196
    %v381 = vunpack.c.h.b16 %v196
    %v382 = vunpack.c.l.b16 %v197
    %v383 = vunpack.c.h.b16 %v197
    %v384 = vunpack.c.l.b16 %v198
    %v385 = vunpack.c.h.b16 %v198
    %v386 = vunpack.c.l.b16 %v199
    %v387 = vunpack.c.h.b16 %v199
    %v388 = vunpack.c.l.b16 %v200
    %v389 = vunpack.c.h.b16 %v200
    %v390 = vunpack.c.l.b16 %v201
    %v391 = vunpack.c.h.b16 %v201
    %v392 = vunpack.c.l.b16 %v202
    %v393 = vunpack.c.h.b16 %v202
    %v394 = vunpack.c.l.b16 %v203
    %v395 = vunpack.c.h.b16 %v203
    %v396 = vunpack.c.l.b16 %v204
    %v397 = vunpack.c.h.b16 %v204
    %v398 = vunpack.c.l.b16 %v205
    %v399 = vunpack.c.h.b16 %v205
    %v400 = vunpack.c.l.b16 %v206
    %v401 = vunpack.c.h.b16 %v206
    %v402 = vunpack.c.l.b16 %v207
    %v403 = vunpack.c.h.b16 %v207
    %v404 = vunpack.c.l.b16 %v208
    %v405 = vunpack.c.h.b16 %v208
    %v406 = vunpack.c.l.b16 %v209
    %v407 = vunpack.c.h.b16 %v209
    %v408 = vunpack.c.l.b16 %v210
    %v409 = vunpack.c.h.b16 %v210
    %v410 = vunpack.c.l.b16 %v211
    %v411 = vunpack.c.h.b16 %v211
    %v412 = vunpack.c.l.b16 %v212
    %v413 = vunpack.c.h.b16 %v212
    %v414 = vunpack.c.l.b16 %v213
    %v415 = vunpack.c.h.b16 %v213
    %v416 = vunpack.c.l.b16 %v214
    %v417 = vunpack.c.h.b16 %v214
    %v418 = vunpack.c.l.b16 %v215
    %v419 = vunpack.c.h.b16 %v215
    %v420 = vunpack.c.l.b16 %v216
    %v421 = vunpack.c.h.b16 %v216
    %v422 = vunpack.c.l.b16 %v217
    %v423 = vunpack.c.h.b16 %v217
    %v424 = vunpack.c.l.b16 %v218
    %v425 = vunpack.c.h.b16 %v218
    %v426 = vunpack.c.l.b16 %v219
    %v427 = vunpack.c.h.b16 %v219
    %v428 = vunpack.c.l.b16 %v220
    %v429 = vunpack.c.h.b16 %v220
    %v430 = vunpack.c.l.b16 %v221
    %v431 = vunpack.c.h.b16 %v221
    %v432 = vpack.c.b16 %v312, %v304
    %v433 = vpack.c.b16 %v313, %v305
    %v434 = vpack.c.b16 %v314, %v306
    %v435 = vpack.c.b16 %v315, %v307
    %v436 = vpack.c.b16 %v316, %v308
    %v437 = vpack.c.b16 %v317, %v309
    %v438 = vpack.c.b16 %v318, %v310
    %v439 = vpack.c.b16 %v319, %v311
    %v440 = vpack.c.b16 %v328, %v320
    %v441 = vpack.c.b16 %v329, %v321
    %v442 = vpack.c.b16 %v330, %v322
    %v443 = vpack.c.b16 %v331, %v323
    %v444 = vpack.c.b16 %v332, %v324
    %v445 = vpack.c.b16 %v333, %v325
    %v446 = vpack.c.b16 %v334, %v326
    %v447 = vpack.c.b16 %v335, %v327
    %v448 = vpack.c.b16 %v344, %v336
    %v449 = vpack.c.b16 %v345, %v337
    %v450 = vpack.c.b16 %v346, %v338
    %v451 = vpack.c.b16 %v347, %v339
    %v452 = vpack.c.b16 %v348, %v340
    %v453 = vpack.c.b16 %v349, %v341
    %v454 = vpack.c.b16 %v350, %v342
    %v455 = vpack.c.b16 %v351, %v343
    %v456 = vpack.c.b16 %v360, %v352
    %v457 = vpack.c.b16 %v361, %v353
    %v458 = vpack.c.b16 %v362, %v354
    %v459 = vpack.c.b16 %v363, %v355
    %v460 = vpack.c.b16 %v364, %v356
    %v461 = vpack.c.b16 %v365, %v357
    %v462 = vpack.c.b16 %v366, %v358
    %v463 = vpack.c.b16 %v367, %v359
    %v464 = vpack.c.b16 %v376, %v368
    %v465 = vpack.c.b16 %v377, %v369
    %v466 = vpack.c.b16 %v378, %v370
    %v467 = vpack.c.b16 %v379, %v371
    %v468 = vpack.c.b16 %v380, %v372
    %v469 = vpack.c.b16 %v381, %v373
    %v470 = vpack.c.b16 %v382, %v374
    %v471 = vpack.c.b16 %v383, %v375
    %v472 = vpack.c.b16 %v392, %v384
    %v473 = vpack.c.b16 %v393, %v385
    %v474 = vpack.c.b16 %v394, %v386
    %v475 = vpack.c.b16 %v395, %v387
    %v476 = vpack.c.b16 %v396, %v388
    %v477 = vpack.c.b16 %v397, %v389
    %v478 = vpack.c.b16 %v398, %v390
    %v479 = vpack.c.b16 %v399, %v391
    %v480 = vpack.c.b16 %v408, %v400
    %v481 = vpack.c.b16 %v409, %v401
    %v482 = vpack.c.b16 %v410, %v402
    %v483 = vpack.c.b16 %v411, %v403
    %v484 = vpack.c.b16 %v412, %v404
    %v485 = vpack.c.b16 %v413, %v405
    %v486 = vpack.c.b16 %v414, %v406
    %v487 = vpack.c.b16 %v415, %v407
    %v488 = vpack.c.b16 %v424, %v416
    %v489 = vpack.c.b16 %v425, %v417
    %v490 = vpack.c.b16 %v426, %v418
    %v491 = vpack.c.b16 %v427, %v419
    %v492 = vpack.c.b16 %v428, %v420
    %v493 = vpack.c.b16 %v429, %v421
    %v494 = vpack.c.b16 %v430, %v422
    %v495 = vpack.c.b16 %v431, %v423
    %560 = vmatpush.bf16.msra.mxu0 %v488
    %561 = vmatpush.bf16.msra.mxu0 %v480
    %562 = vmatpush.bf16.msra.mxu0 %v472
    %563 = vmatpush.bf16.msra.mxu0 %v464
    %564 = vmatpush.bf16.msra.mxu0 %v456
    %565 = vmatpush.bf16.msra.mxu0 %v448
    %566 = vmatpush.bf16.msra.mxu0 %v440
    %567 = vmatpush.bf16.msra.mxu0 %v432
    %568 = vmatmul.bf16.gmra.mxu0 %v157
    %v569 = vpop.f32.mrf.mxu0
    %v570 = vadd.f32 %v224, %v569
    %v571 = vpop.f32.mrf.mxu0
    %v572 = vadd.f32 %v224, %v571
    %573 = vdwg.mxu0
    %574 = vmatpush.bf16.msra.mxu0 %v489
    %575 = vmatpush.bf16.msra.mxu0 %v481
    %576 = vmatpush.bf16.msra.mxu0 %v473
    %577 = vmatpush.bf16.msra.mxu0 %v465
    %578 = vmatpush.bf16.msra.mxu0 %v457
    %579 = vmatpush.bf16.msra.mxu0 %v449
    %580 = vmatpush.bf16.msra.mxu0 %v441
    %581 = vmatpush.bf16.msra.mxu0 %v433
    %582 = vmatmul.bf16.gmra.mxu0 %v157
    %v583 = vpop.f32.mrf.mxu0
    %v584 = vadd.f32 %v225, %v583
    %v585 = vpop.f32.mrf.mxu0
    %v586 = vadd.f32 %v225, %v585
    %587 = vdwg.mxu0
    %588 = vmatpush.bf16.msra.mxu0 %v490
    %589 = vmatpush.bf16.msra.mxu0 %v482
    %590 = vmatpush.bf16.msra.mxu0 %v474
    %591 = vmatpush.bf16.msra.mxu0 %v466
    %592 = vmatpush.bf16.msra.mxu0 %v458
    %593 = vmatpush.bf16.msra.mxu0 %v450
    %594 = vmatpush.bf16.msra.mxu0 %v442
    %595 = vmatpush.bf16.msra.mxu0 %v434
    %596 = vmatmul.bf16.gmra.mxu0 %v157
    %v597 = vpop.f32.mrf.mxu0
    %v598 = vadd.f32 %v226, %v597
    %v599 = vpop.f32.mrf.mxu0
    %v600 = vadd.f32 %v226, %v599
    %601 = vdwg.mxu0
    %602 = vmatpush.bf16.msra.mxu0 %v491
    %603 = vmatpush.bf16.msra.mxu0 %v483
    %604 = vmatpush.bf16.msra.mxu0 %v475
    %605 = vmatpush.bf16.msra.mxu0 %v467
    %606 = vmatpush.bf16.msra.mxu0 %v459
    %607 = vmatpush.bf16.msra.mxu0 %v451
    %608 = vmatpush.bf16.msra.mxu0 %v443
    %609 = vmatpush.bf16.msra.mxu0 %v435
    %610 = vmatmul.bf16.gmra.mxu0 %v157
    %v611 = vpop.f32.mrf.mxu0
    %v612 = vadd.f32 %v227, %v611
    %v613 = vpop.f32.mrf.mxu0
    %v614 = vadd.f32 %v227, %v613
    %615 = vdwg.mxu0
    %616 = vmatpush.bf16.msra.mxu0 %v492
    %617 = vmatpush.bf16.msra.mxu0 %v484
    %618 = vmatpush.bf16.msra.mxu0 %v476
    %619 = vmatpush.bf16.msra.mxu0 %v468
    %620 = vmatpush.bf16.msra.mxu0 %v460
    %621 = vmatpush.bf16.msra.mxu0 %v452
    %622 = vmatpush.bf16.msra.mxu0 %v444
    %623 = vmatpush.bf16.msra.mxu0 %v436
    %624 = vmatmul.bf16.gmra.mxu0 %v157
    %v625 = vpop.f32.mrf.mxu0
    %v626 = vadd.f32 %v228, %v625
    %v627 = vpop.f32.mrf.mxu0
    %v628 = vadd.f32 %v228, %v627
    %629 = vdwg.mxu0
    %630 = vmatpush.bf16.msra.mxu0 %v493
    %631 = vmatpush.bf16.msra.mxu0 %v485
    %632 = vmatpush.bf16.msra.mxu0 %v477
    %633 = vmatpush.bf16.msra.mxu0 %v469
    %634 = vmatpush.bf16.msra.mxu0 %v461
    %635 = vmatpush.bf16.msra.mxu0 %v453
    %636 = vmatpush.bf16.msra.mxu0 %v445
    %637 = vmatpush.bf16.msra.mxu0 %v437
    %638 = vmatmul.bf16.gmra.mxu0 %v157
    %v639 = vpop.f32.mrf.mxu0
    %v640 = vadd.f32 %v229, %v639
    %v641 = vpop.f32.mrf.mxu0
    %v642 = vadd.f32 %v229, %v641
    %643 = vdwg.mxu0
    %644 = vmatpush.bf16.msra.mxu0 %v494
    %645 = vmatpush.bf16.msra.mxu0 %v486
    %646 = vmatpush.bf16.msra.mxu0 %v478
    %647 = vmatpush.bf16.msra.mxu0 %v470
    %648 = vmatpush.bf16.msra.mxu0 %v462
    %649 = vmatpush.bf16.msra.mxu0 %v454
    %650 = vmatpush.bf16.msra.mxu0 %v446
    %651 = vmatpush.bf16.msra.mxu0 %v438
    %652 = vmatmul.bf16.gmra.mxu0 %v157
    %v653 = vpop.f32.mrf.mxu0
    %v654 = vadd.f32 %v230, %v653
    %v655 = vpop.f32.mrf.mxu0
    %v656 = vadd.f32 %v230, %v655
    %657 = vdwg.mxu0
    %658 = vmatpush.bf16.msra.mxu0 %v495
    %659 = vmatpush.bf16.msra.mxu0 %v487
    %660 = vmatpush.bf16.msra.mxu0 %v479
    %661 = vmatpush.bf16.msra.mxu0 %v471
    %662 = vmatpush.bf16.msra.mxu0 %v463
    %663 = vmatpush.bf16.msra.mxu0 %v455
    %664 = vmatpush.bf16.msra.mxu0 %v447
    %665 = vmatpush.bf16.msra.mxu0 %v439
    %666 = vmatmul.bf16.gmra.mxu0 %v157
    %v667 = vpop.f32.mrf.mxu0
    %v668 = vadd.f32 %v231, %v667
    %v669 = vpop.f32.mrf.mxu0
    %v670 = vadd.f32 %v231, %v669
    %671 = vdwg.mxu0
    %v672 = vmax.f32 %v570, 0.0
    %v673 = vmax.f32 %v584, 0.0
    %v674 = vmax.f32 %v598, 0.0
    %v675 = vmax.f32 %v612, 0.0
    %v676 = vmax.f32 %v626, 0.0
    %v677 = vmax.f32 %v640, 0.0
    %v678 = vmax.f32 %v654, 0.0
    %v679 = vmax.f32 %v668, 0.0
    %v680 = vmax.f32 %v572, 0.0
    %v681 = vmax.f32 %v586, 0.0
    %v682 = vmax.f32 %v600, 0.0
    %v683 = vmax.f32 %v614, 0.0
    %v684 = vmax.f32 %v628, 0.0
    %v685 = vmax.f32 %v642, 0.0
    %v686 = vmax.f32 %v656, 0.0
    %v687 = vmax.f32 %v670, 0.0
    %v688 = vpack.c.bf16 %v680, %v672
    %v689 = vpack.c.bf16 %v681, %v673
    %v690 = vpack.c.bf16 %v682, %v674
    %v691 = vpack.c.bf16 %v683, %v675
    %v692 = vld [vmem:[#allocation8] sm:$0xff]
    %v693 = vld [vmem:[#allocation8 + $0x8] sm:$0xff]
    %v694 = vld [vmem:[#allocation8 + $0x10] sm:$0xff]
    %v695 = vld [vmem:[#allocation8 + $0x18] sm:$0xff]
    %v696 = vld [vmem:[#allocation8 + $0x20] sm:$0xff]
    %v697 = vld [vmem:[#allocation8 + $0x28] sm:$0xff]
    %v698 = vld [vmem:[#allocation8 + $0x30] sm:$0xff]
    %v699 = vld [vmem:[#allocation8 + $0x38] sm:$0xff]
    %v700 = vld [vmem:[#allocation8 + $0x40] sm:$0xff]
    %v701 = vld [vmem:[#allocation8 + $0x48] sm:$0xff]
    %v702 = vld [vmem:[#allocation8 + $0x50] sm:$0xff]
    %v703 = vld [vmem:[#allocation8 + $0x58] sm:$0xff]
    %v704 = vld [vmem:[#allocation8 + $0x60] sm:$0xff]
    %v705 = vld [vmem:[#allocation8 + $0x68] sm:$0xff]
    %v706 = vld [vmem:[#allocation8 + $0x70] sm:$0xff]
    %v707 = vld [vmem:[#allocation8 + $0x78] sm:$0xff]
    %v708 = vld [vmem:[#allocation8 + $0x80] sm:$0xff]
    %v709 = vld [vmem:[#allocation8 + $0x88] sm:$0xff]
    %v710 = vld [vmem:[#allocation8 + $0x90] sm:$0xff]
    %v711 = vld [vmem:[#allocation8 + $0x98] sm:$0xff]
    %v712 = vld [vmem:[#allocation8 + $0xa0] sm:$0xff]
    %v713 = vld [vmem:[#allocation8 + $0xa8] sm:$0xff]
    %v714 = vld [vmem:[#allocation8 + $0xb0] sm:$0xff]
    %v715 = vld [vmem:[#allocation8 + $0xb8] sm:$0xff]
    %v716 = vld [vmem:[#allocation8 + $0xc0] sm:$0xff]
    %v717 = vld [vmem:[#allocation8 + $0xc8] sm:$0xff]
    %v718 = vld [vmem:[#allocation8 + $0xd0] sm:$0xff]
    %v719 = vld [vmem:[#allocation8 + $0xd8] sm:$0xff]
    %v720 = vld [vmem:[#allocation8 + $0xe0] sm:$0xff]
    %v721 = vld [vmem:[#allocation8 + $0xe8] sm:$0xff]
    %v722 = vld [vmem:[#allocation8 + $0xf0] sm:$0xff]
    %v723 = vld [vmem:[#allocation8 + $0xf8] sm:$0xff]
    %v724 = vld [vmem:[#allocation8 + $0x100] sm:$0xff]
    %v725 = vld [vmem:[#allocation8 + $0x108] sm:$0xff]
    %v726 = vld [vmem:[#allocation8 + $0x110] sm:$0xff]
    %v727 = vld [vmem:[#allocation8 + $0x118] sm:$0xff]
    %v728 = vld [vmem:[#allocation8 + $0x120] sm:$0xff]
    %v729 = vld [vmem:[#allocation8 + $0x128] sm:$0xff]
    %v730 = vld [vmem:[#allocation8 + $0x130] sm:$0xff]
    %v731 = vld [vmem:[#allocation8 + $0x138] sm:$0xff]
    %v732 = vld [vmem:[#allocation8 + $0x140] sm:$0xff]
    %v733 = vld [vmem:[#allocation8 + $0x148] sm:$0xff]
    %v734 = vld [vmem:[#allocation8 + $0x150] sm:$0xff]
    %v735 = vld [vmem:[#allocation8 + $0x158] sm:$0xff]
    %v736 = vld [vmem:[#allocation8 + $0x160] sm:$0xff]
    %v737 = vld [vmem:[#allocation8 + $0x168] sm:$0xff]
    %v738 = vld [vmem:[#allocation8 + $0x170] sm:$0xff]
    %v739 = vld [vmem:[#allocation8 + $0x178] sm:$0xff]
    %v740 = vld [vmem:[#allocation8 + $0x180] sm:$0xff]
    %v741 = vld [vmem:[#allocation8 + $0x188] sm:$0xff]
    %v742 = vld [vmem:[#allocation8 + $0x190] sm:$0xff]
    %v743 = vld [vmem:[#allocation8 + $0x198] sm:$0xff]
    %v744 = vld [vmem:[#allocation8 + $0x1a0] sm:$0xff]
    %v745 = vld [vmem:[#allocation8 + $0x1a8] sm:$0xff]
    %v746 = vld [vmem:[#allocation8 + $0x1b0] sm:$0xff]
    %v747 = vld [vmem:[#allocation8 + $0x1b8] sm:$0xff]
    %v748 = vld [vmem:[#allocation8 + $0x1c0] sm:$0xff]
    %v749 = vld [vmem:[#allocation8 + $0x1c8] sm:$0xff]
    %v750 = vld [vmem:[#allocation8 + $0x1d0] sm:$0xff]
    %v751 = vld [vmem:[#allocation8 + $0x1d8] sm:$0xff]
    %v752 = vld [vmem:[#allocation8 + $0x1e0] sm:$0xff]
    %v753 = vld [vmem:[#allocation8 + $0x1e8] sm:$0xff]
    %v754 = vld [vmem:[#allocation8 + $0x1f0] sm:$0xff]
    %v755 = vld [vmem:[#allocation8 + $0x1f8] sm:$0xff]
    %v756 = vld [vmem:[#allocation8 + $0x200] sm:$0xff]
    %v757 = vld [vmem:[#allocation8 + $0x208] sm:$0xff]
    %v758 = vld [vmem:[#allocation8 + $0x210] sm:$0xff]
    %v759 = vld [vmem:[#allocation8 + $0x218] sm:$0xff]
    %v760 = vld [vmem:[#allocation8 + $0x220] sm:$0xff]
    %v761 = vld [vmem:[#allocation8 + $0x228] sm:$0xff]
    %v762 = vld [vmem:[#allocation8 + $0x230] sm:$0xff]
    %v763 = vld [vmem:[#allocation8 + $0x238] sm:$0xff]
    %v764 = vld [vmem:[#allocation8 + $0x240] sm:$0xff]
    %v765 = vld [vmem:[#allocation8 + $0x248] sm:$0xff]
    %v766 = vld [vmem:[#allocation8 + $0x250] sm:$0xff]
    %v767 = vld [vmem:[#allocation8 + $0x258] sm:$0xff]
    %v768 = vld [vmem:[#allocation8 + $0x260] sm:$0xff]
    %v769 = vld [vmem:[#allocation8 + $0x268] sm:$0xff]
    %v770 = vld [vmem:[#allocation8 + $0x270] sm:$0xff]
    %v771 = vld [vmem:[#allocation8 + $0x278] sm:$0xff]
    %v772 = vld [vmem:[#allocation8 + $0x280] sm:$0xff]
    %v773 = vld [vmem:[#allocation8 + $0x288] sm:$0xff]
    %v774 = vld [vmem:[#allocation8 + $0x290] sm:$0xff]
    %v775 = vld [vmem:[#allocation8 + $0x298] sm:$0xff]
    %v776 = vld [vmem:[#allocation8 + $0x2a0] sm:$0xff]
    %v777 = vld [vmem:[#allocation8 + $0x2a8] sm:$0xff]
    %v778 = vld [vmem:[#allocation8 + $0x2b0] sm:$0xff]
    %v779 = vld [vmem:[#allocation8 + $0x2b8] sm:$0xff]
    %v780 = vld [vmem:[#allocation8 + $0x2c0] sm:$0xff]
    %v781 = vld [vmem:[#allocation8 + $0x2c8] sm:$0xff]
    %v782 = vld [vmem:[#allocation8 + $0x2d0] sm:$0xff]
    %v783 = vld [vmem:[#allocation8 + $0x2d8] sm:$0xff]
    %v784 = vld [vmem:[#allocation8 + $0x2e0] sm:$0xff]
    %v785 = vld [vmem:[#allocation8 + $0x2e8] sm:$0xff]
    %v786 = vld [vmem:[#allocation8 + $0x2f0] sm:$0xff]
    %v787 = vld [vmem:[#allocation8 + $0x2f8] sm:$0xff]
    %v788 = vld [vmem:[#allocation8 + $0x300] sm:$0xff]
    %v789 = vld [vmem:[#allocation8 + $0x308] sm:$0xff]
    %v790 = vld [vmem:[#allocation8 + $0x310] sm:$0xff]
    %v791 = vld [vmem:[#allocation8 + $0x318] sm:$0xff]
    %v792 = vld [vmem:[#allocation8 + $0x320] sm:$0xff]
    %v793 = vld [vmem:[#allocation8 + $0x328] sm:$0xff]
    %v794 = vld [vmem:[#allocation8 + $0x330] sm:$0xff]
    %v795 = vld [vmem:[#allocation8 + $0x338] sm:$0xff]
    %v796 = vld [vmem:[#allocation8 + $0x340] sm:$0xff]
    %v797 = vld [vmem:[#allocation8 + $0x348] sm:$0xff]
    %v798 = vld [vmem:[#allocation8 + $0x350] sm:$0xff]
    %v799 = vld [vmem:[#allocation8 + $0x358] sm:$0xff]
    %v800 = vld [vmem:[#allocation8 + $0x360] sm:$0xff]
    %v801 = vld [vmem:[#allocation8 + $0x368] sm:$0xff]
    %v802 = vld [vmem:[#allocation8 + $0x370] sm:$0xff]
    %v803 = vld [vmem:[#allocation8 + $0x378] sm:$0xff]
    %v804 = vld [vmem:[#allocation8 + $0x380] sm:$0xff]
    %v805 = vld [vmem:[#allocation8 + $0x388] sm:$0xff]
    %v806 = vld [vmem:[#allocation8 + $0x390] sm:$0xff]
    %v807 = vld [vmem:[#allocation8 + $0x398] sm:$0xff]
    %v808 = vld [vmem:[#allocation8 + $0x3a0] sm:$0xff]
    %v809 = vld [vmem:[#allocation8 + $0x3a8] sm:$0xff]
    %v810 = vld [vmem:[#allocation8 + $0x3b0] sm:$0xff]
    %v811 = vld [vmem:[#allocation8 + $0x3b8] sm:$0xff]
    %v812 = vld [vmem:[#allocation8 + $0x3c0] sm:$0xff]
    %v813 = vld [vmem:[#allocation8 + $0x3c8] sm:$0xff]
    %v814 = vld [vmem:[#allocation8 + $0x3d0] sm:$0xff]
    %v815 = vld [vmem:[#allocation8 + $0x3d8] sm:$0xff]
    %v816 = vld [vmem:[#allocation8 + $0x3e0] sm:$0xff]
    %v817 = vld [vmem:[#allocation8 + $0x3e8] sm:$0xff]
    %v818 = vld [vmem:[#allocation8 + $0x3f0] sm:$0xff]
    %v819 = vld [vmem:[#allocation8 + $0x3f8] sm:$0xff]
    %v820 = vld [vmem:[#allocation10] sm:$0xf]
    %v822 = vperm.slane %v820, 0
    %v823 = vperm.slane %v820, 1
    %v824 = vperm.slane %v820, 2
    %v825 = vperm.slane %v820, 3
    %v958 = vunpack.c.l.b16 %v692
    %v959 = vunpack.c.h.b16 %v692
    %v960 = vunpack.c.l.b16 %v693
    %v961 = vunpack.c.h.b16 %v693
    %v962 = vunpack.c.l.b16 %v694
    %v963 = vunpack.c.h.b16 %v694
    %v964 = vunpack.c.l.b16 %v695
    %v965 = vunpack.c.h.b16 %v695
    %v966 = vunpack.c.l.b16 %v696
    %v967 = vunpack.c.h.b16 %v696
    %v968 = vunpack.c.l.b16 %v697
    %v969 = vunpack.c.h.b16 %v697
    %v970 = vunpack.c.l.b16 %v698
    %v971 = vunpack.c.h.b16 %v698
    %v972 = vunpack.c.l.b16 %v699
    %v973 = vunpack.c.h.b16 %v699
    %v974 = vunpack.c.l.b16 %v700
    %v975 = vunpack.c.h.b16 %v700
    %v976 = vunpack.c.l.b16 %v701
    %v977 = vunpack.c.h.b16 %v701
    %v978 = vunpack.c.l.b16 %v702
    %v979 = vunpack.c.h.b16 %v702
    %v980 = vunpack.c.l.b16 %v703
    %v981 = vunpack.c.h.b16 %v703
    %v982 = vunpack.c.l.b16 %v704
    %v983 = vunpack.c.h.b16 %v704
    %v984 = vunpack.c.l.b16 %v705
    %v985 = vunpack.c.h.b16 %v705
    %v986 = vunpack.c.l.b16 %v706
    %v987 = vunpack.c.h.b16 %v706
    %v988 = vunpack.c.l.b16 %v707
    %v989 = vunpack.c.h.b16 %v707
    %v990 = vunpack.c.l.b16 %v708
    %v991 = vunpack.c.h.b16 %v708
    %v992 = vunpack.c.l.b16 %v709
    %v993 = vunpack.c.h.b16 %v709
    %v994 = vunpack.c.l.b16 %v710
    %v995 = vunpack.c.h.b16 %v710
    %v996 = vunpack.c.l.b16 %v711
    %v997 = vunpack.c.h.b16 %v711
    %v998 = vunpack.c.l.b16 %v712
    %v999 = vunpack.c.h.b16 %v712
    %v1000 = vunpack.c.l.b16 %v713
    %v1001 = vunpack.c.h.b16 %v713
    %v1002 = vunpack.c.l.b16 %v714
    %v1003 = vunpack.c.h.b16 %v714
    %v1004 = vunpack.c.l.b16 %v715
    %v1005 = vunpack.c.h.b16 %v715
    %v1006 = vunpack.c.l.b16 %v716
    %v1007 = vunpack.c.h.b16 %v716
    %v1008 = vunpack.c.l.b16 %v717
    %v1009 = vunpack.c.h.b16 %v717
    %v1010 = vunpack.c.l.b16 %v718
    %v1011 = vunpack.c.h.b16 %v718
    %v1012 = vunpack.c.l.b16 %v719
    %v1013 = vunpack.c.h.b16 %v719
    %v1014 = vunpack.c.l.b16 %v720
    %v1015 = vunpack.c.h.b16 %v720
    %v1016 = vunpack.c.l.b16 %v721
    %v1017 = vunpack.c.h.b16 %v721
    %v1018 = vunpack.c.l.b16 %v722
    %v1019 = vunpack.c.h.b16 %v722
    %v1020 = vunpack.c.l.b16 %v723
    %v1021 = vunpack.c.h.b16 %v723
    %v1022 = vunpack.c.l.b16 %v724
    %v1023 = vunpack.c.h.b16 %v724
    %v1024 = vunpack.c.l.b16 %v725
    %v1025 = vunpack.c.h.b16 %v725
    %v1026 = vunpack.c.l.b16 %v726
    %v1027 = vunpack.c.h.b16 %v726
    %v1028 = vunpack.c.l.b16 %v727
    %v1029 = vunpack.c.h.b16 %v727
    %v1030 = vunpack.c.l.b16 %v728
    %v1031 = vunpack.c.h.b16 %v728
    %v1032 = vunpack.c.l.b16 %v729
    %v1033 = vunpack.c.h.b16 %v729
    %v1034 = vunpack.c.l.b16 %v730
    %v1035 = vunpack.c.h.b16 %v730
    %v1036 = vunpack.c.l.b16 %v731
    %v1037 = vunpack.c.h.b16 %v731
    %v1038 = vunpack.c.l.b16 %v732
    %v1039 = vunpack.c.h.b16 %v732
    %v1040 = vunpack.c.l.b16 %v733
    %v1041 = vunpack.c.h.b16 %v733
    %v1042 = vunpack.c.l.b16 %v734
    %v1043 = vunpack.c.h.b16 %v734
    %v1044 = vunpack.c.l.b16 %v735
    %v1045 = vunpack.c.h.b16 %v735
    %v1046 = vunpack.c.l.b16 %v736
    %v1047 = vunpack.c.h.b16 %v736
    %v1048 = vunpack.c.l.b16 %v737
    %v1049 = vunpack.c.h.b16 %v737
    %v1050 = vunpack.c.l.b16 %v738
    %v1051 = vunpack.c.h.b16 %v738
    %v1052 = vunpack.c.l.b16 %v739
    %v1053 = vunpack.c.h.b16 %v739
    %v1054 = vunpack.c.l.b16 %v740
    %v1055 = vunpack.c.h.b16 %v740
    %v1056 = vunpack.c.l.b16 %v741
    %v1057 = vunpack.c.h.b16 %v741
    %v1058 = vunpack.c.l.b16 %v742
    %v1059 = vunpack.c.h.b16 %v742
    %v1060 = vunpack.c.l.b16 %v743
    %v1061 = vunpack.c.h.b16 %v743
    %v1062 = vunpack.c.l.b16 %v744
    %v1063 = vunpack.c.h.b16 %v744
    %v1064 = vunpack.c.l.b16 %v745
    %v1065 = vunpack.c.h.b16 %v745
    %v1066 = vunpack.c.l.b16 %v746
    %v1067 = vunpack.c.h.b16 %v746
    %v1068 = vunpack.c.l.b16 %v747
    %v1069 = vunpack.c.h.b16 %v747
    %v1070 = vunpack.c.l.b16 %v748
    %v1071 = vunpack.c.h.b16 %v748
    %v1072 = vunpack.c.l.b16 %v749
    %v1073 = vunpack.c.h.b16 %v749
    %v1074 = vunpack.c.l.b16 %v750
    %v1075 = vunpack.c.h.b16 %v750
    %v1076 = vunpack.c.l.b16 %v751
    %v1077 = vunpack.c.h.b16 %v751
    %v1078 = vunpack.c.l.b16 %v752
    %v1079 = vunpack.c.h.b16 %v752
    %v1080 = vunpack.c.l.b16 %v753
    %v1081 = vunpack.c.h.b16 %v753
    %v1082 = vunpack.c.l.b16 %v754
    %v1083 = vunpack.c.h.b16 %v754
    %v1084 = vunpack.c.l.b16 %v755
    %v1085 = vunpack.c.h.b16 %v755
    %v1086 = vunpack.c.l.b16 %v756
    %v1087 = vunpack.c.h.b16 %v756
    %v1088 = vunpack.c.l.b16 %v757
    %v1089 = vunpack.c.h.b16 %v757
    %v1090 = vunpack.c.l.b16 %v758
    %v1091 = vunpack.c.h.b16 %v758
    %v1092 = vunpack.c.l.b16 %v759
    %v1093 = vunpack.c.h.b16 %v759
    %v1094 = vunpack.c.l.b16 %v760
    %v1095 = vunpack.c.h.b16 %v760
    %v1096 = vunpack.c.l.b16 %v761
    %v1097 = vunpack.c.h.b16 %v761
    %v1098 = vunpack.c.l.b16 %v762
    %v1099 = vunpack.c.h.b16 %v762
    %v1100 = vunpack.c.l.b16 %v763
    %v1101 = vunpack.c.h.b16 %v763
    %v1102 = vunpack.c.l.b16 %v764
    %v1103 = vunpack.c.h.b16 %v764
    %v1104 = vunpack.c.l.b16 %v765
    %v1105 = vunpack.c.h.b16 %v765
    %v1106 = vunpack.c.l.b16 %v766
    %v1107 = vunpack.c.h.b16 %v766
    %v1108 = vunpack.c.l.b16 %v767
    %v1109 = vunpack.c.h.b16 %v767
    %v1110 = vunpack.c.l.b16 %v768
    %v1111 = vunpack.c.h.b16 %v768
    %v1112 = vunpack.c.l.b16 %v769
    %v1113 = vunpack.c.h.b16 %v769
    %v1114 = vunpack.c.l.b16 %v770
    %v1115 = vunpack.c.h.b16 %v770
    %v1116 = vunpack.c.l.b16 %v771
    %v1117 = vunpack.c.h.b16 %v771
    %v1118 = vunpack.c.l.b16 %v772
    %v1119 = vunpack.c.h.b16 %v772
    %v1120 = vunpack.c.l.b16 %v773
    %v1121 = vunpack.c.h.b16 %v773
    %v1122 = vunpack.c.l.b16 %v774
    %v1123 = vunpack.c.h.b16 %v774
    %v1124 = vunpack.c.l.b16 %v775
    %v1125 = vunpack.c.h.b16 %v775
    %v1126 = vunpack.c.l.b16 %v776
    %v1127 = vunpack.c.h.b16 %v776
    %v1128 = vunpack.c.l.b16 %v777
    %v1129 = vunpack.c.h.b16 %v777
    %v1130 = vunpack.c.l.b16 %v778
    %v1131 = vunpack.c.h.b16 %v778
    %v1132 = vunpack.c.l.b16 %v779
    %v1133 = vunpack.c.h.b16 %v779
    %v1134 = vunpack.c.l.b16 %v780
    %v1135 = vunpack.c.h.b16 %v780
    %v1136 = vunpack.c.l.b16 %v781
    %v1137 = vunpack.c.h.b16 %v781
    %v1138 = vunpack.c.l.b16 %v782
    %v1139 = vunpack.c.h.b16 %v782
    %v1140 = vunpack.c.l.b16 %v783
    %v1141 = vunpack.c.h.b16 %v783
    %v1142 = vunpack.c.l.b16 %v784
    %v1143 = vunpack.c.h.b16 %v784
    %v1144 = vunpack.c.l.b16 %v785
    %v1145 = vunpack.c.h.b16 %v785
    %v1146 = vunpack.c.l.b16 %v786
    %v1147 = vunpack.c.h.b16 %v786
    %v1148 = vunpack.c.l.b16 %v787
    %v1149 = vunpack.c.h.b16 %v787
    %v1150 = vunpack.c.l.b16 %v788
    %v1151 = vunpack.c.h.b16 %v788
    %v1152 = vunpack.c.l.b16 %v789
    %v1153 = vunpack.c.h.b16 %v789
    %v1154 = vunpack.c.l.b16 %v790
    %v1155 = vunpack.c.h.b16 %v790
    %v1156 = vunpack.c.l.b16 %v791
    %v1157 = vunpack.c.h.b16 %v791
    %v1158 = vunpack.c.l.b16 %v792
    %v1159 = vunpack.c.h.b16 %v792
    %v1160 = vunpack.c.l.b16 %v793
    %v1161 = vunpack.c.h.b16 %v793
    %v1162 = vunpack.c.l.b16 %v794
    %v1163 = vunpack.c.h.b16 %v794
    %v1164 = vunpack.c.l.b16 %v795
    %v1165 = vunpack.c.h.b16 %v795
    %v1166 = vunpack.c.l.b16 %v796
    %v1167 = vunpack.c.h.b16 %v796
    %v1168 = vunpack.c.l.b16 %v797
    %v1169 = vunpack.c.h.b16 %v797
    %v1170 = vunpack.c.l.b16 %v798
    %v1171 = vunpack.c.h.b16 %v798
    %v1172 = vunpack.c.l.b16 %v799
    %v1173 = vunpack.c.h.b16 %v799
    %v1174 = vunpack.c.l.b16 %v800
    %v1175 = vunpack.c.h.b16 %v800
    %v1176 = vunpack.c.l.b16 %v801
    %v1177 = vunpack.c.h.b16 %v801
    %v1178 = vunpack.c.l.b16 %v802
    %v1179 = vunpack.c.h.b16 %v802
    %v1180 = vunpack.c.l.b16 %v803
    %v1181 = vunpack.c.h.b16 %v803
    %v1182 = vunpack.c.l.b16 %v804
    %v1183 = vunpack.c.h.b16 %v804
    %v1184 = vunpack.c.l.b16 %v805
    %v1185 = vunpack.c.h.b16 %v805
    %v1186 = vunpack.c.l.b16 %v806
    %v1187 = vunpack.c.h.b16 %v806
    %v1188 = vunpack.c.l.b16 %v807
    %v1189 = vunpack.c.h.b16 %v807
    %v1190 = vunpack.c.l.b16 %v808
    %v1191 = vunpack.c.h.b16 %v808
    %v1192 = vunpack.c.l.b16 %v809
    %v1193 = vunpack.c.h.b16 %v809
    %v1194 = vunpack.c.l.b16 %v810
    %v1195 = vunpack.c.h.b16 %v810
    %v1196 = vunpack.c.l.b16 %v811
    %v1197 = vunpack.c.h.b16 %v811
    %v1198 = vunpack.c.l.b16 %v812
    %v1199 = vunpack.c.h.b16 %v812
    %v1200 = vunpack.c.l.b16 %v813
    %v1201 = vunpack.c.h.b16 %v813
    %v1202 = vunpack.c.l.b16 %v814
    %v1203 = vunpack.c.h.b16 %v814
    %v1204 = vunpack.c.l.b16 %v815
    %v1205 = vunpack.c.h.b16 %v815
    %v1206 = vunpack.c.l.b16 %v816
    %v1207 = vunpack.c.h.b16 %v816
    %v1208 = vunpack.c.l.b16 %v817
    %v1209 = vunpack.c.h.b16 %v817
    %v1210 = vunpack.c.l.b16 %v818
    %v1211 = vunpack.c.h.b16 %v818
    %v1212 = vunpack.c.l.b16 %v819
    %v1213 = vunpack.c.h.b16 %v819
    %v1214 = vpack.c.b16 %v962, %v958
    %v1215 = vpack.c.b16 %v963, %v959
    %v1216 = vpack.c.b16 %v964, %v960
    %v1217 = vpack.c.b16 %v965, %v961
    %v1218 = vpack.c.b16 %v970, %v966
    %v1219 = vpack.c.b16 %v971, %v967
    %v1220 = vpack.c.b16 %v972, %v968
    %v1221 = vpack.c.b16 %v973, %v969
    %v1222 = vpack.c.b16 %v978, %v974
    %v1223 = vpack.c.b16 %v979, %v975
    %v1224 = vpack.c.b16 %v980, %v976
    %v1225 = vpack.c.b16 %v981, %v977
    %v1226 = vpack.c.b16 %v986, %v982
    %v1227 = vpack.c.b16 %v987, %v983
    %v1228 = vpack.c.b16 %v988, %v984
    %v1229 = vpack.c.b16 %v989, %v985
    %v1230 = vpack.c.b16 %v994, %v990
    %v1231 = vpack.c.b16 %v995, %v991
    %v1232 = vpack.c.b16 %v996, %v992
    %v1233 = vpack.c.b16 %v997, %v993
    %v1234 = vpack.c.b16 %v1002, %v998
    %v1235 = vpack.c.b16 %v1003, %v999
    %v1236 = vpack.c.b16 %v1004, %v1000
    %v1237 = vpack.c.b16 %v1005, %v1001
    %v1238 = vpack.c.b16 %v1010, %v1006
    %v1239 = vpack.c.b16 %v1011, %v1007
    %v1240 = vpack.c.b16 %v1012, %v1008
    %v1241 = vpack.c.b16 %v1013, %v1009
    %v1242 = vpack.c.b16 %v1018, %v1014
    %v1243 = vpack.c.b16 %v1019, %v1015
    %v1244 = vpack.c.b16 %v1020, %v1016
    %v1245 = vpack.c.b16 %v1021, %v1017
    %v1246 = vpack.c.b16 %v1026, %v1022
    %v1247 = vpack.c.b16 %v1027, %v1023
    %v1248 = vpack.c.b16 %v1028, %v1024
    %v1249 = vpack.c.b16 %v1029, %v1025
    %v1250 = vpack.c.b16 %v1034, %v1030
    %v1251 = vpack.c.b16 %v1035, %v1031
    %v1252 = vpack.c.b16 %v1036, %v1032
    %v1253 = vpack.c.b16 %v1037, %v1033
    %v1254 = vpack.c.b16 %v1042, %v1038
    %v1255 = vpack.c.b16 %v1043, %v1039
    %v1256 = vpack.c.b16 %v1044, %v1040
    %v1257 = vpack.c.b16 %v1045, %v1041
    %v1258 = vpack.c.b16 %v1050, %v1046
    %v1259 = vpack.c.b16 %v1051, %v1047
    %v1260 = vpack.c.b16 %v1052, %v1048
    %v1261 = vpack.c.b16 %v1053, %v1049
    %v1262 = vpack.c.b16 %v1058, %v1054
    %v1263 = vpack.c.b16 %v1059, %v1055
    %v1264 = vpack.c.b16 %v1060, %v1056
    %v1265 = vpack.c.b16 %v1061, %v1057
    %v1266 = vpack.c.b16 %v1066, %v1062
    %v1267 = vpack.c.b16 %v1067, %v1063
    %v1268 = vpack.c.b16 %v1068, %v1064
    %v1269 = vpack.c.b16 %v1069, %v1065
    %v1270 = vpack.c.b16 %v1074, %v1070
    %v1271 = vpack.c.b16 %v1075, %v1071
    %v1272 = vpack.c.b16 %v1076, %v1072
    %v1273 = vpack.c.b16 %v1077, %v1073
    %v1274 = vpack.c.b16 %v1082, %v1078
    %v1275 = vpack.c.b16 %v1083, %v1079
    %v1276 = vpack.c.b16 %v1084, %v1080
    %v1277 = vpack.c.b16 %v1085, %v1081
    %v1278 = vpack.c.b16 %v1090, %v1086
    %v1279 = vpack.c.b16 %v1091, %v1087
    %v1280 = vpack.c.b16 %v1092, %v1088
    %v1281 = vpack.c.b16 %v1093, %v1089
    %v1282 = vpack.c.b16 %v1098, %v1094
    %v1283 = vpack.c.b16 %v1099, %v1095
    %v1284 = vpack.c.b16 %v1100, %v1096
    %v1285 = vpack.c.b16 %v1101, %v1097
    %v1286 = vpack.c.b16 %v1106, %v1102
    %v1287 = vpack.c.b16 %v1107, %v1103
    %v1288 = vpack.c.b16 %v1108, %v1104
    %v1289 = vpack.c.b16 %v1109, %v1105
    %v1290 = vpack.c.b16 %v1114, %v1110
    %v1291 = vpack.c.b16 %v1115, %v1111
    %v1292 = vpack.c.b16 %v1116, %v1112
    %v1293 = vpack.c.b16 %v1117, %v1113
    %v1294 = vpack.c.b16 %v1122, %v1118
    %v1295 = vpack.c.b16 %v1123, %v1119
    %v1296 = vpack.c.b16 %v1124, %v1120
    %v1297 = vpack.c.b16 %v1125, %v1121
    %v1298 = vpack.c.b16 %v1130, %v1126
    %v1299 = vpack.c.b16 %v1131, %v1127
    %v1300 = vpack.c.b16 %v1132, %v1128
    %v1301 = vpack.c.b16 %v1133, %v1129
    %v1302 = vpack.c.b16 %v1138, %v1134
    %v1303 = vpack.c.b16 %v1139, %v1135
    %v1304 = vpack.c.b16 %v1140, %v1136
    %v1305 = vpack.c.b16 %v1141, %v1137
    %v1306 = vpack.c.b16 %v1146, %v1142
    %v1307 = vpack.c.b16 %v1147, %v1143
    %v1308 = vpack.c.b16 %v1148, %v1144
    %v1309 = vpack.c.b16 %v1149, %v1145
    %v1310 = vpack.c.b16 %v1154, %v1150
    %v1311 = vpack.c.b16 %v1155, %v1151
    %v1312 = vpack.c.b16 %v1156, %v1152
    %v1313 = vpack.c.b16 %v1157, %v1153
    %v1314 = vpack.c.b16 %v1162, %v1158
    %v1315 = vpack.c.b16 %v1163, %v1159
    %v1316 = vpack.c.b16 %v1164, %v1160
    %v1317 = vpack.c.b16 %v1165, %v1161
    %v1318 = vpack.c.b16 %v1170, %v1166
    %v1319 = vpack.c.b16 %v1171, %v1167
    %v1320 = vpack.c.b16 %v1172, %v1168
    %v1321 = vpack.c.b16 %v1173, %v1169
    %v1322 = vpack.c.b16 %v1178, %v1174
    %v1323 = vpack.c.b16 %v1179, %v1175
    %v1324 = vpack.c.b16 %v1180, %v1176
    %v1325 = vpack.c.b16 %v1181, %v1177
    %v1326 = vpack.c.b16 %v1186, %v1182
    %v1327 = vpack.c.b16 %v1187, %v1183
    %v1328 = vpack.c.b16 %v1188, %v1184
    %v1329 = vpack.c.b16 %v1189, %v1185
    %v1330 = vpack.c.b16 %v1194, %v1190
    %v1331 = vpack.c.b16 %v1195, %v1191
    %v1332 = vpack.c.b16 %v1196, %v1192
    %v1333 = vpack.c.b16 %v1197, %v1193
    %v1334 = vpack.c.b16 %v1202, %v1198
    %v1335 = vpack.c.b16 %v1203, %v1199
    %v1336 = vpack.c.b16 %v1204, %v1200
    %v1337 = vpack.c.b16 %v1205, %v1201
    %v1338 = vpack.c.b16 %v1210, %v1206
    %v1339 = vpack.c.b16 %v1211, %v1207
    %v1340 = vpack.c.b16 %v1212, %v1208
    %v1341 = vpack.c.b16 %v1213, %v1209
    %1470 = vmatpush.bf16.msra.mxu0 %v1242
    %1471 = vmatpush.bf16.msra.mxu0 %v1238
    %1472 = vmatpush.bf16.msra.mxu0 %v1234
    %1473 = vmatpush.bf16.msra.mxu0 %v1230
    %1474 = vmatpush.bf16.msra.mxu0 %v1226
    %1475 = vmatpush.bf16.msra.mxu0 %v1222
    %1476 = vmatpush.bf16.msra.mxu0 %v1218
    %1477 = vmatpush.bf16.msra.mxu0 %v1214
    %1478 = vmatmul.bf16.gmra.mxu0 %v688
    %v1479 = vpop.f32.mrf.mxu0
    %v1480 = vadd.f32 %v822, %v1479
    %v1481 = vpop.f32.mrf.mxu0
    %v1482 = vadd.f32 %v822, %v1481
    %1483 = vdwg.mxu0
    %1484 = vmatpush.bf16.msra.mxu0 %v1274
    %1485 = vmatpush.bf16.msra.mxu0 %v1270
    %1486 = vmatpush.bf16.msra.mxu0 %v1266
    %1487 = vmatpush.bf16.msra.mxu0 %v1262
    %1488 = vmatpush.bf16.msra.mxu0 %v1258
    %1489 = vmatpush.bf16.msra.mxu0 %v1254
    %1490 = vmatpush.bf16.msra.mxu0 %v1250
    %1491 = vmatpush.bf16.msra.mxu0 %v1246
    %1492 = vmatmul.bf16.gmra.mxu0 %v689
    %v1493 = vpop.f32.mrf.mxu0
    %v1494 = vadd.f32 %v1480, %v1493
    %v1495 = vpop.f32.mrf.mxu0
    %v1496 = vadd.f32 %v1482, %v1495
    %1497 = vdwg.mxu0
    %1498 = vmatpush.bf16.msra.mxu0 %v1306
    %1499 = vmatpush.bf16.msra.mxu0 %v1302
    %1500 = vmatpush.bf16.msra.mxu0 %v1298
    %1501 = vmatpush.bf16.msra.mxu0 %v1294
    %1502 = vmatpush.bf16.msra.mxu0 %v1290
    %1503 = vmatpush.bf16.msra.mxu0 %v1286
    %1504 = vmatpush.bf16.msra.mxu0 %v1282
    %1505 = vmatpush.bf16.msra.mxu0 %v1278
    %1506 = vmatmul.bf16.gmra.mxu0 %v690
    %v1507 = vpop.f32.mrf.mxu0
    %v1508 = vadd.f32 %v1494, %v1507
    %v1509 = vpop.f32.mrf.mxu0
    %v1510 = vadd.f32 %v1496, %v1509
    %1511 = vdwg.mxu0
    %1512 = vmatpush.bf16.msra.mxu0 %v1338
    %1513 = vmatpush.bf16.msra.mxu0 %v1334
    %1514 = vmatpush.bf16.msra.mxu0 %v1330
    %1515 = vmatpush.bf16.msra.mxu0 %v1326
    %1516 = vmatpush.bf16.msra.mxu0 %v1322
    %1517 = vmatpush.bf16.msra.mxu0 %v1318
    %1518 = vmatpush.bf16.msra.mxu0 %v1314
    %1519 = vmatpush.bf16.msra.mxu0 %v1310
    %1520 = vmatmul.bf16.gmra.mxu0 %v691
    %v1521 = vpop.f32.mrf.mxu0
    %v1522 = vadd.f32 %v1508, %v1521
    %v1523 = vpop.f32.mrf.mxu0
    %v1524 = vadd.f32 %v1510, %v1523
    %1525 = vdwg.mxu0
    %1526 = vmatpush.bf16.msra.mxu0 %v1243
    %1527 = vmatpush.bf16.msra.mxu0 %v1239
    %1528 = vmatpush.bf16.msra.mxu0 %v1235
    %1529 = vmatpush.bf16.msra.mxu0 %v1231
    %1530 = vmatpush.bf16.msra.mxu0 %v1227
    %1531 = vmatpush.bf16.msra.mxu0 %v1223
    %1532 = vmatpush.bf16.msra.mxu0 %v1219
    %1533 = vmatpush.bf16.msra.mxu0 %v1215
    %1534 = vmatmul.bf16.gmra.mxu0 %v688
    %v1535 = vpop.f32.mrf.mxu0
    %v1536 = vadd.f32 %v823, %v1535
    %v1537 = vpop.f32.mrf.mxu0
    %v1538 = vadd.f32 %v823, %v1537
    %1539 = vdwg.mxu0
    %1540 = vmatpush.bf16.msra.mxu0 %v1275
    %1541 = vmatpush.bf16.msra.mxu0 %v1271
    %1542 = vmatpush.bf16.msra.mxu0 %v1267
    %1543 = vmatpush.bf16.msra.mxu0 %v1263
    %1544 = vmatpush.bf16.msra.mxu0 %v1259
    %1545 = vmatpush.bf16.msra.mxu0 %v1255
    %1546 = vmatpush.bf16.msra.mxu0 %v1251
    %1547 = vmatpush.bf16.msra.mxu0 %v1247
    %1548 = vmatmul.bf16.gmra.mxu0 %v689
    %v1549 = vpop.f32.mrf.mxu0
    %v1550 = vadd.f32 %v1536, %v1549
    %v1551 = vpop.f32.mrf.mxu0
    %v1552 = vadd.f32 %v1538, %v1551
    %1553 = vdwg.mxu0
    %1554 = vmatpush.bf16.msra.mxu0 %v1307
    %1555 = vmatpush.bf16.msra.mxu0 %v1303
    %1556 = vmatpush.bf16.msra.mxu0 %v1299
    %1557 = vmatpush.bf16.msra.mxu0 %v1295
    %1558 = vmatpush.bf16.msra.mxu0 %v1291
    %1559 = vmatpush.bf16.msra.mxu0 %v1287
    %1560 = vmatpush.bf16.msra.mxu0 %v1283
    %1561 = vmatpush.bf16.msra.mxu0 %v1279
    %1562 = vmatmul.bf16.gmra.mxu0 %v690
    %v1563 = vpop.f32.mrf.mxu0
    %v1564 = vadd.f32 %v1550, %v1563
    %v1565 = vpop.f32.mrf.mxu0
    %v1566 = vadd.f32 %v1552, %v1565
    %1567 = vdwg.mxu0
    %1568 = vmatpush.bf16.msra.mxu0 %v1339
    %1569 = vmatpush.bf16.msra.mxu0 %v1335
    %1570 = vmatpush.bf16.msra.mxu0 %v1331
    %1571 = vmatpush.bf16.msra.mxu0 %v1327
    %1572 = vmatpush.bf16.msra.mxu0 %v1323
    %1573 = vmatpush.bf16.msra.mxu0 %v1319
    %1574 = vmatpush.bf16.msra.mxu0 %v1315
    %1575 = vmatpush.bf16.msra.mxu0 %v1311
    %1576 = vmatmul.bf16.gmra.mxu0 %v691
    %v1577 = vpop.f32.mrf.mxu0
    %v1578 = vadd.f32 %v1564, %v1577
    %v1579 = vpop.f32.mrf.mxu0
    %v1580 = vadd.f32 %v1566, %v1579
    %1581 = vdwg.mxu0
    %1582 = vmatpush.bf16.msra.mxu0 %v1244
    %1583 = vmatpush.bf16.msra.mxu0 %v1240
    %1584 = vmatpush.bf16.msra.mxu0 %v1236
    %1585 = vmatpush.bf16.msra.mxu0 %v1232
    %1586 = vmatpush.bf16.msra.mxu0 %v1228
    %1587 = vmatpush.bf16.msra.mxu0 %v1224
    %1588 = vmatpush.bf16.msra.mxu0 %v1220
    %1589 = vmatpush.bf16.msra.mxu0 %v1216
    %1590 = vmatmul.bf16.gmra.mxu0 %v688
    %v1591 = vpop.f32.mrf.mxu0
    %v1592 = vadd.f32 %v824, %v1591
    %v1593 = vpop.f32.mrf.mxu0
    %v1594 = vadd.f32 %v824, %v1593
    %1595 = vdwg.mxu0
    %1596 = vmatpush.bf16.msra.mxu0 %v1276
    %1597 = vmatpush.bf16.msra.mxu0 %v1272
    %1598 = vmatpush.bf16.msra.mxu0 %v1268
    %1599 = vmatpush.bf16.msra.mxu0 %v1264
    %1600 = vmatpush.bf16.msra.mxu0 %v1260
    %1601 = vmatpush.bf16.msra.mxu0 %v1256
    %1602 = vmatpush.bf16.msra.mxu0 %v1252
    %1603 = vmatpush.bf16.msra.mxu0 %v1248
    %1604 = vmatmul.bf16.gmra.mxu0 %v689
    %v1605 = vpop.f32.mrf.mxu0
    %v1606 = vadd.f32 %v1592, %v1605
    %v1607 = vpop.f32.mrf.mxu0
    %v1608 = vadd.f32 %v1594, %v1607
    %1609 = vdwg.mxu0
    %1610 = vmatpush.bf16.msra.mxu0 %v1308
    %1611 = vmatpush.bf16.msra.mxu0 %v1304
    %1612 = vmatpush.bf16.msra.mxu0 %v1300
    %1613 = vmatpush.bf16.msra.mxu0 %v1296
    %1614 = vmatpush.bf16.msra.mxu0 %v1292
    %1615 = vmatpush.bf16.msra.mxu0 %v1288
    %1616 = vmatpush.bf16.msra.mxu0 %v1284
    %1617 = vmatpush.bf16.msra.mxu0 %v1280
    %1618 = vmatmul.bf16.gmra.mxu0 %v690
    %v1619 = vpop.f32.mrf.mxu0
    %v1620 = vadd.f32 %v1606, %v1619
    %v1621 = vpop.f32.mrf.mxu0
    %v1622 = vadd.f32 %v1608, %v1621
    %1623 = vdwg.mxu0
    %1624 = vmatpush.bf16.msra.mxu0 %v1340
    %1625 = vmatpush.bf16.msra.mxu0 %v1336
    %1626 = vmatpush.bf16.msra.mxu0 %v1332
    %1627 = vmatpush.bf16.msra.mxu0 %v1328
    %1628 = vmatpush.bf16.msra.mxu0 %v1324
    %1629 = vmatpush.bf16.msra.mxu0 %v1320
    %1630 = vmatpush.bf16.msra.mxu0 %v1316
    %1631 = vmatpush.bf16.msra.mxu0 %v1312
    %1632 = vmatmul.bf16.gmra.mxu0 %v691
    %v1633 = vpop.f32.mrf.mxu0
    %v1634 = vadd.f32 %v1620, %v1633
    %v1635 = vpop.f32.mrf.mxu0
    %v1636 = vadd.f32 %v1622, %v1635
    %1637 = vdwg.mxu0
    %1638 = vmatpush.bf16.msra.mxu0 %v1245
    %1639 = vmatpush.bf16.msra.mxu0 %v1241
    %1640 = vmatpush.bf16.msra.mxu0 %v1237
    %1641 = vmatpush.bf16.msra.mxu0 %v1233
    %1642 = vmatpush.bf16.msra.mxu0 %v1229
    %1643 = vmatpush.bf16.msra.mxu0 %v1225
    %1644 = vmatpush.bf16.msra.mxu0 %v1221
    %1645 = vmatpush.bf16.msra.mxu0 %v1217
    %1646 = vmatmul.bf16.gmra.mxu0 %v688
    %v1647 = vpop.f32.mrf.mxu0
    %v1648 = vadd.f32 %v825, %v1647
    %v1649 = vpop.f32.mrf.mxu0
    %v1650 = vadd.f32 %v825, %v1649
    %1651 = vdwg.mxu0
    %1652 = vmatpush.bf16.msra.mxu0 %v1277
    %1653 = vmatpush.bf16.msra.mxu0 %v1273
    %1654 = vmatpush.bf16.msra.mxu0 %v1269
    %1655 = vmatpush.bf16.msra.mxu0 %v1265
    %1656 = vmatpush.bf16.msra.mxu0 %v1261
    %1657 = vmatpush.bf16.msra.mxu0 %v1257
    %1658 = vmatpush.bf16.msra.mxu0 %v1253
    %1659 = vmatpush.bf16.msra.mxu0 %v1249
    %1660 = vmatmul.bf16.gmra.mxu0 %v689
    %v1661 = vpop.f32.mrf.mxu0
    %v1662 = vadd.f32 %v1648, %v1661
    %v1663 = vpop.f32.mrf.mxu0
    %v1664 = vadd.f32 %v1650, %v1663
    %1665 = vdwg.mxu0
    %1666 = vmatpush.bf16.msra.mxu0 %v1309
    %1667 = vmatpush.bf16.msra.mxu0 %v1305
    %1668 = vmatpush.bf16.msra.mxu0 %v1301
    %1669 = vmatpush.bf16.msra.mxu0 %v1297
    %1670 = vmatpush.bf16.msra.mxu0 %v1293
    %1671 = vmatpush.bf16.msra.mxu0 %v1289
    %1672 = vmatpush.bf16.msra.mxu0 %v1285
    %1673 = vmatpush.bf16.msra.mxu0 %v1281
    %1674 = vmatmul.bf16.gmra.mxu0 %v690
    %v1675 = vpop.f32.mrf.mxu0
    %v1676 = vadd.f32 %v1662, %v1675
    %v1677 = vpop.f32.mrf.mxu0
    %v1678 = vadd.f32 %v1664, %v1677
    %1679 = vdwg.mxu0
    %1680 = vmatpush.bf16.msra.mxu0 %v1341
    %1681 = vmatpush.bf16.msra.mxu0 %v1337
    %1682 = vmatpush.bf16.msra.mxu0 %v1333
    %1683 = vmatpush.bf16.msra.mxu0 %v1329
    %1684 = vmatpush.bf16.msra.mxu0 %v1325
    %1685 = vmatpush.bf16.msra.mxu0 %v1321
    %1686 = vmatpush.bf16.msra.mxu0 %v1317
    %1687 = vmatpush.bf16.msra.mxu0 %v1313
    %1688 = vmatmul.bf16.gmra.mxu0 %v691
    %v1689 = vpop.f32.mrf.mxu0
    %v1690 = vadd.f32 %v1676, %v1689
    %v1691 = vpop.f32.mrf.mxu0
    %v1692 = vadd.f32 %v1678, %v1691
    %1693 = vdwg.mxu0
    %v1694 = vmax.f32 %v1522, 0.0
    %v1695 = vmax.f32 %v1578, 0.0
    %v1696 = vmax.f32 %v1634, 0.0
    %v1697 = vmax.f32 %v1690, 0.0
    %v1698 = vmax.f32 %v1524, 0.0
    %v1699 = vmax.f32 %v1580, 0.0
    %v1700 = vmax.f32 %v1636, 0.0
    %v1701 = vmax.f32 %v1692, 0.0
    %v1702 = vpack.c.bf16 %v1698, %v1694
    %v1703 = vpack.c.bf16 %v1699, %v1695
    %v1704 = vpack.c.bf16 %v1700, %v1696
    %v1705 = vpack.c.bf16 %v1701, %v1697
    %v1706 = vld [vmem:[#allocation11] sm:$0xff]
    %v1707 = vld [vmem:[#allocation11 + $0x8] sm:$0xff]
    %v1708 = vld [vmem:[#allocation11 + $0x10] sm:$0xff]
    %v1709 = vld [vmem:[#allocation11 + $0x18] sm:$0xff]
    %v1710 = vld [vmem:[#allocation11 + $0x20] sm:$0xff]
    %v1711 = vld [vmem:[#allocation11 + $0x28] sm:$0xff]
    %v1712 = vld [vmem:[#allocation11 + $0x30] sm:$0xff]
    %v1713 = vld [vmem:[#allocation11 + $0x38] sm:$0xff]
    %v1714 = vld [vmem:[#allocation11 + $0x40] sm:$0xff]
    %v1715 = vld [vmem:[#allocation11 + $0x48] sm:$0xff]
    %v1716 = vld [vmem:[#allocation11 + $0x50] sm:$0xff]
    %v1717 = vld [vmem:[#allocation11 + $0x58] sm:$0xff]
    %v1718 = vld [vmem:[#allocation11 + $0x60] sm:$0xff]
    %v1719 = vld [vmem:[#allocation11 + $0x68] sm:$0xff]
    %v1720 = vld [vmem:[#allocation11 + $0x70] sm:$0xff]
    %v1721 = vld [vmem:[#allocation11 + $0x78] sm:$0xff]
    %v1722 = vld [vmem:[#allocation11 + $0x80] sm:$0xff]
    %v1723 = vld [vmem:[#allocation11 + $0x88] sm:$0xff]
    %v1724 = vld [vmem:[#allocation11 + $0x90] sm:$0xff]
    %v1725 = vld [vmem:[#allocation11 + $0x98] sm:$0xff]
    %v1726 = vld [vmem:[#allocation11 + $0xa0] sm:$0xff]
    %v1727 = vld [vmem:[#allocation11 + $0xa8] sm:$0xff]
    %v1728 = vld [vmem:[#allocation11 + $0xb0] sm:$0xff]
    %v1729 = vld [vmem:[#allocation11 + $0xb8] sm:$0xff]
    %v1730 = vld [vmem:[#allocation11 + $0xc0] sm:$0xff]
    %v1731 = vld [vmem:[#allocation11 + $0xc8] sm:$0xff]
    %v1732 = vld [vmem:[#allocation11 + $0xd0] sm:$0xff]
    %v1733 = vld [vmem:[#allocation11 + $0xd8] sm:$0xff]
    %v1734 = vld [vmem:[#allocation11 + $0xe0] sm:$0xff]
    %v1735 = vld [vmem:[#allocation11 + $0xe8] sm:$0xff]
    %v1736 = vld [vmem:[#allocation11 + $0xf0] sm:$0xff]
    %v1737 = vld [vmem:[#allocation11 + $0xf8] sm:$0xff]
    %v1738 = vld [vmem:[#allocation11 + $0x100] sm:$0xff]
    %v1739 = vld [vmem:[#allocation11 + $0x108] sm:$0xff]
    %v1740 = vld [vmem:[#allocation11 + $0x110] sm:$0xff]
    %v1741 = vld [vmem:[#allocation11 + $0x118] sm:$0xff]
    %v1742 = vld [vmem:[#allocation11 + $0x120] sm:$0xff]
    %v1743 = vld [vmem:[#allocation11 + $0x128] sm:$0xff]
    %v1744 = vld [vmem:[#allocation11 + $0x130] sm:$0xff]
    %v1745 = vld [vmem:[#allocation11 + $0x138] sm:$0xff]
    %v1746 = vld [vmem:[#allocation11 + $0x140] sm:$0xff]
    %v1747 = vld [vmem:[#allocation11 + $0x148] sm:$0xff]
    %v1748 = vld [vmem:[#allocation11 + $0x150] sm:$0xff]
    %v1749 = vld [vmem:[#allocation11 + $0x158] sm:$0xff]
    %v1750 = vld [vmem:[#allocation11 + $0x160] sm:$0xff]
    %v1751 = vld [vmem:[#allocation11 + $0x168] sm:$0xff]
    %v1752 = vld [vmem:[#allocation11 + $0x170] sm:$0xff]
    %v1753 = vld [vmem:[#allocation11 + $0x178] sm:$0xff]
    %v1754 = vld [vmem:[#allocation11 + $0x180] sm:$0xff]
    %v1755 = vld [vmem:[#allocation11 + $0x188] sm:$0xff]
    %v1756 = vld [vmem:[#allocation11 + $0x190] sm:$0xff]
    %v1757 = vld [vmem:[#allocation11 + $0x198] sm:$0xff]
    %v1758 = vld [vmem:[#allocation11 + $0x1a0] sm:$0xff]
    %v1759 = vld [vmem:[#allocation11 + $0x1a8] sm:$0xff]
    %v1760 = vld [vmem:[#allocation11 + $0x1b0] sm:$0xff]
    %v1761 = vld [vmem:[#allocation11 + $0x1b8] sm:$0xff]
    %v1762 = vld [vmem:[#allocation11 + $0x1c0] sm:$0xff]
    %v1763 = vld [vmem:[#allocation11 + $0x1c8] sm:$0xff]
    %v1764 = vld [vmem:[#allocation11 + $0x1d0] sm:$0xff]
    %v1765 = vld [vmem:[#allocation11 + $0x1d8] sm:$0xff]
    %v1766 = vld [vmem:[#allocation11 + $0x1e0] sm:$0xff]
    %v1767 = vld [vmem:[#allocation11 + $0x1e8] sm:$0xff]
    %v1768 = vld [vmem:[#allocation11 + $0x1f0] sm:$0xff]
    %v1769 = vld [vmem:[#allocation11 + $0x1f8] sm:$0xff]
    %v1770 = vld [vmem:[#allocation11 + $0x200] sm:$0xff]
    %v1771 = vld [vmem:[#allocation11 + $0x208] sm:$0xff]
    %v1772 = vld [vmem:[#allocation11 + $0x210] sm:$0xff]
    %v1773 = vld [vmem:[#allocation11 + $0x218] sm:$0xff]
    %v1774 = vld [vmem:[#allocation11 + $0x220] sm:$0xff]
    %v1775 = vld [vmem:[#allocation11 + $0x228] sm:$0xff]
    %v1776 = vld [vmem:[#allocation11 + $0x230] sm:$0xff]
    %v1777 = vld [vmem:[#allocation11 + $0x238] sm:$0xff]
    %v1778 = vld [vmem:[#allocation11 + $0x240] sm:$0xff]
    %v1779 = vld [vmem:[#allocation11 + $0x248] sm:$0xff]
    %v1780 = vld [vmem:[#allocation11 + $0x250] sm:$0xff]
    %v1781 = vld [vmem:[#allocation11 + $0x258] sm:$0xff]
    %v1782 = vld [vmem:[#allocation11 + $0x260] sm:$0xff]
    %v1783 = vld [vmem:[#allocation11 + $0x268] sm:$0xff]
    %v1784 = vld [vmem:[#allocation11 + $0x270] sm:$0xff]
    %v1785 = vld [vmem:[#allocation11 + $0x278] sm:$0xff]
    %v1786 = vld [vmem:[#allocation11 + $0x280] sm:$0xff]
    %v1787 = vld [vmem:[#allocation11 + $0x288] sm:$0xff]
    %v1788 = vld [vmem:[#allocation11 + $0x290] sm:$0xff]
    %v1789 = vld [vmem:[#allocation11 + $0x298] sm:$0xff]
    %v1790 = vld [vmem:[#allocation11 + $0x2a0] sm:$0xff]
    %v1791 = vld [vmem:[#allocation11 + $0x2a8] sm:$0xff]
    %v1792 = vld [vmem:[#allocation11 + $0x2b0] sm:$0xff]
    %v1793 = vld [vmem:[#allocation11 + $0x2b8] sm:$0xff]
    %v1794 = vld [vmem:[#allocation11 + $0x2c0] sm:$0xff]
    %v1795 = vld [vmem:[#allocation11 + $0x2c8] sm:$0xff]
    %v1796 = vld [vmem:[#allocation11 + $0x2d0] sm:$0xff]
    %v1797 = vld [vmem:[#allocation11 + $0x2d8] sm:$0xff]
    %v1798 = vld [vmem:[#allocation11 + $0x2e0] sm:$0xff]
    %v1799 = vld [vmem:[#allocation11 + $0x2e8] sm:$0xff]
    %v1800 = vld [vmem:[#allocation11 + $0x2f0] sm:$0xff]
    %v1801 = vld [vmem:[#allocation11 + $0x2f8] sm:$0xff]
    %v1802 = vld [vmem:[#allocation11 + $0x300] sm:$0xff]
    %v1803 = vld [vmem:[#allocation11 + $0x308] sm:$0xff]
    %v1804 = vld [vmem:[#allocation11 + $0x310] sm:$0xff]
    %v1805 = vld [vmem:[#allocation11 + $0x318] sm:$0xff]
    %v1806 = vld [vmem:[#allocation11 + $0x320] sm:$0xff]
    %v1807 = vld [vmem:[#allocation11 + $0x328] sm:$0xff]
    %v1808 = vld [vmem:[#allocation11 + $0x330] sm:$0xff]
    %v1809 = vld [vmem:[#allocation11 + $0x338] sm:$0xff]
    %v1810 = vld [vmem:[#allocation11 + $0x340] sm:$0xff]
    %v1811 = vld [vmem:[#allocation11 + $0x348] sm:$0xff]
    %v1812 = vld [vmem:[#allocation11 + $0x350] sm:$0xff]
    %v1813 = vld [vmem:[#allocation11 + $0x358] sm:$0xff]
    %v1814 = vld [vmem:[#allocation11 + $0x360] sm:$0xff]
    %v1815 = vld [vmem:[#allocation11 + $0x368] sm:$0xff]
    %v1816 = vld [vmem:[#allocation11 + $0x370] sm:$0xff]
    %v1817 = vld [vmem:[#allocation11 + $0x378] sm:$0xff]
    %v1818 = vld [vmem:[#allocation11 + $0x380] sm:$0xff]
    %v1819 = vld [vmem:[#allocation11 + $0x388] sm:$0xff]
    %v1820 = vld [vmem:[#allocation11 + $0x390] sm:$0xff]
    %v1821 = vld [vmem:[#allocation11 + $0x398] sm:$0xff]
    %v1822 = vld [vmem:[#allocation11 + $0x3a0] sm:$0xff]
    %v1823 = vld [vmem:[#allocation11 + $0x3a8] sm:$0xff]
    %v1824 = vld [vmem:[#allocation11 + $0x3b0] sm:$0xff]
    %v1825 = vld [vmem:[#allocation11 + $0x3b8] sm:$0xff]
    %v1826 = vld [vmem:[#allocation11 + $0x3c0] sm:$0xff]
    %v1827 = vld [vmem:[#allocation11 + $0x3c8] sm:$0xff]
    %v1828 = vld [vmem:[#allocation11 + $0x3d0] sm:$0xff]
    %v1829 = vld [vmem:[#allocation11 + $0x3d8] sm:$0xff]
    %v1830 = vld [vmem:[#allocation11 + $0x3e0] sm:$0xff]
    %v1831 = vld [vmem:[#allocation11 + $0x3e8] sm:$0xff]
    %v1832 = vld [vmem:[#allocation11 + $0x3f0] sm:$0xff]
    %v1833 = vld [vmem:[#allocation11 + $0x3f8] sm:$0xff]
    %v1834 = vld [vmem:[%s6] sm:$0xf]
    %v1836 = vperm.slane %v1834, 0
    %v1837 = vperm.slane %v1834, 1
    %v1838 = vperm.slane %v1834, 2
    %v1839 = vperm.slane %v1834, 3
    %v1972 = vunpack.c.l.b16 %v1706
    %v1973 = vunpack.c.h.b16 %v1706
    %v1974 = vunpack.c.l.b16 %v1707
    %v1975 = vunpack.c.h.b16 %v1707
    %v1976 = vunpack.c.l.b16 %v1708
    %v1977 = vunpack.c.h.b16 %v1708
    %v1978 = vunpack.c.l.b16 %v1709
    %v1979 = vunpack.c.h.b16 %v1709
    %v1980 = vunpack.c.l.b16 %v1710
    %v1981 = vunpack.c.h.b16 %v1710
    %v1982 = vunpack.c.l.b16 %v1711
    %v1983 = vunpack.c.h.b16 %v1711
    %v1984 = vunpack.c.l.b16 %v1712
    %v1985 = vunpack.c.h.b16 %v1712
    %v1986 = vunpack.c.l.b16 %v1713
    %v1987 = vunpack.c.h.b16 %v1713
    %v1988 = vunpack.c.l.b16 %v1714
    %v1989 = vunpack.c.h.b16 %v1714
    %v1990 = vunpack.c.l.b16 %v1715
    %v1991 = vunpack.c.h.b16 %v1715
    %v1992 = vunpack.c.l.b16 %v1716
    %v1993 = vunpack.c.h.b16 %v1716
    %v1994 = vunpack.c.l.b16 %v1717
    %v1995 = vunpack.c.h.b16 %v1717
    %v1996 = vunpack.c.l.b16 %v1718
    %v1997 = vunpack.c.h.b16 %v1718
    %v1998 = vunpack.c.l.b16 %v1719
    %v1999 = vunpack.c.h.b16 %v1719
    %v2000 = vunpack.c.l.b16 %v1720
    %v2001 = vunpack.c.h.b16 %v1720
    %v2002 = vunpack.c.l.b16 %v1721
    %v2003 = vunpack.c.h.b16 %v1721
    %v2004 = vunpack.c.l.b16 %v1722
    %v2005 = vunpack.c.h.b16 %v1722
    %v2006 = vunpack.c.l.b16 %v1723
    %v2007 = vunpack.c.h.b16 %v1723
    %v2008 = vunpack.c.l.b16 %v1724
    %v2009 = vunpack.c.h.b16 %v1724
    %v2010 = vunpack.c.l.b16 %v1725
    %v2011 = vunpack.c.h.b16 %v1725
    %v2012 = vunpack.c.l.b16 %v1726
    %v2013 = vunpack.c.h.b16 %v1726
    %v2014 = vunpack.c.l.b16 %v1727
    %v2015 = vunpack.c.h.b16 %v1727
    %v2016 = vunpack.c.l.b16 %v1728
    %v2017 = vunpack.c.h.b16 %v1728
    %v2018 = vunpack.c.l.b16 %v1729
    %v2019 = vunpack.c.h.b16 %v1729
    %v2020 = vunpack.c.l.b16 %v1730
    %v2021 = vunpack.c.h.b16 %v1730
    %v2022 = vunpack.c.l.b16 %v1731
    %v2023 = vunpack.c.h.b16 %v1731
    %v2024 = vunpack.c.l.b16 %v1732
    %v2025 = vunpack.c.h.b16 %v1732
    %v2026 = vunpack.c.l.b16 %v1733
    %v2027 = vunpack.c.h.b16 %v1733
    %v2028 = vunpack.c.l.b16 %v1734
    %v2029 = vunpack.c.h.b16 %v1734
    %v2030 = vunpack.c.l.b16 %v1735
    %v2031 = vunpack.c.h.b16 %v1735
    %v2032 = vunpack.c.l.b16 %v1736
    %v2033 = vunpack.c.h.b16 %v1736
    %v2034 = vunpack.c.l.b16 %v1737
    %v2035 = vunpack.c.h.b16 %v1737
    %v2036 = vunpack.c.l.b16 %v1738
    %v2037 = vunpack.c.h.b16 %v1738
    %v2038 = vunpack.c.l.b16 %v1739
    %v2039 = vunpack.c.h.b16 %v1739
    %v2040 = vunpack.c.l.b16 %v1740
    %v2041 = vunpack.c.h.b16 %v1740
    %v2042 = vunpack.c.l.b16 %v1741
    %v2043 = vunpack.c.h.b16 %v1741
    %v2044 = vunpack.c.l.b16 %v1742
    %v2045 = vunpack.c.h.b16 %v1742
    %v2046 = vunpack.c.l.b16 %v1743
    %v2047 = vunpack.c.h.b16 %v1743
    %v2048 = vunpack.c.l.b16 %v1744
    %v2049 = vunpack.c.h.b16 %v1744
    %v2050 = vunpack.c.l.b16 %v1745
    %v2051 = vunpack.c.h.b16 %v1745
    %v2052 = vunpack.c.l.b16 %v1746
    %v2053 = vunpack.c.h.b16 %v1746
    %v2054 = vunpack.c.l.b16 %v1747
    %v2055 = vunpack.c.h.b16 %v1747
    %v2056 = vunpack.c.l.b16 %v1748
    %v2057 = vunpack.c.h.b16 %v1748
    %v2058 = vunpack.c.l.b16 %v1749
    %v2059 = vunpack.c.h.b16 %v1749
    %v2060 = vunpack.c.l.b16 %v1750
    %v2061 = vunpack.c.h.b16 %v1750
    %v2062 = vunpack.c.l.b16 %v1751
    %v2063 = vunpack.c.h.b16 %v1751
    %v2064 = vunpack.c.l.b16 %v1752
    %v2065 = vunpack.c.h.b16 %v1752
    %v2066 = vunpack.c.l.b16 %v1753
    %v2067 = vunpack.c.h.b16 %v1753
    %v2068 = vunpack.c.l.b16 %v1754
    %v2069 = vunpack.c.h.b16 %v1754
    %v2070 = vunpack.c.l.b16 %v1755
    %v2071 = vunpack.c.h.b16 %v1755
    %v2072 = vunpack.c.l.b16 %v1756
    %v2073 = vunpack.c.h.b16 %v1756
    %v2074 = vunpack.c.l.b16 %v1757
    %v2075 = vunpack.c.h.b16 %v1757
    %v2076 = vunpack.c.l.b16 %v1758
    %v2077 = vunpack.c.h.b16 %v1758
    %v2078 = vunpack.c.l.b16 %v1759
    %v2079 = vunpack.c.h.b16 %v1759
    %v2080 = vunpack.c.l.b16 %v1760
    %v2081 = vunpack.c.h.b16 %v1760
    %v2082 = vunpack.c.l.b16 %v1761
    %v2083 = vunpack.c.h.b16 %v1761
    %v2084 = vunpack.c.l.b16 %v1762
    %v2085 = vunpack.c.h.b16 %v1762
    %v2086 = vunpack.c.l.b16 %v1763
    %v2087 = vunpack.c.h.b16 %v1763
    %v2088 = vunpack.c.l.b16 %v1764
    %v2089 = vunpack.c.h.b16 %v1764
    %v2090 = vunpack.c.l.b16 %v1765
    %v2091 = vunpack.c.h.b16 %v1765
    %v2092 = vunpack.c.l.b16 %v1766
    %v2093 = vunpack.c.h.b16 %v1766
    %v2094 = vunpack.c.l.b16 %v1767
    %v2095 = vunpack.c.h.b16 %v1767
    %v2096 = vunpack.c.l.b16 %v1768
    %v2097 = vunpack.c.h.b16 %v1768
    %v2098 = vunpack.c.l.b16 %v1769
    %v2099 = vunpack.c.h.b16 %v1769
    %v2100 = vunpack.c.l.b16 %v1770
    %v2101 = vunpack.c.h.b16 %v1770
    %v2102 = vunpack.c.l.b16 %v1771
    %v2103 = vunpack.c.h.b16 %v1771
    %v2104 = vunpack.c.l.b16 %v1772
    %v2105 = vunpack.c.h.b16 %v1772
    %v2106 = vunpack.c.l.b16 %v1773
    %v2107 = vunpack.c.h.b16 %v1773
    %v2108 = vunpack.c.l.b16 %v1774
    %v2109 = vunpack.c.h.b16 %v1774
    %v2110 = vunpack.c.l.b16 %v1775
    %v2111 = vunpack.c.h.b16 %v1775
    %v2112 = vunpack.c.l.b16 %v1776
    %v2113 = vunpack.c.h.b16 %v1776
    %v2114 = vunpack.c.l.b16 %v1777
    %v2115 = vunpack.c.h.b16 %v1777
    %v2116 = vunpack.c.l.b16 %v1778
    %v2117 = vunpack.c.h.b16 %v1778
    %v2118 = vunpack.c.l.b16 %v1779
    %v2119 = vunpack.c.h.b16 %v1779
    %v2120 = vunpack.c.l.b16 %v1780
    %v2121 = vunpack.c.h.b16 %v1780
    %v2122 = vunpack.c.l.b16 %v1781
    %v2123 = vunpack.c.h.b16 %v1781
    %v2124 = vunpack.c.l.b16 %v1782
    %v2125 = vunpack.c.h.b16 %v1782
    %v2126 = vunpack.c.l.b16 %v1783
    %v2127 = vunpack.c.h.b16 %v1783
    %v2128 = vunpack.c.l.b16 %v1784
    %v2129 = vunpack.c.h.b16 %v1784
    %v2130 = vunpack.c.l.b16 %v1785
    %v2131 = vunpack.c.h.b16 %v1785
    %v2132 = vunpack.c.l.b16 %v1786
    %v2133 = vunpack.c.h.b16 %v1786
    %v2134 = vunpack.c.l.b16 %v1787
    %v2135 = vunpack.c.h.b16 %v1787
    %v2136 = vunpack.c.l.b16 %v1788
    %v2137 = vunpack.c.h.b16 %v1788
    %v2138 = vunpack.c.l.b16 %v1789
    %v2139 = vunpack.c.h.b16 %v1789
    %v2140 = vunpack.c.l.b16 %v1790
    %v2141 = vunpack.c.h.b16 %v1790
    %v2142 = vunpack.c.l.b16 %v1791
    %v2143 = vunpack.c.h.b16 %v1791
    %v2144 = vunpack.c.l.b16 %v1792
    %v2145 = vunpack.c.h.b16 %v1792
    %v2146 = vunpack.c.l.b16 %v1793
    %v2147 = vunpack.c.h.b16 %v1793
    %v2148 = vunpack.c.l.b16 %v1794
    %v2149 = vunpack.c.h.b16 %v1794
    %v2150 = vunpack.c.l.b16 %v1795
    %v2151 = vunpack.c.h.b16 %v1795
    %v2152 = vunpack.c.l.b16 %v1796
    %v2153 = vunpack.c.h.b16 %v1796
    %v2154 = vunpack.c.l.b16 %v1797
    %v2155 = vunpack.c.h.b16 %v1797
    %v2156 = vunpack.c.l.b16 %v1798
    %v2157 = vunpack.c.h.b16 %v1798
    %v2158 = vunpack.c.l.b16 %v1799
    %v2159 = vunpack.c.h.b16 %v1799
    %v2160 = vunpack.c.l.b16 %v1800
    %v2161 = vunpack.c.h.b16 %v1800
    %v2162 = vunpack.c.l.b16 %v1801
    %v2163 = vunpack.c.h.b16 %v1801
    %v2164 = vunpack.c.l.b16 %v1802
    %v2165 = vunpack.c.h.b16 %v1802
    %v2166 = vunpack.c.l.b16 %v1803
    %v2167 = vunpack.c.h.b16 %v1803
    %v2168 = vunpack.c.l.b16 %v1804
    %v2169 = vunpack.c.h.b16 %v1804
    %v2170 = vunpack.c.l.b16 %v1805
    %v2171 = vunpack.c.h.b16 %v1805
    %v2172 = vunpack.c.l.b16 %v1806
    %v2173 = vunpack.c.h.b16 %v1806
    %v2174 = vunpack.c.l.b16 %v1807
    %v2175 = vunpack.c.h.b16 %v1807
    %v2176 = vunpack.c.l.b16 %v1808
    %v2177 = vunpack.c.h.b16 %v1808
    %v2178 = vunpack.c.l.b16 %v1809
    %v2179 = vunpack.c.h.b16 %v1809
    %v2180 = vunpack.c.l.b16 %v1810
    %v2181 = vunpack.c.h.b16 %v1810
    %v2182 = vunpack.c.l.b16 %v1811
    %v2183 = vunpack.c.h.b16 %v1811
    %v2184 = vunpack.c.l.b16 %v1812
    %v2185 = vunpack.c.h.b16 %v1812
    %v2186 = vunpack.c.l.b16 %v1813
    %v2187 = vunpack.c.h.b16 %v1813
    %v2188 = vunpack.c.l.b16 %v1814
    %v2189 = vunpack.c.h.b16 %v1814
    %v2190 = vunpack.c.l.b16 %v1815
    %v2191 = vunpack.c.h.b16 %v1815
    %v2192 = vunpack.c.l.b16 %v1816
    %v2193 = vunpack.c.h.b16 %v1816
    %v2194 = vunpack.c.l.b16 %v1817
    %v2195 = vunpack.c.h.b16 %v1817
    %v2196 = vunpack.c.l.b16 %v1818
    %v2197 = vunpack.c.h.b16 %v1818
    %v2198 = vunpack.c.l.b16 %v1819
    %v2199 = vunpack.c.h.b16 %v1819
    %v2200 = vunpack.c.l.b16 %v1820
    %v2201 = vunpack.c.h.b16 %v1820
    %v2202 = vunpack.c.l.b16 %v1821
    %v2203 = vunpack.c.h.b16 %v1821
    %v2204 = vunpack.c.l.b16 %v1822
    %v2205 = vunpack.c.h.b16 %v1822
    %v2206 = vunpack.c.l.b16 %v1823
    %v2207 = vunpack.c.h.b16 %v1823
    %v2208 = vunpack.c.l.b16 %v1824
    %v2209 = vunpack.c.h.b16 %v1824
    %v2210 = vunpack.c.l.b16 %v1825
    %v2211 = vunpack.c.h.b16 %v1825
    %v2212 = vunpack.c.l.b16 %v1826
    %v2213 = vunpack.c.h.b16 %v1826
    %v2214 = vunpack.c.l.b16 %v1827
    %v2215 = vunpack.c.h.b16 %v1827
    %v2216 = vunpack.c.l.b16 %v1828
    %v2217 = vunpack.c.h.b16 %v1828
    %v2218 = vunpack.c.l.b16 %v1829
    %v2219 = vunpack.c.h.b16 %v1829
    %v2220 = vunpack.c.l.b16 %v1830
    %v2221 = vunpack.c.h.b16 %v1830
    %v2222 = vunpack.c.l.b16 %v1831
    %v2223 = vunpack.c.h.b16 %v1831
    %v2224 = vunpack.c.l.b16 %v1832
    %v2225 = vunpack.c.h.b16 %v1832
    %v2226 = vunpack.c.l.b16 %v1833
    %v2227 = vunpack.c.h.b16 %v1833
    %v2228 = vpack.c.b16 %v1976, %v1972
    %v2229 = vpack.c.b16 %v1977, %v1973
    %v2230 = vpack.c.b16 %v1978, %v1974
    %v2231 = vpack.c.b16 %v1979, %v1975
    %v2232 = vpack.c.b16 %v1984, %v1980
    %v2233 = vpack.c.b16 %v1985, %v1981
    %v2234 = vpack.c.b16 %v1986, %v1982
    %v2235 = vpack.c.b16 %v1987, %v1983
    %v2236 = vpack.c.b16 %v1992, %v1988
    %v2237 = vpack.c.b16 %v1993, %v1989
    %v2238 = vpack.c.b16 %v1994, %v1990
    %v2239 = vpack.c.b16 %v1995, %v1991
    %v2240 = vpack.c.b16 %v2000, %v1996
    %v2241 = vpack.c.b16 %v2001, %v1997
    %v2242 = vpack.c.b16 %v2002, %v1998
    %v2243 = vpack.c.b16 %v2003, %v1999
    %v2244 = vpack.c.b16 %v2008, %v2004
    %v2245 = vpack.c.b16 %v2009, %v2005
    %v2246 = vpack.c.b16 %v2010, %v2006
    %v2247 = vpack.c.b16 %v2011, %v2007
    %v2248 = vpack.c.b16 %v2016, %v2012
    %v2249 = vpack.c.b16 %v2017, %v2013
    %v2250 = vpack.c.b16 %v2018, %v2014
    %v2251 = vpack.c.b16 %v2019, %v2015
    %v2252 = vpack.c.b16 %v2024, %v2020
    %v2253 = vpack.c.b16 %v2025, %v2021
    %v2254 = vpack.c.b16 %v2026, %v2022
    %v2255 = vpack.c.b16 %v2027, %v2023
    %v2256 = vpack.c.b16 %v2032, %v2028
    %v2257 = vpack.c.b16 %v2033, %v2029
    %v2258 = vpack.c.b16 %v2034, %v2030
    %v2259 = vpack.c.b16 %v2035, %v2031
    %v2260 = vpack.c.b16 %v2040, %v2036
    %v2261 = vpack.c.b16 %v2041, %v2037
    %v2262 = vpack.c.b16 %v2042, %v2038
    %v2263 = vpack.c.b16 %v2043, %v2039
    %v2264 = vpack.c.b16 %v2048, %v2044
    %v2265 = vpack.c.b16 %v2049, %v2045
    %v2266 = vpack.c.b16 %v2050, %v2046
    %v2267 = vpack.c.b16 %v2051, %v2047
    %v2268 = vpack.c.b16 %v2056, %v2052
    %v2269 = vpack.c.b16 %v2057, %v2053
    %v2270 = vpack.c.b16 %v2058, %v2054
    %v2271 = vpack.c.b16 %v2059, %v2055
    %v2272 = vpack.c.b16 %v2064, %v2060
    %v2273 = vpack.c.b16 %v2065, %v2061
    %v2274 = vpack.c.b16 %v2066, %v2062
    %v2275 = vpack.c.b16 %v2067, %v2063
    %v2276 = vpack.c.b16 %v2072, %v2068
    %v2277 = vpack.c.b16 %v2073, %v2069
    %v2278 = vpack.c.b16 %v2074, %v2070
    %v2279 = vpack.c.b16 %v2075, %v2071
    %v2280 = vpack.c.b16 %v2080, %v2076
    %v2281 = vpack.c.b16 %v2081, %v2077
    %v2282 = vpack.c.b16 %v2082, %v2078
    %v2283 = vpack.c.b16 %v2083, %v2079
    %v2284 = vpack.c.b16 %v2088, %v2084
    %v2285 = vpack.c.b16 %v2089, %v2085
    %v2286 = vpack.c.b16 %v2090, %v2086
    %v2287 = vpack.c.b16 %v2091, %v2087
    %v2288 = vpack.c.b16 %v2096, %v2092
    %v2289 = vpack.c.b16 %v2097, %v2093
    %v2290 = vpack.c.b16 %v2098, %v2094
    %v2291 = vpack.c.b16 %v2099, %v2095
    %v2292 = vpack.c.b16 %v2104, %v2100
    %v2293 = vpack.c.b16 %v2105, %v2101
    %v2294 = vpack.c.b16 %v2106, %v2102
    %v2295 = vpack.c.b16 %v2107, %v2103
    %v2296 = vpack.c.b16 %v2112, %v2108
    %v2297 = vpack.c.b16 %v2113, %v2109
    %v2298 = vpack.c.b16 %v2114, %v2110
    %v2299 = vpack.c.b16 %v2115, %v2111
    %v2300 = vpack.c.b16 %v2120, %v2116
    %v2301 = vpack.c.b16 %v2121, %v2117
    %v2302 = vpack.c.b16 %v2122, %v2118
    %v2303 = vpack.c.b16 %v2123, %v2119
    %v2304 = vpack.c.b16 %v2128, %v2124
    %v2305 = vpack.c.b16 %v2129, %v2125
    %v2306 = vpack.c.b16 %v2130, %v2126
    %v2307 = vpack.c.b16 %v2131, %v2127
    %v2308 = vpack.c.b16 %v2136, %v2132
    %v2309 = vpack.c.b16 %v2137, %v2133
    %v2310 = vpack.c.b16 %v2138, %v2134
    %v2311 = vpack.c.b16 %v2139, %v2135
    %v2312 = vpack.c.b16 %v2144, %v2140
    %v2313 = vpack.c.b16 %v2145, %v2141
    %v2314 = vpack.c.b16 %v2146, %v2142
    %v2315 = vpack.c.b16 %v2147, %v2143
    %v2316 = vpack.c.b16 %v2152, %v2148
    %v2317 = vpack.c.b16 %v2153, %v2149
    %v2318 = vpack.c.b16 %v2154, %v2150
    %v2319 = vpack.c.b16 %v2155, %v2151
    %v2320 = vpack.c.b16 %v2160, %v2156
    %v2321 = vpack.c.b16 %v2161, %v2157
    %v2322 = vpack.c.b16 %v2162, %v2158
    %v2323 = vpack.c.b16 %v2163, %v2159
    %v2324 = vpack.c.b16 %v2168, %v2164
    %v2325 = vpack.c.b16 %v2169, %v2165
    %v2326 = vpack.c.b16 %v2170, %v2166
    %v2327 = vpack.c.b16 %v2171, %v2167
    %v2328 = vpack.c.b16 %v2176, %v2172
    %v2329 = vpack.c.b16 %v2177, %v2173
    %v2330 = vpack.c.b16 %v2178, %v2174
    %v2331 = vpack.c.b16 %v2179, %v2175
    %v2332 = vpack.c.b16 %v2184, %v2180
    %v2333 = vpack.c.b16 %v2185, %v2181
    %v2334 = vpack.c.b16 %v2186, %v2182
    %v2335 = vpack.c.b16 %v2187, %v2183
    %v2336 = vpack.c.b16 %v2192, %v2188
    %v2337 = vpack.c.b16 %v2193, %v2189
    %v2338 = vpack.c.b16 %v2194, %v2190
    %v2339 = vpack.c.b16 %v2195, %v2191
    %v2340 = vpack.c.b16 %v2200, %v2196
    %v2341 = vpack.c.b16 %v2201, %v2197
    %v2342 = vpack.c.b16 %v2202, %v2198
    %v2343 = vpack.c.b16 %v2203, %v2199
    %v2344 = vpack.c.b16 %v2208, %v2204
    %v2345 = vpack.c.b16 %v2209, %v2205
    %v2346 = vpack.c.b16 %v2210, %v2206
    %v2347 = vpack.c.b16 %v2211, %v2207
    %v2348 = vpack.c.b16 %v2216, %v2212
    %v2349 = vpack.c.b16 %v2217, %v2213
    %v2350 = vpack.c.b16 %v2218, %v2214
    %v2351 = vpack.c.b16 %v2219, %v2215
    %v2352 = vpack.c.b16 %v2224, %v2220
    %v2353 = vpack.c.b16 %v2225, %v2221
    %v2354 = vpack.c.b16 %v2226, %v2222
    %v2355 = vpack.c.b16 %v2227, %v2223
    %2484 = vmatpush.bf16.msra.mxu0 %v2256
    %2485 = vmatpush.bf16.msra.mxu0 %v2252
    %2486 = vmatpush.bf16.msra.mxu0 %v2248
    %2487 = vmatpush.bf16.msra.mxu0 %v2244
    %2488 = vmatpush.bf16.msra.mxu0 %v2240
    %2489 = vmatpush.bf16.msra.mxu0 %v2236
    %2490 = vmatpush.bf16.msra.mxu0 %v2232
    %2491 = vmatpush.bf16.msra.mxu0 %v2228
    %2492 = vmatmul.bf16.gmra.mxu0 %v1702
    %v2493 = vpop.f32.mrf.mxu0
    %v2494 = vadd.f32 %v1836, %v2493
    %v2495 = vpop.f32.mrf.mxu0
    %v2496 = vadd.f32 %v1836, %v2495
    %2497 = vdwg.mxu0
    %2498 = vmatpush.bf16.msra.mxu0 %v2288
    %2499 = vmatpush.bf16.msra.mxu0 %v2284
    %2500 = vmatpush.bf16.msra.mxu0 %v2280
    %2501 = vmatpush.bf16.msra.mxu0 %v2276
    %2502 = vmatpush.bf16.msra.mxu0 %v2272
    %2503 = vmatpush.bf16.msra.mxu0 %v2268
    %2504 = vmatpush.bf16.msra.mxu0 %v2264
    %2505 = vmatpush.bf16.msra.mxu0 %v2260
    %2506 = vmatmul.bf16.gmra.mxu0 %v1703
    %v2507 = vpop.f32.mrf.mxu0
    %v2508 = vadd.f32 %v2494, %v2507
    %v2509 = vpop.f32.mrf.mxu0
    %v2510 = vadd.f32 %v2496, %v2509
    %2511 = vdwg.mxu0
    %2512 = vmatpush.bf16.msra.mxu0 %v2320
    %2513 = vmatpush.bf16.msra.mxu0 %v2316
    %2514 = vmatpush.bf16.msra.mxu0 %v2312
    %2515 = vmatpush.bf16.msra.mxu0 %v2308
    %2516 = vmatpush.bf16.msra.mxu0 %v2304
    %2517 = vmatpush.bf16.msra.mxu0 %v2300
    %2518 = vmatpush.bf16.msra.mxu0 %v2296
    %2519 = vmatpush.bf16.msra.mxu0 %v2292
    %2520 = vmatmul.bf16.gmra.mxu0 %v1704
    %v2521 = vpop.f32.mrf.mxu0
    %v2522 = vadd.f32 %v2508, %v2521
    %v2523 = vpop.f32.mrf.mxu0
    %v2524 = vadd.f32 %v2510, %v2523
    %2525 = vdwg.mxu0
    %2526 = vmatpush.bf16.msra.mxu0 %v2352
    %2527 = vmatpush.bf16.msra.mxu0 %v2348
    %2528 = vmatpush.bf16.msra.mxu0 %v2344
    %2529 = vmatpush.bf16.msra.mxu0 %v2340
    %2530 = vmatpush.bf16.msra.mxu0 %v2336
    %2531 = vmatpush.bf16.msra.mxu0 %v2332
    %2532 = vmatpush.bf16.msra.mxu0 %v2328
    %2533 = vmatpush.bf16.msra.mxu0 %v2324
    %2534 = vmatmul.bf16.gmra.mxu0 %v1705
    %v2535 = vpop.f32.mrf.mxu0
    %v2536 = vadd.f32 %v2522, %v2535
    %v2537 = vpop.f32.mrf.mxu0
    %v2538 = vadd.f32 %v2524, %v2537
    %2539 = vdwg.mxu0
    %2540 = vmatpush.bf16.msra.mxu0 %v2257
    %2541 = vmatpush.bf16.msra.mxu0 %v2253
    %2542 = vmatpush.bf16.msra.mxu0 %v2249
    %2543 = vmatpush.bf16.msra.mxu0 %v2245
    %2544 = vmatpush.bf16.msra.mxu0 %v2241
    %2545 = vmatpush.bf16.msra.mxu0 %v2237
    %2546 = vmatpush.bf16.msra.mxu0 %v2233
    %2547 = vmatpush.bf16.msra.mxu0 %v2229
    %2548 = vmatmul.bf16.gmra.mxu0 %v1702
    %v2549 = vpop.f32.mrf.mxu0
    %v2550 = vadd.f32 %v1837, %v2549
    %v2551 = vpop.f32.mrf.mxu0
    %v2552 = vadd.f32 %v1837, %v2551
    %2553 = vdwg.mxu0
    %2554 = vmatpush.bf16.msra.mxu0 %v2289
    %2555 = vmatpush.bf16.msra.mxu0 %v2285
    %2556 = vmatpush.bf16.msra.mxu0 %v2281
    %2557 = vmatpush.bf16.msra.mxu0 %v2277
    %2558 = vmatpush.bf16.msra.mxu0 %v2273
    %2559 = vmatpush.bf16.msra.mxu0 %v2269
    %2560 = vmatpush.bf16.msra.mxu0 %v2265
    %2561 = vmatpush.bf16.msra.mxu0 %v2261
    %2562 = vmatmul.bf16.gmra.mxu0 %v1703
    %v2563 = vpop.f32.mrf.mxu0
    %v2564 = vadd.f32 %v2550, %v2563
    %v2565 = vpop.f32.mrf.mxu0
    %v2566 = vadd.f32 %v2552, %v2565
    %2567 = vdwg.mxu0
    %2568 = vmatpush.bf16.msra.mxu0 %v2321
    %2569 = vmatpush.bf16.msra.mxu0 %v2317
    %2570 = vmatpush.bf16.msra.mxu0 %v2313
    %2571 = vmatpush.bf16.msra.mxu0 %v2309
    %2572 = vmatpush.bf16.msra.mxu0 %v2305
    %2573 = vmatpush.bf16.msra.mxu0 %v2301
    %2574 = vmatpush.bf16.msra.mxu0 %v2297
    %2575 = vmatpush.bf16.msra.mxu0 %v2293
    %2576 = vmatmul.bf16.gmra.mxu0 %v1704
    %v2577 = vpop.f32.mrf.mxu0
    %v2578 = vadd.f32 %v2564, %v2577
    %v2579 = vpop.f32.mrf.mxu0
    %v2580 = vadd.f32 %v2566, %v2579
    %2581 = vdwg.mxu0
    %2582 = vmatpush.bf16.msra.mxu0 %v2353
    %2583 = vmatpush.bf16.msra.mxu0 %v2349
    %2584 = vmatpush.bf16.msra.mxu0 %v2345
    %2585 = vmatpush.bf16.msra.mxu0 %v2341
    %2586 = vmatpush.bf16.msra.mxu0 %v2337
    %2587 = vmatpush.bf16.msra.mxu0 %v2333
    %2588 = vmatpush.bf16.msra.mxu0 %v2329
    %2589 = vmatpush.bf16.msra.mxu0 %v2325
    %2590 = vmatmul.bf16.gmra.mxu0 %v1705
    %v2591 = vpop.f32.mrf.mxu0
    %v2592 = vadd.f32 %v2578, %v2591
    %v2593 = vpop.f32.mrf.mxu0
    %v2594 = vadd.f32 %v2580, %v2593
    %2595 = vdwg.mxu0
    %2596 = vmatpush.bf16.msra.mxu0 %v2258
    %2597 = vmatpush.bf16.msra.mxu0 %v2254
    %2598 = vmatpush.bf16.msra.mxu0 %v2250
    %2599 = vmatpush.bf16.msra.mxu0 %v2246
    %2600 = vmatpush.bf16.msra.mxu0 %v2242
    %2601 = vmatpush.bf16.msra.mxu0 %v2238
    %2602 = vmatpush.bf16.msra.mxu0 %v2234
    %2603 = vmatpush.bf16.msra.mxu0 %v2230
    %2604 = vmatmul.bf16.gmra.mxu0 %v1702
    %v2605 = vpop.f32.mrf.mxu0
    %v2606 = vadd.f32 %v1838, %v2605
    %v2607 = vpop.f32.mrf.mxu0
    %v2608 = vadd.f32 %v1838, %v2607
    %2609 = vdwg.mxu0
    %2610 = vmatpush.bf16.msra.mxu0 %v2290
    %2611 = vmatpush.bf16.msra.mxu0 %v2286
    %2612 = vmatpush.bf16.msra.mxu0 %v2282
    %2613 = vmatpush.bf16.msra.mxu0 %v2278
    %2614 = vmatpush.bf16.msra.mxu0 %v2274
    %2615 = vmatpush.bf16.msra.mxu0 %v2270
    %2616 = vmatpush.bf16.msra.mxu0 %v2266
    %2617 = vmatpush.bf16.msra.mxu0 %v2262
    %2618 = vmatmul.bf16.gmra.mxu0 %v1703
    %v2619 = vpop.f32.mrf.mxu0
    %v2620 = vadd.f32 %v2606, %v2619
    %v2621 = vpop.f32.mrf.mxu0
    %v2622 = vadd.f32 %v2608, %v2621
    %2623 = vdwg.mxu0
    %2624 = vmatpush.bf16.msra.mxu0 %v2322
    %2625 = vmatpush.bf16.msra.mxu0 %v2318
    %2626 = vmatpush.bf16.msra.mxu0 %v2314
    %2627 = vmatpush.bf16.msra.mxu0 %v2310
    %2628 = vmatpush.bf16.msra.mxu0 %v2306
    %2629 = vmatpush.bf16.msra.mxu0 %v2302
    %2630 = vmatpush.bf16.msra.mxu0 %v2298
    %2631 = vmatpush.bf16.msra.mxu0 %v2294
    %2632 = vmatmul.bf16.gmra.mxu0 %v1704
    %v2633 = vpop.f32.mrf.mxu0
    %v2634 = vadd.f32 %v2620, %v2633
    %v2635 = vpop.f32.mrf.mxu0
    %v2636 = vadd.f32 %v2622, %v2635
    %2637 = vdwg.mxu0
    %2638 = vmatpush.bf16.msra.mxu0 %v2354
    %2639 = vmatpush.bf16.msra.mxu0 %v2350
    %2640 = vmatpush.bf16.msra.mxu0 %v2346
    %2641 = vmatpush.bf16.msra.mxu0 %v2342
    %2642 = vmatpush.bf16.msra.mxu0 %v2338
    %2643 = vmatpush.bf16.msra.mxu0 %v2334
    %2644 = vmatpush.bf16.msra.mxu0 %v2330
    %2645 = vmatpush.bf16.msra.mxu0 %v2326
    %2646 = vmatmul.bf16.gmra.mxu0 %v1705
    %v2647 = vpop.f32.mrf.mxu0
    %v2648 = vadd.f32 %v2634, %v2647
    %v2649 = vpop.f32.mrf.mxu0
    %v2650 = vadd.f32 %v2636, %v2649
    %2651 = vdwg.mxu0
    %2652 = vmatpush.bf16.msra.mxu0 %v2259
    %2653 = vmatpush.bf16.msra.mxu0 %v2255
    %2654 = vmatpush.bf16.msra.mxu0 %v2251
    %2655 = vmatpush.bf16.msra.mxu0 %v2247
    %2656 = vmatpush.bf16.msra.mxu0 %v2243
    %2657 = vmatpush.bf16.msra.mxu0 %v2239
    %2658 = vmatpush.bf16.msra.mxu0 %v2235
    %2659 = vmatpush.bf16.msra.mxu0 %v2231
    %2660 = vmatmul.bf16.gmra.mxu0 %v1702
    %v2661 = vpop.f32.mrf.mxu0
    %v2662 = vadd.f32 %v1839, %v2661
    %v2663 = vpop.f32.mrf.mxu0
    %v2664 = vadd.f32 %v1839, %v2663
    %2665 = vdwg.mxu0
    %2666 = vmatpush.bf16.msra.mxu0 %v2291
    %2667 = vmatpush.bf16.msra.mxu0 %v2287
    %2668 = vmatpush.bf16.msra.mxu0 %v2283
    %2669 = vmatpush.bf16.msra.mxu0 %v2279
    %2670 = vmatpush.bf16.msra.mxu0 %v2275
    %2671 = vmatpush.bf16.msra.mxu0 %v2271
    %2672 = vmatpush.bf16.msra.mxu0 %v2267
    %2673 = vmatpush.bf16.msra.mxu0 %v2263
    %2674 = vmatmul.bf16.gmra.mxu0 %v1703
    %v2675 = vpop.f32.mrf.mxu0
    %v2676 = vadd.f32 %v2662, %v2675
    %v2677 = vpop.f32.mrf.mxu0
    %v2678 = vadd.f32 %v2664, %v2677
    %2679 = vdwg.mxu0
    %2680 = vmatpush.bf16.msra.mxu0 %v2323
    %2681 = vmatpush.bf16.msra.mxu0 %v2319
    %2682 = vmatpush.bf16.msra.mxu0 %v2315
    %2683 = vmatpush.bf16.msra.mxu0 %v2311
    %2684 = vmatpush.bf16.msra.mxu0 %v2307
    %2685 = vmatpush.bf16.msra.mxu0 %v2303
    %2686 = vmatpush.bf16.msra.mxu0 %v2299
    %2687 = vmatpush.bf16.msra.mxu0 %v2295
    %2688 = vmatmul.bf16.gmra.mxu0 %v1704
    %v2689 = vpop.f32.mrf.mxu0
    %v2690 = vadd.f32 %v2676, %v2689
    %v2691 = vpop.f32.mrf.mxu0
    %v2692 = vadd.f32 %v2678, %v2691
    %2693 = vdwg.mxu0
    %2694 = vmatpush.bf16.msra.mxu0 %v2355
    %2695 = vmatpush.bf16.msra.mxu0 %v2351
    %2696 = vmatpush.bf16.msra.mxu0 %v2347
    %2697 = vmatpush.bf16.msra.mxu0 %v2343
    %2698 = vmatpush.bf16.msra.mxu0 %v2339
    %2699 = vmatpush.bf16.msra.mxu0 %v2335
    %2700 = vmatpush.bf16.msra.mxu0 %v2331
    %2701 = vmatpush.bf16.msra.mxu0 %v2327
    %2702 = vmatmul.bf16.gmra.mxu0 %v1705
    %v2703 = vpop.f32.mrf.mxu0
    %v2704 = vadd.f32 %v2690, %v2703
    %v2705 = vpop.f32.mrf.mxu0
    %v2706 = vadd.f32 %v2692, %v2705
    %2707 = vdwg.mxu0
    %2708 = vst [vmem:[#allocation16] sm:$0xff] %v2536
    %2709 = vst [vmem:[#allocation16 + $0x8] sm:$0xff] %v2592
    %2710 = vst [vmem:[#allocation16 + $0x10] sm:$0xff] %v2648
    %2711 = vst [vmem:[#allocation16 + $0x18] sm:$0xff] %v2704
    %2712 = vst [vmem:[#allocation16 + $0x20] sm:$0xff] %v2538
    %2713 = vst [vmem:[#allocation16 + $0x28] sm:$0xff] %v2594
    %2714 = vst [vmem:[#allocation16 + $0x30] sm:$0xff] %v2650
    %2715 = vst [vmem:[#allocation16 + $0x38] sm:$0xff] %v2706
    %v2716 = vpack.c.bf16 %v684, %v676
    %v2717 = vpack.c.bf16 %v685, %v677
    %v2718 = vpack.c.bf16 %v686, %v678
    %v2719 = vpack.c.bf16 %v687, %v679
    %v2720 = vld [vmem:[#allocation13] sm:$0xff]
    %v2721 = vld [vmem:[#allocation13 + $0x8] sm:$0xff]
    %v2722 = vld [vmem:[#allocation13 + $0x10] sm:$0xff]
    %v2723 = vld [vmem:[#allocation13 + $0x18] sm:$0xff]
    %v2724 = vld [vmem:[#allocation13 + $0x20] sm:$0xff]
    %v2725 = vld [vmem:[#allocation13 + $0x28] sm:$0xff]
    %v2726 = vld [vmem:[#allocation13 + $0x30] sm:$0xff]
    %v2727 = vld [vmem:[#allocation13 + $0x38] sm:$0xff]
    %v2728 = vld [vmem:[#allocation13 + $0x40] sm:$0xff]
    %v2729 = vld [vmem:[#allocation13 + $0x48] sm:$0xff]
    %v2730 = vld [vmem:[#allocation13 + $0x50] sm:$0xff]
    %v2731 = vld [vmem:[#allocation13 + $0x58] sm:$0xff]
    %v2732 = vld [vmem:[#allocation13 + $0x60] sm:$0xff]
    %v2733 = vld [vmem:[#allocation13 + $0x68] sm:$0xff]
    %v2734 = vld [vmem:[#allocation13 + $0x70] sm:$0xff]
    %v2735 = vld [vmem:[#allocation13 + $0x78] sm:$0xff]
    %v2736 = vld [vmem:[#allocation13 + $0x80] sm:$0xff]
    %v2737 = vld [vmem:[#allocation13 + $0x88] sm:$0xff]
    %v2738 = vld [vmem:[#allocation13 + $0x90] sm:$0xff]
    %v2739 = vld [vmem:[#allocation13 + $0x98] sm:$0xff]
    %v2740 = vld [vmem:[#allocation13 + $0xa0] sm:$0xff]
    %v2741 = vld [vmem:[#allocation13 + $0xa8] sm:$0xff]
    %v2742 = vld [vmem:[#allocation13 + $0xb0] sm:$0xff]
    %v2743 = vld [vmem:[#allocation13 + $0xb8] sm:$0xff]
    %v2744 = vld [vmem:[#allocation13 + $0xc0] sm:$0xff]
    %v2745 = vld [vmem:[#allocation13 + $0xc8] sm:$0xff]
    %v2746 = vld [vmem:[#allocation13 + $0xd0] sm:$0xff]
    %v2747 = vld [vmem:[#allocation13 + $0xd8] sm:$0xff]
    %v2748 = vld [vmem:[#allocation13 + $0xe0] sm:$0xff]
    %v2749 = vld [vmem:[#allocation13 + $0xe8] sm:$0xff]
    %v2750 = vld [vmem:[#allocation13 + $0xf0] sm:$0xff]
    %v2751 = vld [vmem:[#allocation13 + $0xf8] sm:$0xff]
    %v2752 = vld [vmem:[#allocation13 + $0x100] sm:$0xff]
    %v2753 = vld [vmem:[#allocation13 + $0x108] sm:$0xff]
    %v2754 = vld [vmem:[#allocation13 + $0x110] sm:$0xff]
    %v2755 = vld [vmem:[#allocation13 + $0x118] sm:$0xff]
    %v2756 = vld [vmem:[#allocation13 + $0x120] sm:$0xff]
    %v2757 = vld [vmem:[#allocation13 + $0x128] sm:$0xff]
    %v2758 = vld [vmem:[#allocation13 + $0x130] sm:$0xff]
    %v2759 = vld [vmem:[#allocation13 + $0x138] sm:$0xff]
    %v2760 = vld [vmem:[#allocation13 + $0x140] sm:$0xff]
    %v2761 = vld [vmem:[#allocation13 + $0x148] sm:$0xff]
    %v2762 = vld [vmem:[#allocation13 + $0x150] sm:$0xff]
    %v2763 = vld [vmem:[#allocation13 + $0x158] sm:$0xff]
    %v2764 = vld [vmem:[#allocation13 + $0x160] sm:$0xff]
    %v2765 = vld [vmem:[#allocation13 + $0x168] sm:$0xff]
    %v2766 = vld [vmem:[#allocation13 + $0x170] sm:$0xff]
    %v2767 = vld [vmem:[#allocation13 + $0x178] sm:$0xff]
    %v2768 = vld [vmem:[#allocation13 + $0x180] sm:$0xff]
    %v2769 = vld [vmem:[#allocation13 + $0x188] sm:$0xff]
    %v2770 = vld [vmem:[#allocation13 + $0x190] sm:$0xff]
    %v2771 = vld [vmem:[#allocation13 + $0x198] sm:$0xff]
    %v2772 = vld [vmem:[#allocation13 + $0x1a0] sm:$0xff]
    %v2773 = vld [vmem:[#allocation13 + $0x1a8] sm:$0xff]
    %v2774 = vld [vmem:[#allocation13 + $0x1b0] sm:$0xff]
    %v2775 = vld [vmem:[#allocation13 + $0x1b8] sm:$0xff]
    %v2776 = vld [vmem:[#allocation13 + $0x1c0] sm:$0xff]
    %v2777 = vld [vmem:[#allocation13 + $0x1c8] sm:$0xff]
    %v2778 = vld [vmem:[#allocation13 + $0x1d0] sm:$0xff]
    %v2779 = vld [vmem:[#allocation13 + $0x1d8] sm:$0xff]
    %v2780 = vld [vmem:[#allocation13 + $0x1e0] sm:$0xff]
    %v2781 = vld [vmem:[#allocation13 + $0x1e8] sm:$0xff]
    %v2782 = vld [vmem:[#allocation13 + $0x1f0] sm:$0xff]
    %v2783 = vld [vmem:[#allocation13 + $0x1f8] sm:$0xff]
    %v2784 = vld [vmem:[#allocation13 + $0x200] sm:$0xff]
    %v2785 = vld [vmem:[#allocation13 + $0x208] sm:$0xff]
    %v2786 = vld [vmem:[#allocation13 + $0x210] sm:$0xff]
    %v2787 = vld [vmem:[#allocation13 + $0x218] sm:$0xff]
    %v2788 = vld [vmem:[#allocation13 + $0x220] sm:$0xff]
    %v2789 = vld [vmem:[#allocation13 + $0x228] sm:$0xff]
    %v2790 = vld [vmem:[#allocation13 + $0x230] sm:$0xff]
    %v2791 = vld [vmem:[#allocation13 + $0x238] sm:$0xff]
    %v2792 = vld [vmem:[#allocation13 + $0x240] sm:$0xff]
    %v2793 = vld [vmem:[#allocation13 + $0x248] sm:$0xff]
    %v2794 = vld [vmem:[#allocation13 + $0x250] sm:$0xff]
    %v2795 = vld [vmem:[#allocation13 + $0x258] sm:$0xff]
    %v2796 = vld [vmem:[#allocation13 + $0x260] sm:$0xff]
    %v2797 = vld [vmem:[#allocation13 + $0x268] sm:$0xff]
    %v2798 = vld [vmem:[#allocation13 + $0x270] sm:$0xff]
    %v2799 = vld [vmem:[#allocation13 + $0x278] sm:$0xff]
    %v2800 = vld [vmem:[#allocation13 + $0x280] sm:$0xff]
    %v2801 = vld [vmem:[#allocation13 + $0x288] sm:$0xff]
    %v2802 = vld [vmem:[#allocation13 + $0x290] sm:$0xff]
    %v2803 = vld [vmem:[#allocation13 + $0x298] sm:$0xff]
    %v2804 = vld [vmem:[#allocation13 + $0x2a0] sm:$0xff]
    %v2805 = vld [vmem:[#allocation13 + $0x2a8] sm:$0xff]
    %v2806 = vld [vmem:[#allocation13 + $0x2b0] sm:$0xff]
    %v2807 = vld [vmem:[#allocation13 + $0x2b8] sm:$0xff]
    %v2808 = vld [vmem:[#allocation13 + $0x2c0] sm:$0xff]
    %v2809 = vld [vmem:[#allocation13 + $0x2c8] sm:$0xff]
    %v2810 = vld [vmem:[#allocation13 + $0x2d0] sm:$0xff]
    %v2811 = vld [vmem:[#allocation13 + $0x2d8] sm:$0xff]
    %v2812 = vld [vmem:[#allocation13 + $0x2e0] sm:$0xff]
    %v2813 = vld [vmem:[#allocation13 + $0x2e8] sm:$0xff]
    %v2814 = vld [vmem:[#allocation13 + $0x2f0] sm:$0xff]
    %v2815 = vld [vmem:[#allocation13 + $0x2f8] sm:$0xff]
    %v2816 = vld [vmem:[#allocation13 + $0x300] sm:$0xff]
    %v2817 = vld [vmem:[#allocation13 + $0x308] sm:$0xff]
    %v2818 = vld [vmem:[#allocation13 + $0x310] sm:$0xff]
    %v2819 = vld [vmem:[#allocation13 + $0x318] sm:$0xff]
    %v2820 = vld [vmem:[#allocation13 + $0x320] sm:$0xff]
    %v2821 = vld [vmem:[#allocation13 + $0x328] sm:$0xff]
    %v2822 = vld [vmem:[#allocation13 + $0x330] sm:$0xff]
    %v2823 = vld [vmem:[#allocation13 + $0x338] sm:$0xff]
    %v2824 = vld [vmem:[#allocation13 + $0x340] sm:$0xff]
    %v2825 = vld [vmem:[#allocation13 + $0x348] sm:$0xff]
    %v2826 = vld [vmem:[#allocation13 + $0x350] sm:$0xff]
    %v2827 = vld [vmem:[#allocation13 + $0x358] sm:$0xff]
    %v2828 = vld [vmem:[#allocation13 + $0x360] sm:$0xff]
    %v2829 = vld [vmem:[#allocation13 + $0x368] sm:$0xff]
    %v2830 = vld [vmem:[#allocation13 + $0x370] sm:$0xff]
    %v2831 = vld [vmem:[#allocation13 + $0x378] sm:$0xff]
    %v2832 = vld [vmem:[#allocation13 + $0x380] sm:$0xff]
    %v2833 = vld [vmem:[#allocation13 + $0x388] sm:$0xff]
    %v2834 = vld [vmem:[#allocation13 + $0x390] sm:$0xff]
    %v2835 = vld [vmem:[#allocation13 + $0x398] sm:$0xff]
    %v2836 = vld [vmem:[#allocation13 + $0x3a0] sm:$0xff]
    %v2837 = vld [vmem:[#allocation13 + $0x3a8] sm:$0xff]
    %v2838 = vld [vmem:[#allocation13 + $0x3b0] sm:$0xff]
    %v2839 = vld [vmem:[#allocation13 + $0x3b8] sm:$0xff]
    %v2840 = vld [vmem:[#allocation13 + $0x3c0] sm:$0xff]
    %v2841 = vld [vmem:[#allocation13 + $0x3c8] sm:$0xff]
    %v2842 = vld [vmem:[#allocation13 + $0x3d0] sm:$0xff]
    %v2843 = vld [vmem:[#allocation13 + $0x3d8] sm:$0xff]
    %v2844 = vld [vmem:[#allocation13 + $0x3e0] sm:$0xff]
    %v2845 = vld [vmem:[#allocation13 + $0x3e8] sm:$0xff]
    %v2846 = vld [vmem:[#allocation13 + $0x3f0] sm:$0xff]
    %v2847 = vld [vmem:[#allocation13 + $0x3f8] sm:$0xff]
    %v2848 = vld [vmem:[#allocation14] sm:$0xf]
    %v2850 = vperm.slane %v2848, 0
    %v2851 = vperm.slane %v2848, 1
    %v2852 = vperm.slane %v2848, 2
    %v2853 = vperm.slane %v2848, 3
    %v2986 = vunpack.c.l.b16 %v2720
    %v2987 = vunpack.c.h.b16 %v2720
    %v2988 = vunpack.c.l.b16 %v2721
    %v2989 = vunpack.c.h.b16 %v2721
    %v2990 = vunpack.c.l.b16 %v2722
    %v2991 = vunpack.c.h.b16 %v2722
    %v2992 = vunpack.c.l.b16 %v2723
    %v2993 = vunpack.c.h.b16 %v2723
    %v2994 = vunpack.c.l.b16 %v2724
    %v2995 = vunpack.c.h.b16 %v2724
    %v2996 = vunpack.c.l.b16 %v2725
    %v2997 = vunpack.c.h.b16 %v2725
    %v2998 = vunpack.c.l.b16 %v2726
    %v2999 = vunpack.c.h.b16 %v2726
    %v3000 = vunpack.c.l.b16 %v2727
    %v3001 = vunpack.c.h.b16 %v2727
    %v3002 = vunpack.c.l.b16 %v2728
    %v3003 = vunpack.c.h.b16 %v2728
    %v3004 = vunpack.c.l.b16 %v2729
    %v3005 = vunpack.c.h.b16 %v2729
    %v3006 = vunpack.c.l.b16 %v2730
    %v3007 = vunpack.c.h.b16 %v2730
    %v3008 = vunpack.c.l.b16 %v2731
    %v3009 = vunpack.c.h.b16 %v2731
    %v3010 = vunpack.c.l.b16 %v2732
    %v3011 = vunpack.c.h.b16 %v2732
    %v3012 = vunpack.c.l.b16 %v2733
    %v3013 = vunpack.c.h.b16 %v2733
    %v3014 = vunpack.c.l.b16 %v2734
    %v3015 = vunpack.c.h.b16 %v2734
    %v3016 = vunpack.c.l.b16 %v2735
    %v3017 = vunpack.c.h.b16 %v2735
    %v3018 = vunpack.c.l.b16 %v2736
    %v3019 = vunpack.c.h.b16 %v2736
    %v3020 = vunpack.c.l.b16 %v2737
    %v3021 = vunpack.c.h.b16 %v2737
    %v3022 = vunpack.c.l.b16 %v2738
    %v3023 = vunpack.c.h.b16 %v2738
    %v3024 = vunpack.c.l.b16 %v2739
    %v3025 = vunpack.c.h.b16 %v2739
    %v3026 = vunpack.c.l.b16 %v2740
    %v3027 = vunpack.c.h.b16 %v2740
    %v3028 = vunpack.c.l.b16 %v2741
    %v3029 = vunpack.c.h.b16 %v2741
    %v3030 = vunpack.c.l.b16 %v2742
    %v3031 = vunpack.c.h.b16 %v2742
    %v3032 = vunpack.c.l.b16 %v2743
    %v3033 = vunpack.c.h.b16 %v2743
    %v3034 = vunpack.c.l.b16 %v2744
    %v3035 = vunpack.c.h.b16 %v2744
    %v3036 = vunpack.c.l.b16 %v2745
    %v3037 = vunpack.c.h.b16 %v2745
    %v3038 = vunpack.c.l.b16 %v2746
    %v3039 = vunpack.c.h.b16 %v2746
    %v3040 = vunpack.c.l.b16 %v2747
    %v3041 = vunpack.c.h.b16 %v2747
    %v3042 = vunpack.c.l.b16 %v2748
    %v3043 = vunpack.c.h.b16 %v2748
    %v3044 = vunpack.c.l.b16 %v2749
    %v3045 = vunpack.c.h.b16 %v2749
    %v3046 = vunpack.c.l.b16 %v2750
    %v3047 = vunpack.c.h.b16 %v2750
    %v3048 = vunpack.c.l.b16 %v2751
    %v3049 = vunpack.c.h.b16 %v2751
    %v3050 = vunpack.c.l.b16 %v2752
    %v3051 = vunpack.c.h.b16 %v2752
    %v3052 = vunpack.c.l.b16 %v2753
    %v3053 = vunpack.c.h.b16 %v2753
    %v3054 = vunpack.c.l.b16 %v2754
    %v3055 = vunpack.c.h.b16 %v2754
    %v3056 = vunpack.c.l.b16 %v2755
    %v3057 = vunpack.c.h.b16 %v2755
    %v3058 = vunpack.c.l.b16 %v2756
    %v3059 = vunpack.c.h.b16 %v2756
    %v3060 = vunpack.c.l.b16 %v2757
    %v3061 = vunpack.c.h.b16 %v2757
    %v3062 = vunpack.c.l.b16 %v2758
    %v3063 = vunpack.c.h.b16 %v2758
    %v3064 = vunpack.c.l.b16 %v2759
    %v3065 = vunpack.c.h.b16 %v2759
    %v3066 = vunpack.c.l.b16 %v2760
    %v3067 = vunpack.c.h.b16 %v2760
    %v3068 = vunpack.c.l.b16 %v2761
    %v3069 = vunpack.c.h.b16 %v2761
    %v3070 = vunpack.c.l.b16 %v2762
    %v3071 = vunpack.c.h.b16 %v2762
    %v3072 = vunpack.c.l.b16 %v2763
    %v3073 = vunpack.c.h.b16 %v2763
    %v3074 = vunpack.c.l.b16 %v2764
    %v3075 = vunpack.c.h.b16 %v2764
    %v3076 = vunpack.c.l.b16 %v2765
    %v3077 = vunpack.c.h.b16 %v2765
    %v3078 = vunpack.c.l.b16 %v2766
    %v3079 = vunpack.c.h.b16 %v2766
    %v3080 = vunpack.c.l.b16 %v2767
    %v3081 = vunpack.c.h.b16 %v2767
    %v3082 = vunpack.c.l.b16 %v2768
    %v3083 = vunpack.c.h.b16 %v2768
    %v3084 = vunpack.c.l.b16 %v2769
    %v3085 = vunpack.c.h.b16 %v2769
    %v3086 = vunpack.c.l.b16 %v2770
    %v3087 = vunpack.c.h.b16 %v2770
    %v3088 = vunpack.c.l.b16 %v2771
    %v3089 = vunpack.c.h.b16 %v2771
    %v3090 = vunpack.c.l.b16 %v2772
    %v3091 = vunpack.c.h.b16 %v2772
    %v3092 = vunpack.c.l.b16 %v2773
    %v3093 = vunpack.c.h.b16 %v2773
    %v3094 = vunpack.c.l.b16 %v2774
    %v3095 = vunpack.c.h.b16 %v2774
    %v3096 = vunpack.c.l.b16 %v2775
    %v3097 = vunpack.c.h.b16 %v2775
    %v3098 = vunpack.c.l.b16 %v2776
    %v3099 = vunpack.c.h.b16 %v2776
    %v3100 = vunpack.c.l.b16 %v2777
    %v3101 = vunpack.c.h.b16 %v2777
    %v3102 = vunpack.c.l.b16 %v2778
    %v3103 = vunpack.c.h.b16 %v2778
    %v3104 = vunpack.c.l.b16 %v2779
    %v3105 = vunpack.c.h.b16 %v2779
    %v3106 = vunpack.c.l.b16 %v2780
    %v3107 = vunpack.c.h.b16 %v2780
    %v3108 = vunpack.c.l.b16 %v2781
    %v3109 = vunpack.c.h.b16 %v2781
    %v3110 = vunpack.c.l.b16 %v2782
    %v3111 = vunpack.c.h.b16 %v2782
    %v3112 = vunpack.c.l.b16 %v2783
    %v3113 = vunpack.c.h.b16 %v2783
    %v3114 = vunpack.c.l.b16 %v2784
    %v3115 = vunpack.c.h.b16 %v2784
    %v3116 = vunpack.c.l.b16 %v2785
    %v3117 = vunpack.c.h.b16 %v2785
    %v3118 = vunpack.c.l.b16 %v2786
    %v3119 = vunpack.c.h.b16 %v2786
    %v3120 = vunpack.c.l.b16 %v2787
    %v3121 = vunpack.c.h.b16 %v2787
    %v3122 = vunpack.c.l.b16 %v2788
    %v3123 = vunpack.c.h.b16 %v2788
    %v3124 = vunpack.c.l.b16 %v2789
    %v3125 = vunpack.c.h.b16 %v2789
    %v3126 = vunpack.c.l.b16 %v2790
    %v3127 = vunpack.c.h.b16 %v2790
    %v3128 = vunpack.c.l.b16 %v2791
    %v3129 = vunpack.c.h.b16 %v2791
    %v3130 = vunpack.c.l.b16 %v2792
    %v3131 = vunpack.c.h.b16 %v2792
    %v3132 = vunpack.c.l.b16 %v2793
    %v3133 = vunpack.c.h.b16 %v2793
    %v3134 = vunpack.c.l.b16 %v2794
    %v3135 = vunpack.c.h.b16 %v2794
    %v3136 = vunpack.c.l.b16 %v2795
    %v3137 = vunpack.c.h.b16 %v2795
    %v3138 = vunpack.c.l.b16 %v2796
    %v3139 = vunpack.c.h.b16 %v2796
    %v3140 = vunpack.c.l.b16 %v2797
    %v3141 = vunpack.c.h.b16 %v2797
    %v3142 = vunpack.c.l.b16 %v2798
    %v3143 = vunpack.c.h.b16 %v2798
    %v3144 = vunpack.c.l.b16 %v2799
    %v3145 = vunpack.c.h.b16 %v2799
    %v3146 = vunpack.c.l.b16 %v2800
    %v3147 = vunpack.c.h.b16 %v2800
    %v3148 = vunpack.c.l.b16 %v2801
    %v3149 = vunpack.c.h.b16 %v2801
    %v3150 = vunpack.c.l.b16 %v2802
    %v3151 = vunpack.c.h.b16 %v2802
    %v3152 = vunpack.c.l.b16 %v2803
    %v3153 = vunpack.c.h.b16 %v2803
    %v3154 = vunpack.c.l.b16 %v2804
    %v3155 = vunpack.c.h.b16 %v2804
    %v3156 = vunpack.c.l.b16 %v2805
    %v3157 = vunpack.c.h.b16 %v2805
    %v3158 = vunpack.c.l.b16 %v2806
    %v3159 = vunpack.c.h.b16 %v2806
    %v3160 = vunpack.c.l.b16 %v2807
    %v3161 = vunpack.c.h.b16 %v2807
    %v3162 = vunpack.c.l.b16 %v2808
    %v3163 = vunpack.c.h.b16 %v2808
    %v3164 = vunpack.c.l.b16 %v2809
    %v3165 = vunpack.c.h.b16 %v2809
    %v3166 = vunpack.c.l.b16 %v2810
    %v3167 = vunpack.c.h.b16 %v2810
    %v3168 = vunpack.c.l.b16 %v2811
    %v3169 = vunpack.c.h.b16 %v2811
    %v3170 = vunpack.c.l.b16 %v2812
    %v3171 = vunpack.c.h.b16 %v2812
    %v3172 = vunpack.c.l.b16 %v2813
    %v3173 = vunpack.c.h.b16 %v2813
    %v3174 = vunpack.c.l.b16 %v2814
    %v3175 = vunpack.c.h.b16 %v2814
    %v3176 = vunpack.c.l.b16 %v2815
    %v3177 = vunpack.c.h.b16 %v2815
    %v3178 = vunpack.c.l.b16 %v2816
    %v3179 = vunpack.c.h.b16 %v2816
    %v3180 = vunpack.c.l.b16 %v2817
    %v3181 = vunpack.c.h.b16 %v2817
    %v3182 = vunpack.c.l.b16 %v2818
    %v3183 = vunpack.c.h.b16 %v2818
    %v3184 = vunpack.c.l.b16 %v2819
    %v3185 = vunpack.c.h.b16 %v2819
    %v3186 = vunpack.c.l.b16 %v2820
    %v3187 = vunpack.c.h.b16 %v2820
    %v3188 = vunpack.c.l.b16 %v2821
    %v3189 = vunpack.c.h.b16 %v2821
    %v3190 = vunpack.c.l.b16 %v2822
    %v3191 = vunpack.c.h.b16 %v2822
    %v3192 = vunpack.c.l.b16 %v2823
    %v3193 = vunpack.c.h.b16 %v2823
    %v3194 = vunpack.c.l.b16 %v2824
    %v3195 = vunpack.c.h.b16 %v2824
    %v3196 = vunpack.c.l.b16 %v2825
    %v3197 = vunpack.c.h.b16 %v2825
    %v3198 = vunpack.c.l.b16 %v2826
    %v3199 = vunpack.c.h.b16 %v2826
    %v3200 = vunpack.c.l.b16 %v2827
    %v3201 = vunpack.c.h.b16 %v2827
    %v3202 = vunpack.c.l.b16 %v2828
    %v3203 = vunpack.c.h.b16 %v2828
    %v3204 = vunpack.c.l.b16 %v2829
    %v3205 = vunpack.c.h.b16 %v2829
    %v3206 = vunpack.c.l.b16 %v2830
    %v3207 = vunpack.c.h.b16 %v2830
    %v3208 = vunpack.c.l.b16 %v2831
    %v3209 = vunpack.c.h.b16 %v2831
    %v3210 = vunpack.c.l.b16 %v2832
    %v3211 = vunpack.c.h.b16 %v2832
    %v3212 = vunpack.c.l.b16 %v2833
    %v3213 = vunpack.c.h.b16 %v2833
    %v3214 = vunpack.c.l.b16 %v2834
    %v3215 = vunpack.c.h.b16 %v2834
    %v3216 = vunpack.c.l.b16 %v2835
    %v3217 = vunpack.c.h.b16 %v2835
    %v3218 = vunpack.c.l.b16 %v2836
    %v3219 = vunpack.c.h.b16 %v2836
    %v3220 = vunpack.c.l.b16 %v2837
    %v3221 = vunpack.c.h.b16 %v2837
    %v3222 = vunpack.c.l.b16 %v2838
    %v3223 = vunpack.c.h.b16 %v2838
    %v3224 = vunpack.c.l.b16 %v2839
    %v3225 = vunpack.c.h.b16 %v2839
    %v3226 = vunpack.c.l.b16 %v2840
    %v3227 = vunpack.c.h.b16 %v2840
    %v3228 = vunpack.c.l.b16 %v2841
    %v3229 = vunpack.c.h.b16 %v2841
    %v3230 = vunpack.c.l.b16 %v2842
    %v3231 = vunpack.c.h.b16 %v2842
    %v3232 = vunpack.c.l.b16 %v2843
    %v3233 = vunpack.c.h.b16 %v2843
    %v3234 = vunpack.c.l.b16 %v2844
    %v3235 = vunpack.c.h.b16 %v2844
    %v3236 = vunpack.c.l.b16 %v2845
    %v3237 = vunpack.c.h.b16 %v2845
    %v3238 = vunpack.c.l.b16 %v2846
    %v3239 = vunpack.c.h.b16 %v2846
    %v3240 = vunpack.c.l.b16 %v2847
    %v3241 = vunpack.c.h.b16 %v2847
    %v3242 = vpack.c.b16 %v2990, %v2986
    %v3243 = vpack.c.b16 %v2991, %v2987
    %v3244 = vpack.c.b16 %v2992, %v2988
    %v3245 = vpack.c.b16 %v2993, %v2989
    %v3246 = vpack.c.b16 %v2998, %v2994
    %v3247 = vpack.c.b16 %v2999, %v2995
    %v3248 = vpack.c.b16 %v3000, %v2996
    %v3249 = vpack.c.b16 %v3001, %v2997
    %v3250 = vpack.c.b16 %v3006, %v3002
    %v3251 = vpack.c.b16 %v3007, %v3003
    %v3252 = vpack.c.b16 %v3008, %v3004
    %v3253 = vpack.c.b16 %v3009, %v3005
    %v3254 = vpack.c.b16 %v3014, %v3010
    %v3255 = vpack.c.b16 %v3015, %v3011
    %v3256 = vpack.c.b16 %v3016, %v3012
    %v3257 = vpack.c.b16 %v3017, %v3013
    %v3258 = vpack.c.b16 %v3022, %v3018
    %v3259 = vpack.c.b16 %v3023, %v3019
    %v3260 = vpack.c.b16 %v3024, %v3020
    %v3261 = vpack.c.b16 %v3025, %v3021
    %v3262 = vpack.c.b16 %v3030, %v3026
    %v3263 = vpack.c.b16 %v3031, %v3027
    %v3264 = vpack.c.b16 %v3032, %v3028
    %v3265 = vpack.c.b16 %v3033, %v3029
    %v3266 = vpack.c.b16 %v3038, %v3034
    %v3267 = vpack.c.b16 %v3039, %v3035
    %v3268 = vpack.c.b16 %v3040, %v3036
    %v3269 = vpack.c.b16 %v3041, %v3037
    %v3270 = vpack.c.b16 %v3046, %v3042
    %v3271 = vpack.c.b16 %v3047, %v3043
    %v3272 = vpack.c.b16 %v3048, %v3044
    %v3273 = vpack.c.b16 %v3049, %v3045
    %v3274 = vpack.c.b16 %v3054, %v3050
    %v3275 = vpack.c.b16 %v3055, %v3051
    %v3276 = vpack.c.b16 %v3056, %v3052
    %v3277 = vpack.c.b16 %v3057, %v3053
    %v3278 = vpack.c.b16 %v3062, %v3058
    %v3279 = vpack.c.b16 %v3063, %v3059
    %v3280 = vpack.c.b16 %v3064, %v3060
    %v3281 = vpack.c.b16 %v3065, %v3061
    %v3282 = vpack.c.b16 %v3070, %v3066
    %v3283 = vpack.c.b16 %v3071, %v3067
    %v3284 = vpack.c.b16 %v3072, %v3068
    %v3285 = vpack.c.b16 %v3073, %v3069
    %v3286 = vpack.c.b16 %v3078, %v3074
    %v3287 = vpack.c.b16 %v3079, %v3075
    %v3288 = vpack.c.b16 %v3080, %v3076
    %v3289 = vpack.c.b16 %v3081, %v3077
    %v3290 = vpack.c.b16 %v3086, %v3082
    %v3291 = vpack.c.b16 %v3087, %v3083
    %v3292 = vpack.c.b16 %v3088, %v3084
    %v3293 = vpack.c.b16 %v3089, %v3085
    %v3294 = vpack.c.b16 %v3094, %v3090
    %v3295 = vpack.c.b16 %v3095, %v3091
    %v3296 = vpack.c.b16 %v3096, %v3092
    %v3297 = vpack.c.b16 %v3097, %v3093
    %v3298 = vpack.c.b16 %v3102, %v3098
    %v3299 = vpack.c.b16 %v3103, %v3099
    %v3300 = vpack.c.b16 %v3104, %v3100
    %v3301 = vpack.c.b16 %v3105, %v3101
    %v3302 = vpack.c.b16 %v3110, %v3106
    %v3303 = vpack.c.b16 %v3111, %v3107
    %v3304 = vpack.c.b16 %v3112, %v3108
    %v3305 = vpack.c.b16 %v3113, %v3109
    %v3306 = vpack.c.b16 %v3118, %v3114
    %v3307 = vpack.c.b16 %v3119, %v3115
    %v3308 = vpack.c.b16 %v3120, %v3116
    %v3309 = vpack.c.b16 %v3121, %v3117
    %v3310 = vpack.c.b16 %v3126, %v3122
    %v3311 = vpack.c.b16 %v3127, %v3123
    %v3312 = vpack.c.b16 %v3128, %v3124
    %v3313 = vpack.c.b16 %v3129, %v3125
    %v3314 = vpack.c.b16 %v3134, %v3130
    %v3315 = vpack.c.b16 %v3135, %v3131
    %v3316 = vpack.c.b16 %v3136, %v3132
    %v3317 = vpack.c.b16 %v3137, %v3133
    %v3318 = vpack.c.b16 %v3142, %v3138
    %v3319 = vpack.c.b16 %v3143, %v3139
    %v3320 = vpack.c.b16 %v3144, %v3140
    %v3321 = vpack.c.b16 %v3145, %v3141
    %v3322 = vpack.c.b16 %v3150, %v3146
    %v3323 = vpack.c.b16 %v3151, %v3147
    %v3324 = vpack.c.b16 %v3152, %v3148
    %v3325 = vpack.c.b16 %v3153, %v3149
    %v3326 = vpack.c.b16 %v3158, %v3154
    %v3327 = vpack.c.b16 %v3159, %v3155
    %v3328 = vpack.c.b16 %v3160, %v3156
    %v3329 = vpack.c.b16 %v3161, %v3157
    %v3330 = vpack.c.b16 %v3166, %v3162
    %v3331 = vpack.c.b16 %v3167, %v3163
    %v3332 = vpack.c.b16 %v3168, %v3164
    %v3333 = vpack.c.b16 %v3169, %v3165
    %v3334 = vpack.c.b16 %v3174, %v3170
    %v3335 = vpack.c.b16 %v3175, %v3171
    %v3336 = vpack.c.b16 %v3176, %v3172
    %v3337 = vpack.c.b16 %v3177, %v3173
    %v3338 = vpack.c.b16 %v3182, %v3178
    %v3339 = vpack.c.b16 %v3183, %v3179
    %v3340 = vpack.c.b16 %v3184, %v3180
    %v3341 = vpack.c.b16 %v3185, %v3181
    %v3342 = vpack.c.b16 %v3190, %v3186
    %v3343 = vpack.c.b16 %v3191, %v3187
    %v3344 = vpack.c.b16 %v3192, %v3188
    %v3345 = vpack.c.b16 %v3193, %v3189
    %v3346 = vpack.c.b16 %v3198, %v3194
    %v3347 = vpack.c.b16 %v3199, %v3195
    %v3348 = vpack.c.b16 %v3200, %v3196
    %v3349 = vpack.c.b16 %v3201, %v3197
    %v3350 = vpack.c.b16 %v3206, %v3202
    %v3351 = vpack.c.b16 %v3207, %v3203
    %v3352 = vpack.c.b16 %v3208, %v3204
    %v3353 = vpack.c.b16 %v3209, %v3205
    %v3354 = vpack.c.b16 %v3214, %v3210
    %v3355 = vpack.c.b16 %v3215, %v3211
    %v3356 = vpack.c.b16 %v3216, %v3212
    %v3357 = vpack.c.b16 %v3217, %v3213
    %v3358 = vpack.c.b16 %v3222, %v3218
    %v3359 = vpack.c.b16 %v3223, %v3219
    %v3360 = vpack.c.b16 %v3224, %v3220
    %v3361 = vpack.c.b16 %v3225, %v3221
    %v3362 = vpack.c.b16 %v3230, %v3226
    %v3363 = vpack.c.b16 %v3231, %v3227
    %v3364 = vpack.c.b16 %v3232, %v3228
    %v3365 = vpack.c.b16 %v3233, %v3229
    %v3366 = vpack.c.b16 %v3238, %v3234
    %v3367 = vpack.c.b16 %v3239, %v3235
    %v3368 = vpack.c.b16 %v3240, %v3236
    %v3369 = vpack.c.b16 %v3241, %v3237
    %3498 = vmatpush.bf16.msra.mxu0 %v3270
    %3499 = vmatpush.bf16.msra.mxu0 %v3266
    %3500 = vmatpush.bf16.msra.mxu0 %v3262
    %3501 = vmatpush.bf16.msra.mxu0 %v3258
    %3502 = vmatpush.bf16.msra.mxu0 %v3254
    %3503 = vmatpush.bf16.msra.mxu0 %v3250
    %3504 = vmatpush.bf16.msra.mxu0 %v3246
    %3505 = vmatpush.bf16.msra.mxu0 %v3242
    %3506 = vmatmul.bf16.gmra.mxu0 %v2716
    %v3507 = vpop.f32.mrf.mxu0
    %v3508 = vadd.f32 %v2850, %v3507
    %v3509 = vpop.f32.mrf.mxu0
    %v3510 = vadd.f32 %v2850, %v3509
    %3511 = vdwg.mxu0
    %3512 = vmatpush.bf16.msra.mxu0 %v3302
    %3513 = vmatpush.bf16.msra.mxu0 %v3298
    %3514 = vmatpush.bf16.msra.mxu0 %v3294
    %3515 = vmatpush.bf16.msra.mxu0 %v3290
    %3516 = vmatpush.bf16.msra.mxu0 %v3286
    %3517 = vmatpush.bf16.msra.mxu0 %v3282
    %3518 = vmatpush.bf16.msra.mxu0 %v3278
    %3519 = vmatpush.bf16.msra.mxu0 %v3274
    %3520 = vmatmul.bf16.gmra.mxu0 %v2717
    %v3521 = vpop.f32.mrf.mxu0
    %v3522 = vadd.f32 %v3508, %v3521
    %v3523 = vpop.f32.mrf.mxu0
    %v3524 = vadd.f32 %v3510, %v3523
    %3525 = vdwg.mxu0
    %3526 = vmatpush.bf16.msra.mxu0 %v3334
    %3527 = vmatpush.bf16.msra.mxu0 %v3330
    %3528 = vmatpush.bf16.msra.mxu0 %v3326
    %3529 = vmatpush.bf16.msra.mxu0 %v3322
    %3530 = vmatpush.bf16.msra.mxu0 %v3318
    %3531 = vmatpush.bf16.msra.mxu0 %v3314
    %3532 = vmatpush.bf16.msra.mxu0 %v3310
    %3533 = vmatpush.bf16.msra.mxu0 %v3306
    %3534 = vmatmul.bf16.gmra.mxu0 %v2718
    %v3535 = vpop.f32.mrf.mxu0
    %v3536 = vadd.f32 %v3522, %v3535
    %v3537 = vpop.f32.mrf.mxu0
    %v3538 = vadd.f32 %v3524, %v3537
    %3539 = vdwg.mxu0
    %3540 = vmatpush.bf16.msra.mxu0 %v3366
    %3541 = vmatpush.bf16.msra.mxu0 %v3362
    %3542 = vmatpush.bf16.msra.mxu0 %v3358
    %3543 = vmatpush.bf16.msra.mxu0 %v3354
    %3544 = vmatpush.bf16.msra.mxu0 %v3350
    %3545 = vmatpush.bf16.msra.mxu0 %v3346
    %3546 = vmatpush.bf16.msra.mxu0 %v3342
    %3547 = vmatpush.bf16.msra.mxu0 %v3338
    %3548 = vmatmul.bf16.gmra.mxu0 %v2719
    %v3549 = vpop.f32.mrf.mxu0
    %v3550 = vadd.f32 %v3536, %v3549
    %v3551 = vpop.f32.mrf.mxu0
    %v3552 = vadd.f32 %v3538, %v3551
    %3553 = vdwg.mxu0
    %3554 = vmatpush.bf16.msra.mxu0 %v3271
    %3555 = vmatpush.bf16.msra.mxu0 %v3267
    %3556 = vmatpush.bf16.msra.mxu0 %v3263
    %3557 = vmatpush.bf16.msra.mxu0 %v3259
    %3558 = vmatpush.bf16.msra.mxu0 %v3255
    %3559 = vmatpush.bf16.msra.mxu0 %v3251
    %3560 = vmatpush.bf16.msra.mxu0 %v3247
    %3561 = vmatpush.bf16.msra.mxu0 %v3243
    %3562 = vmatmul.bf16.gmra.mxu0 %v2716
    %v3563 = vpop.f32.mrf.mxu0
    %v3564 = vadd.f32 %v2851, %v3563
    %v3565 = vpop.f32.mrf.mxu0
    %v3566 = vadd.f32 %v2851, %v3565
    %3567 = vdwg.mxu0
    %3568 = vmatpush.bf16.msra.mxu0 %v3303
    %3569 = vmatpush.bf16.msra.mxu0 %v3299
    %3570 = vmatpush.bf16.msra.mxu0 %v3295
    %3571 = vmatpush.bf16.msra.mxu0 %v3291
    %3572 = vmatpush.bf16.msra.mxu0 %v3287
    %3573 = vmatpush.bf16.msra.mxu0 %v3283
    %3574 = vmatpush.bf16.msra.mxu0 %v3279
    %3575 = vmatpush.bf16.msra.mxu0 %v3275
    %3576 = vmatmul.bf16.gmra.mxu0 %v2717
    %v3577 = vpop.f32.mrf.mxu0
    %v3578 = vadd.f32 %v3564, %v3577
    %v3579 = vpop.f32.mrf.mxu0
    %v3580 = vadd.f32 %v3566, %v3579
    %3581 = vdwg.mxu0
    %3582 = vmatpush.bf16.msra.mxu0 %v3335
    %3583 = vmatpush.bf16.msra.mxu0 %v3331
    %3584 = vmatpush.bf16.msra.mxu0 %v3327
    %3585 = vmatpush.bf16.msra.mxu0 %v3323
    %3586 = vmatpush.bf16.msra.mxu0 %v3319
    %3587 = vmatpush.bf16.msra.mxu0 %v3315
    %3588 = vmatpush.bf16.msra.mxu0 %v3311
    %3589 = vmatpush.bf16.msra.mxu0 %v3307
    %3590 = vmatmul.bf16.gmra.mxu0 %v2718
    %v3591 = vpop.f32.mrf.mxu0
    %v3592 = vadd.f32 %v3578, %v3591
    %v3593 = vpop.f32.mrf.mxu0
    %v3594 = vadd.f32 %v3580, %v3593
    %3595 = vdwg.mxu0
    %3596 = vmatpush.bf16.msra.mxu0 %v3367
    %3597 = vmatpush.bf16.msra.mxu0 %v3363
    %3598 = vmatpush.bf16.msra.mxu0 %v3359
    %3599 = vmatpush.bf16.msra.mxu0 %v3355
    %3600 = vmatpush.bf16.msra.mxu0 %v3351
    %3601 = vmatpush.bf16.msra.mxu0 %v3347
    %3602 = vmatpush.bf16.msra.mxu0 %v3343
    %3603 = vmatpush.bf16.msra.mxu0 %v3339
    %3604 = vmatmul.bf16.gmra.mxu0 %v2719
    %v3605 = vpop.f32.mrf.mxu0
    %v3606 = vadd.f32 %v3592, %v3605
    %v3607 = vpop.f32.mrf.mxu0
    %v3608 = vadd.f32 %v3594, %v3607
    %3609 = vdwg.mxu0
    %3610 = vmatpush.bf16.msra.mxu0 %v3272
    %3611 = vmatpush.bf16.msra.mxu0 %v3268
    %3612 = vmatpush.bf16.msra.mxu0 %v3264
    %3613 = vmatpush.bf16.msra.mxu0 %v3260
    %3614 = vmatpush.bf16.msra.mxu0 %v3256
    %3615 = vmatpush.bf16.msra.mxu0 %v3252
    %3616 = vmatpush.bf16.msra.mxu0 %v3248
    %3617 = vmatpush.bf16.msra.mxu0 %v3244
    %3618 = vmatmul.bf16.gmra.mxu0 %v2716
    %v3619 = vpop.f32.mrf.mxu0
    %v3620 = vadd.f32 %v2852, %v3619
    %v3621 = vpop.f32.mrf.mxu0
    %v3622 = vadd.f32 %v2852, %v3621
    %3623 = vdwg.mxu0
    %3624 = vmatpush.bf16.msra.mxu0 %v3304
    %3625 = vmatpush.bf16.msra.mxu0 %v3300
    %3626 = vmatpush.bf16.msra.mxu0 %v3296
    %3627 = vmatpush.bf16.msra.mxu0 %v3292
    %3628 = vmatpush.bf16.msra.mxu0 %v3288
    %3629 = vmatpush.bf16.msra.mxu0 %v3284
    %3630 = vmatpush.bf16.msra.mxu0 %v3280
    %3631 = vmatpush.bf16.msra.mxu0 %v3276
    %3632 = vmatmul.bf16.gmra.mxu0 %v2717
    %v3633 = vpop.f32.mrf.mxu0
    %v3634 = vadd.f32 %v3620, %v3633
    %v3635 = vpop.f32.mrf.mxu0
    %v3636 = vadd.f32 %v3622, %v3635
    %3637 = vdwg.mxu0
    %3638 = vmatpush.bf16.msra.mxu0 %v3336
    %3639 = vmatpush.bf16.msra.mxu0 %v3332
    %3640 = vmatpush.bf16.msra.mxu0 %v3328
    %3641 = vmatpush.bf16.msra.mxu0 %v3324
    %3642 = vmatpush.bf16.msra.mxu0 %v3320
    %3643 = vmatpush.bf16.msra.mxu0 %v3316
    %3644 = vmatpush.bf16.msra.mxu0 %v3312
    %3645 = vmatpush.bf16.msra.mxu0 %v3308
    %3646 = vmatmul.bf16.gmra.mxu0 %v2718
    %v3647 = vpop.f32.mrf.mxu0
    %v3648 = vadd.f32 %v3634, %v3647
    %v3649 = vpop.f32.mrf.mxu0
    %v3650 = vadd.f32 %v3636, %v3649
    %3651 = vdwg.mxu0
    %3652 = vmatpush.bf16.msra.mxu0 %v3368
    %3653 = vmatpush.bf16.msra.mxu0 %v3364
    %3654 = vmatpush.bf16.msra.mxu0 %v3360
    %3655 = vmatpush.bf16.msra.mxu0 %v3356
    %3656 = vmatpush.bf16.msra.mxu0 %v3352
    %3657 = vmatpush.bf16.msra.mxu0 %v3348
    %3658 = vmatpush.bf16.msra.mxu0 %v3344
    %3659 = vmatpush.bf16.msra.mxu0 %v3340
    %3660 = vmatmul.bf16.gmra.mxu0 %v2719
    %v3661 = vpop.f32.mrf.mxu0
    %v3662 = vadd.f32 %v3648, %v3661
    %v3663 = vpop.f32.mrf.mxu0
    %v3664 = vadd.f32 %v3650, %v3663
    %3665 = vdwg.mxu0
    %3666 = vmatpush.bf16.msra.mxu0 %v3273
    %3667 = vmatpush.bf16.msra.mxu0 %v3269
    %3668 = vmatpush.bf16.msra.mxu0 %v3265
    %3669 = vmatpush.bf16.msra.mxu0 %v3261
    %3670 = vmatpush.bf16.msra.mxu0 %v3257
    %3671 = vmatpush.bf16.msra.mxu0 %v3253
    %3672 = vmatpush.bf16.msra.mxu0 %v3249
    %3673 = vmatpush.bf16.msra.mxu0 %v3245
    %3674 = vmatmul.bf16.gmra.mxu0 %v2716
    %v3675 = vpop.f32.mrf.mxu0
    %v3676 = vadd.f32 %v2853, %v3675
    %v3677 = vpop.f32.mrf.mxu0
    %v3678 = vadd.f32 %v2853, %v3677
    %3679 = vdwg.mxu0
    %3680 = vmatpush.bf16.msra.mxu0 %v3305
    %3681 = vmatpush.bf16.msra.mxu0 %v3301
    %3682 = vmatpush.bf16.msra.mxu0 %v3297
    %3683 = vmatpush.bf16.msra.mxu0 %v3293
    %3684 = vmatpush.bf16.msra.mxu0 %v3289
    %3685 = vmatpush.bf16.msra.mxu0 %v3285
    %3686 = vmatpush.bf16.msra.mxu0 %v3281
    %3687 = vmatpush.bf16.msra.mxu0 %v3277
    %3688 = vmatmul.bf16.gmra.mxu0 %v2717
    %v3689 = vpop.f32.mrf.mxu0
    %v3690 = vadd.f32 %v3676, %v3689
    %v3691 = vpop.f32.mrf.mxu0
    %v3692 = vadd.f32 %v3678, %v3691
    %3693 = vdwg.mxu0
    %3694 = vmatpush.bf16.msra.mxu0 %v3337
    %3695 = vmatpush.bf16.msra.mxu0 %v3333
    %3696 = vmatpush.bf16.msra.mxu0 %v3329
    %3697 = vmatpush.bf16.msra.mxu0 %v3325
    %3698 = vmatpush.bf16.msra.mxu0 %v3321
    %3699 = vmatpush.bf16.msra.mxu0 %v3317
    %3700 = vmatpush.bf16.msra.mxu0 %v3313
    %3701 = vmatpush.bf16.msra.mxu0 %v3309
    %3702 = vmatmul.bf16.gmra.mxu0 %v2718
    %v3703 = vpop.f32.mrf.mxu0
    %v3704 = vadd.f32 %v3690, %v3703
    %v3705 = vpop.f32.mrf.mxu0
    %v3706 = vadd.f32 %v3692, %v3705
    %3707 = vdwg.mxu0
    %3708 = vmatpush.bf16.msra.mxu0 %v3369
    %3709 = vmatpush.bf16.msra.mxu0 %v3365
    %3710 = vmatpush.bf16.msra.mxu0 %v3361
    %3711 = vmatpush.bf16.msra.mxu0 %v3357
    %3712 = vmatpush.bf16.msra.mxu0 %v3353
    %3713 = vmatpush.bf16.msra.mxu0 %v3349
    %3714 = vmatpush.bf16.msra.mxu0 %v3345
    %3715 = vmatpush.bf16.msra.mxu0 %v3341
    %3716 = vmatmul.bf16.gmra.mxu0 %v2719
    %v3717 = vpop.f32.mrf.mxu0
    %v3718 = vadd.f32 %v3704, %v3717
    %v3719 = vpop.f32.mrf.mxu0
    %v3720 = vadd.f32 %v3706, %v3719
    %3721 = vdwg.mxu0
    %3722 = vst [vmem:[#allocation17] sm:$0xff] %v3550
    %3723 = vst [vmem:[#allocation17 + $0x8] sm:$0xff] %v3606
    %3724 = vst [vmem:[#allocation17 + $0x10] sm:$0xff] %v3662
    %3725 = vst [vmem:[#allocation17 + $0x18] sm:$0xff] %v3718
    %3726 = vst [vmem:[#allocation17 + $0x20] sm:$0xff] %v3552
    %3727 = vst [vmem:[#allocation17 + $0x28] sm:$0xff] %v3608
    %3728 = vst [vmem:[#allocation17 + $0x30] sm:$0xff] %v3664
    %3729 = vst [vmem:[#allocation17 + $0x38] sm:$0xff] %v3720
    // Predicated region
    $region70: #{tpu_custom_call.1} parent=1 // pred_check
      _
    $region71: #{tpu_custom_call.1} parent=1 // pred_check_branch
      %3731 = sbr.rel (0) target = $region73
    $region72: #{tpu_custom_call.1} parent=1 // pred_region
      %3733 = vsyncadd [#allocation4], 0
      %s3734 = sshll.u32 [#allocation16], 4
      %s3735 = int_to_ptr.vmem [resolvable:$true] %s3734
      %s3736 = sshll.u32 %s9, 4
      %s3737 = int_to_ptr.hbm [resolvable:$true] %s3736
      %3742 = dma.vmem_to_hbm [thread:$0]  %s3735, 1024, %s3737, [#allocation4], 512, 512, 32
    $region73: #{tpu_custom_call.1} parent=1 // pred_fallthru
      _
    // Predicated region
    $region74: #{tpu_custom_call.1} parent=1 // pred_check
      _
    $region75: #{tpu_custom_call.1} parent=1 // pred_check_branch
      %3744 = sbr.rel (0) target = $region77
    $region76: #{tpu_custom_call.1} parent=1 // pred_region
      %3746 = vsyncadd [#allocation18], 0
      %s3747 = sshll.u32 [#allocation17], 4
      %s3748 = int_to_ptr.vmem [resolvable:$true] %s3747
      %s3749 = sshll.u32 %s10, 4
      %s3750 = int_to_ptr.hbm [resolvable:$true] %s3749
      %3755 = dma.vmem_to_hbm [thread:$0]  %s3748, 1024, %s3750, [#allocation18], 512, 512, 32
    $region77: #{tpu_custom_call.1} parent=1 // pred_fallthru
      _
    // Predicated region
    $region78: #{tpu_custom_call.1} parent=1 // pred_check
      _
    $region79: #{tpu_custom_call.1} parent=1 // pred_check_branch
      %3757 = sbr.rel (0) target = $region81
    $region80: #{tpu_custom_call.1} parent=1 // pred_region
      %3759 = dma.done [#allocation4], 1024
    $region81: #{tpu_custom_call.1} parent=1 // pred_fallthru
      _
    // Predicated region
    $region82: #{tpu_custom_call.1} parent=1 // pred_check
      _
    $region83: #{tpu_custom_call.1} parent=1 // pred_check_branch
      %3761 = sbr.rel (0) target = $region85
    $region84: #{tpu_custom_call.1} parent=1 // pred_region
      %3763 = dma.done [#allocation18], 1024
    $region85: #{tpu_custom_call.1} parent=1 // pred_fallthru
      _
    %3764 = vsyncpa [#allocation3], 1
    %3765 = vsyncpa [#allocation6], 1
    %3766 = vsyncpa [#allocation9], 1
    %3767 = vsyncpa [#allocation12], 1
    %3768 = vsyncpa [#allocation15], 1
    %3769 = vsyncpa [#allocation4], 1
    %3770 = vsyncpa [#allocation18], 1

</llo_original>
